<compile_context>
chip_gen: v7x
topology: tpu7x:2x2x1
jax: 0.10.0
libtpu: 0.0.40
codegen_flags: <defaults>
</compile_context>

<pallas_src>
import functools

import jax
import jax.numpy as jnp
from jax.experimental import pallas as pl
from jax.experimental.pallas import tpu as pltpu


def _make_kernel(N, H, B, C):
    def kernel(x_ref, w1_ref, b1_ref, w2_ref, b2_ref, wh_ref, bh_ref,
               wp1_ref, bp1_ref, wp2_ref, bp2_ref, t_ref,
               wof_ref, wot_ref, bo_ref,
               feat_ref, prob_ref):
        relu = lambda v: jnp.maximum(v, 0.0)

        def lin(a_f32, w_ref, b_ref):
            # bf16 operands on the MXU, f32 accumulation, f32 bias add.
            return jnp.dot(a_f32.astype(jnp.bfloat16), w_ref[...],
                           preferred_element_type=jnp.float32) + b_ref[...]

        x = x_ref[...]
        h = relu(lin(x, w1_ref, b1_ref))        # priori_fc1
        h = relu(lin(h, w2_ref, b2_ref))        # priori_fc2
        h = relu(lin(h, wh_ref, bh_ref))        # hidden layer (dropout == id)
        h = relu(lin(h, wp1_ref, bp1_ref))      # posterior_fc1
        feat = relu(lin(h, wp2_ref, bp2_ref))   # posterior_fc2
        feat_ref[...] = feat.astype(feat_ref.dtype)

        # Minibatch discrimination.  T is pre-permuted so ms[:, c*B + b] equals
        # torch's Ms[:, b, c]; dim_B = 128 sits on the lane axis.  ms is kept as
        # a live value (no scratch store / reload, no reshape).
        ms = jnp.dot(feat.astype(jnp.bfloat16), t_ref[...],
                     preferred_element_type=jnp.float32)            # (N, C*B) f32
        blocks = [ms[:, c * B:(c + 1) * B] for c in range(C)]       # 128-aligned lane slices

        out_t = None
        for j in range(N):                      # fully unrolled (N is static)
            d = None
            for c in range(C):
                blk = blocks[c]
                diff = jnp.abs(blk - blk[j:j + 1, :])               # (N, B) VPU
                d = diff if d is None else d + diff
            e = jnp.exp(-d)                                         # EUP
            out_t = e if out_t is None else out_t + e               # (N, B)

        # output = sigmoid(Linear(concat(feat, out_T))); concat avoided by
        # splitting the output weight into its feature / out_T halves.
        logit = (jnp.dot(feat, wof_ref[...], preferred_element_type=jnp.float32)
                 + jnp.dot(out_t, wot_ref[...], preferred_element_type=jnp.float32)
                 + bo_ref[...])
        prob = pl.reciprocal(1.0 + jnp.exp(-logit), approx=True)    # sigmoid, EUP only
        prob_ref[...] = prob.astype(prob_ref.dtype)

    return kernel


def discriminator_mlp_premium(x_groups, params, *, dim_B, dim_C):
    """x_groups: (G, N, H) -- G independent minibatches of N rows each."""
    G, N, H = x_groups.shape
    (w1, b1, w2, b2, wh, bh, wp1, bp1, wp2, bp2, t_tensor, wo, bo) = params

    # Pre-permute T so Ms comes out column-ordered (c, b), b on lanes:
    #   torch:  Ms.view(N, B, C)[n, b, c] == (feat @ T)[n, b*C + c]
    #   kernel: ms[n, c*B + b]            == (feat @ T_perm)[n, c*B + b]
    t_perm = (t_tensor.reshape(H, dim_B, dim_C)
              .transpose(0, 2, 1).reshape(H, dim_C * dim_B))
    wo_feat = wo[:H, :]            # (H, 1)
    wo_out = wo[H:, :]             # (dim_B, 1)

    bf = jnp.bfloat16
    ins = [x_groups,
           w1.astype(bf), b1, w2.astype(bf), b2, wh.astype(bf), bh,
           wp1.astype(bf), bp1, wp2.astype(bf), bp2,
           t_perm.astype(bf), wo_feat, wo_out, bo]

    def full_spec(a):
        return pl.BlockSpec(a.shape, lambda g, _nd=a.ndim: (0,) * _nd)

    in_specs = ([pl.BlockSpec((None, N, H), lambda g: (g, 0, 0))]
                + [full_spec(a) for a in ins[1:]])
    out_specs = (pl.BlockSpec((None, N, H), lambda g: (g, 0, 0)),
                 pl.BlockSpec((None, N, 1), lambda g: (g, 0, 0)))

    kernel = _make_kernel(N, H, dim_B, dim_C)
    feat, prob = pl.pallas_call(
        kernel,
        grid=(G,),
        out_shape=(jax.ShapeDtypeStruct((G, N, H), jnp.float32),
                   jax.ShapeDtypeStruct((G, N, 1), jnp.float32)),
        in_specs=in_specs,
        out_specs=out_specs,
        compiler_params=pltpu.CompilerParams(
            dimension_semantics=("parallel",)),
    )(*ins)
    return feat, prob


def reference(x, params, *, dim_B, dim_C):
    """Plain-JAX f32 reproduction of the PyTorch forward (eval mode), one minibatch."""
    (w1, b1, w2, b2, wh, bh, wp1, bp1, wp2, bp2, t_tensor, wo, bo) = params
    relu = lambda v: jnp.maximum(v, 0.0)
    h = relu(x @ w1 + b1)
    h = relu(h @ w2 + b2)
    h = relu(h @ wh + bh)
    h = relu(h @ wp1 + bp1)
    feat = relu(h @ wp2 + bp2)
    ms = (feat @ t_tensor).reshape(-1, dim_B, dim_C)
    d = jnp.sum(jnp.abs(ms[:, None, :, :] - ms[None, :, :, :]), axis=-1)  # (N, N, B)
    out_t = jnp.sum(jnp.exp(-d), axis=1)                                  # (N, B)
    logit = jnp.concatenate([feat, out_t], axis=1) @ wo + bo
    return feat, jax.nn.sigmoid(logit)


def init_params(key, hidden_size, dim_B, dim_C):
    """Deterministic init matching the module's shapes (weights stored as (in, out))."""
    init_range = 0.1
    ks = jax.random.split(key, 8)
    u = lambda k, shape: jax.random.uniform(k, shape, jnp.float32, -init_range, init_range)
    H = hidden_size
    w1 = u(ks[0], (H, 2 * H));       b1 = jnp.zeros((1, 2 * H), jnp.float32)
    w2 = u(ks[1], (2 * H, 3 * H));   b2 = jnp.zeros((1, 3 * H), jnp.float32)
    wh = u(ks[2], (3 * H, 3 * H));   bh = jnp.zeros((1, 3 * H), jnp.float32)
    wp1 = u(ks[3], (3 * H, 2 * H));  bp1 = jnp.zeros((1, 2 * H), jnp.float32)
    wp2 = u(ks[4], (2 * H, H));      bp2 = jnp.zeros((1, H), jnp.float32)
    t_tensor = jax.random.normal(ks[5], (H, dim_B * dim_C), jnp.float32)
    wo = u(ks[6], (H + dim_B, 1));   bo = jnp.zeros((1, 1), jnp.float32)
    return (w1, b1, w2, b2, wh, bh, wp1, bp1, wp2, bp2, t_tensor, wo, bo)


if __name__ == "__main__":
    hidden_size = 32
    dim_B, dim_C = 128, 16
    groups, batch = 2, 8          # two independent minibatches of 8 rows each

    key = jax.random.PRNGKey(0)
    k_x, k_p = jax.random.split(key)
    x = jax.random.normal(k_x, (groups, batch, hidden_size), jnp.float32)
    params = init_params(k_p, hidden_size, dim_B, dim_C)

    run = jax.jit(functools.partial(discriminator_mlp_premium, dim_B=dim_B, dim_C=dim_C))
    feat, prob = run(x, params)
    jax.block_until_ready((feat, prob))

    # bf16 matmuls + approx reciprocal -> relaxed tolerance vs the f32 reference.
    ok = True
    for g in range(groups):
        feat_ref, prob_ref = reference(x[g], params, dim_B=dim_B, dim_C=dim_C)
        ok &= bool(jnp.allclose(feat[g], feat_ref, atol=2e-2, rtol=2e-2))
        ok &= bool(jnp.allclose(prob[g], prob_ref, atol=2e-2, rtol=2e-2))
    assert ok, "mismatch vs f32 reference"
    assert feat.shape == (groups, batch, hidden_size)
    assert prob.shape == (groups, batch, 1)

    print("KERNEL_OK")
</pallas_src>

<mosaic_0001>
module attributes {stable_mosaic.version = 11 : i64} {
  func.func @kernel(%arg0: i32, %arg1: memref<1x8x32xf32, #tpu.memory_space<vmem>>, %arg2: memref<32x64xbf16, #tpu.memory_space<vmem>>, %arg3: memref<1x64xf32, #tpu.memory_space<vmem>>, %arg4: memref<64x96xbf16, #tpu.memory_space<vmem>>, %arg5: memref<1x96xf32, #tpu.memory_space<vmem>>, %arg6: memref<96x96xbf16, #tpu.memory_space<vmem>>, %arg7: memref<1x96xf32, #tpu.memory_space<vmem>>, %arg8: memref<96x64xbf16, #tpu.memory_space<vmem>>, %arg9: memref<1x64xf32, #tpu.memory_space<vmem>>, %arg10: memref<64x32xbf16, #tpu.memory_space<vmem>>, %arg11: memref<1x32xf32, #tpu.memory_space<vmem>>, %arg12: memref<32x2048xbf16, #tpu.memory_space<vmem>>, %arg13: memref<32x1xf32, #tpu.memory_space<vmem>>, %arg14: memref<128x1xf32, #tpu.memory_space<vmem>>, %arg15: memref<1x1xf32, #tpu.memory_space<vmem>>, %arg16: memref<1x8x32xf32, #tpu.memory_space<vmem>>, %arg17: memref<1x8x1xf32, #tpu.memory_space<vmem>>) attributes {dimension_semantics = [#tpu.dimension_semantics<parallel>], iteration_bounds = array<i64: 2>, scalar_prefetch = 0 : i64, scratch_operands = 0 : i64, tpu.core_type = #tpu.core_type<tc>, window_params = [{transform_indices = @transform_0, window_bounds = array<i64: 1, 8, 32>}, {pipeline_mode = #tpu.pipeline_mode<synchronous>, transform_indices = @transform_1, window_bounds = array<i64: 32, 64>}, {pipeline_mode = #tpu.pipeline_mode<synchronous>, transform_indices = @transform_2, window_bounds = array<i64: 1, 64>}, {pipeline_mode = #tpu.pipeline_mode<synchronous>, transform_indices = @transform_3, window_bounds = array<i64: 64, 96>}, {pipeline_mode = #tpu.pipeline_mode<synchronous>, transform_indices = @transform_4, window_bounds = array<i64: 1, 96>}, {pipeline_mode = #tpu.pipeline_mode<synchronous>, transform_indices = @transform_5, window_bounds = array<i64: 96, 96>}, {pipeline_mode = #tpu.pipeline_mode<synchronous>, transform_indices = @transform_6, window_bounds = array<i64: 1, 96>}, {pipeline_mode = #tpu.pipeline_mode<synchronous>, transform_indices = @transform_7, window_bounds = array<i64: 96, 64>}, {pipeline_mode = #tpu.pipeline_mode<synchronous>, transform_indices = @transform_8, window_bounds = array<i64: 1, 64>}, {pipeline_mode = #tpu.pipeline_mode<synchronous>, transform_indices = @transform_9, window_bounds = array<i64: 64, 32>}, {pipeline_mode = #tpu.pipeline_mode<synchronous>, transform_indices = @transform_10, window_bounds = array<i64: 1, 32>}, {pipeline_mode = #tpu.pipeline_mode<synchronous>, transform_indices = @transform_11, window_bounds = array<i64: 32, 2048>}, {pipeline_mode = #tpu.pipeline_mode<synchronous>, transform_indices = @transform_12, window_bounds = array<i64: 32, 1>}, {pipeline_mode = #tpu.pipeline_mode<synchronous>, transform_indices = @transform_13, window_bounds = array<i64: 128, 1>}, {pipeline_mode = #tpu.pipeline_mode<synchronous>, transform_indices = @transform_14, window_bounds = array<i64: 1, 1>}, {transform_indices = @transform_15, window_bounds = array<i64: 1, 8, 32>}, {transform_indices = @transform_16, window_bounds = array<i64: 1, 8, 1>}]} {
    %c0 = arith.constant 0 : index
    %c0_0 = arith.constant 0 : index
    %c0_1 = arith.constant 0 : index
    %0 = vector.load %arg1[%c0, %c0_0, %c0_1] : memref<1x8x32xf32, #tpu.memory_space<vmem>>, vector<1x8x32xf32>
    %1 = vector.shape_cast %0 : vector<1x8x32xf32> to vector<8x32xf32>
    %2 = arith.truncf %1 : vector<8x32xf32> to vector<8x32xbf16>
    %c0_2 = arith.constant 0 : index
    %c0_3 = arith.constant 0 : index
    %3 = vector.load %arg2[%c0_2, %c0_3] : memref<32x64xbf16, #tpu.memory_space<vmem>>, vector<32x64xbf16>
    %cst = arith.constant dense<0.000000e+00> : vector<8x64xf32>
    %4 = tpu.matmul %2, %3, %cst {dimension_numbers = #tpu.dot_dimension_numbers<[1], [0], [0], [1], [0, 0, 1, 1], [], []>} : vector<8x32xbf16>, vector<32x64xbf16>, vector<8x64xf32> -> vector<8x64xf32>
    %c0_4 = arith.constant 0 : index
    %c0_5 = arith.constant 0 : index
    %5 = vector.load %arg3[%c0_4, %c0_5] : memref<1x64xf32, #tpu.memory_space<vmem>>, vector<1x64xf32>
    %6 = vector.broadcast %5 : vector<1x64xf32> to vector<8x64xf32>
    %7 = arith.addf %4, %6 : vector<8x64xf32>
    %cst_6 = arith.constant 0.000000e+00 : f32
    %8 = vector.broadcast %cst_6 : f32 to vector<8x64xf32>
    %9 = arith.maximumf %7, %8 : vector<8x64xf32>
    %10 = arith.truncf %9 : vector<8x64xf32> to vector<8x64xbf16>
    %c0_7 = arith.constant 0 : index
    %c0_8 = arith.constant 0 : index
    %11 = vector.load %arg4[%c0_7, %c0_8] : memref<64x96xbf16, #tpu.memory_space<vmem>>, vector<64x96xbf16>
    %cst_9 = arith.constant dense<0.000000e+00> : vector<8x96xf32>
    %12 = tpu.matmul %10, %11, %cst_9 {dimension_numbers = #tpu.dot_dimension_numbers<[1], [0], [0], [1], [0, 0, 1, 1], [], []>} : vector<8x64xbf16>, vector<64x96xbf16>, vector<8x96xf32> -> vector<8x96xf32>
    %c0_10 = arith.constant 0 : index
    %c0_11 = arith.constant 0 : index
    %13 = vector.load %arg5[%c0_10, %c0_11] : memref<1x96xf32, #tpu.memory_space<vmem>>, vector<1x96xf32>
    %14 = vector.broadcast %13 : vector<1x96xf32> to vector<8x96xf32>
    %15 = arith.addf %12, %14 : vector<8x96xf32>
    %cst_12 = arith.constant 0.000000e+00 : f32
    %16 = vector.broadcast %cst_12 : f32 to vector<8x96xf32>
    %17 = arith.maximumf %15, %16 : vector<8x96xf32>
    %18 = arith.truncf %17 : vector<8x96xf32> to vector<8x96xbf16>
    %c0_13 = arith.constant 0 : index
    %c0_14 = arith.constant 0 : index
    %19 = vector.load %arg6[%c0_13, %c0_14] : memref<96x96xbf16, #tpu.memory_space<vmem>>, vector<96x96xbf16>
    %cst_15 = arith.constant dense<0.000000e+00> : vector<8x96xf32>
    %20 = tpu.matmul %18, %19, %cst_15 {dimension_numbers = #tpu.dot_dimension_numbers<[1], [0], [0], [1], [0, 0, 1, 1], [], []>} : vector<8x96xbf16>, vector<96x96xbf16>, vector<8x96xf32> -> vector<8x96xf32>
    %c0_16 = arith.constant 0 : index
    %c0_17 = arith.constant 0 : index
    %21 = vector.load %arg7[%c0_16, %c0_17] : memref<1x96xf32, #tpu.memory_space<vmem>>, vector<1x96xf32>
    %22 = vector.broadcast %21 : vector<1x96xf32> to vector<8x96xf32>
    %23 = arith.addf %20, %22 : vector<8x96xf32>
    %cst_18 = arith.constant 0.000000e+00 : f32
    %24 = vector.broadcast %cst_18 : f32 to vector<8x96xf32>
    %25 = arith.maximumf %23, %24 : vector<8x96xf32>
    %26 = arith.truncf %25 : vector<8x96xf32> to vector<8x96xbf16>
    %c0_19 = arith.constant 0 : index
    %c0_20 = arith.constant 0 : index
    %27 = vector.load %arg8[%c0_19, %c0_20] : memref<96x64xbf16, #tpu.memory_space<vmem>>, vector<96x64xbf16>
    %cst_21 = arith.constant dense<0.000000e+00> : vector<8x64xf32>
    %28 = tpu.matmul %26, %27, %cst_21 {dimension_numbers = #tpu.dot_dimension_numbers<[1], [0], [0], [1], [0, 0, 1, 1], [], []>} : vector<8x96xbf16>, vector<96x64xbf16>, vector<8x64xf32> -> vector<8x64xf32>
    %c0_22 = arith.constant 0 : index
    %c0_23 = arith.constant 0 : index
    %29 = vector.load %arg9[%c0_22, %c0_23] : memref<1x64xf32, #tpu.memory_space<vmem>>, vector<1x64xf32>
    %30 = vector.broadcast %29 : vector<1x64xf32> to vector<8x64xf32>
    %31 = arith.addf %28, %30 : vector<8x64xf32>
    %cst_24 = arith.constant 0.000000e+00 : f32
    %32 = vector.broadcast %cst_24 : f32 to vector<8x64xf32>
    %33 = arith.maximumf %31, %32 : vector<8x64xf32>
    %34 = arith.truncf %33 : vector<8x64xf32> to vector<8x64xbf16>
    %c0_25 = arith.constant 0 : index
    %c0_26 = arith.constant 0 : index
    %35 = vector.load %arg10[%c0_25, %c0_26] : memref<64x32xbf16, #tpu.memory_space<vmem>>, vector<64x32xbf16>
    %cst_27 = arith.constant dense<0.000000e+00> : vector<8x32xf32>
    %36 = tpu.matmul %34, %35, %cst_27 {dimension_numbers = #tpu.dot_dimension_numbers<[1], [0], [0], [1], [0, 0, 1, 1], [], []>} : vector<8x64xbf16>, vector<64x32xbf16>, vector<8x32xf32> -> vector<8x32xf32>
    %c0_28 = arith.constant 0 : index
    %c0_29 = arith.constant 0 : index
    %37 = vector.load %arg11[%c0_28, %c0_29] : memref<1x32xf32, #tpu.memory_space<vmem>>, vector<1x32xf32>
    %38 = vector.broadcast %37 : vector<1x32xf32> to vector<8x32xf32>
    %39 = arith.addf %36, %38 : vector<8x32xf32>
    %cst_30 = arith.constant 0.000000e+00 : f32
    %40 = vector.broadcast %cst_30 : f32 to vector<8x32xf32>
    %41 = arith.maximumf %39, %40 : vector<8x32xf32>
    %c0_31 = arith.constant 0 : index
    %c0_32 = arith.constant 0 : index
    %c0_33 = arith.constant 0 : index
    %42 = vector.load %arg16[%c0_31, %c0_32, %c0_33] : memref<1x8x32xf32, #tpu.memory_space<vmem>>, vector<1x8x32xf32>
    %43 = vector.shape_cast %42 : vector<1x8x32xf32> to vector<8x32xf32>
    %44 = vector.shape_cast %41 : vector<8x32xf32> to vector<1x8x32xf32>
    tpu.vector_store %arg16[%c0_31, %c0_32, %c0_33], %44 {strides = array<i32>} : memref<1x8x32xf32, #tpu.memory_space<vmem>>, vector<1x8x32xf32>,
    %45 = arith.truncf %41 : vector<8x32xf32> to vector<8x32xbf16>
    %c0_34 = arith.constant 0 : index
    %c0_35 = arith.constant 0 : index
    %46 = vector.load %arg12[%c0_34, %c0_35] : memref<32x2048xbf16, #tpu.memory_space<vmem>>, vector<32x2048xbf16>
    %cst_36 = arith.constant dense<0.000000e+00> : vector<8x2048xf32>
    %47 = tpu.matmul %45, %46, %cst_36 {dimension_numbers = #tpu.dot_dimension_numbers<[1], [0], [0], [1], [0, 0, 1, 1], [], []>} : vector<8x32xbf16>, vector<32x2048xbf16>, vector<8x2048xf32> -> vector<8x2048xf32>
    %48 = vector.extract_strided_slice %47 {offsets = [0, 0], sizes = [8, 128], strides = [1, 1]} : vector<8x2048xf32> to vector<8x128xf32>
    %49 = vector.extract_strided_slice %47 {offsets = [0, 128], sizes = [8, 128], strides = [1, 1]} : vector<8x2048xf32> to vector<8x128xf32>
    %50 = vector.extract_strided_slice %47 {offsets = [0, 256], sizes = [8, 128], strides = [1, 1]} : vector<8x2048xf32> to vector<8x128xf32>
    %51 = vector.extract_strided_slice %47 {offsets = [0, 384], sizes = [8, 128], strides = [1, 1]} : vector<8x2048xf32> to vector<8x128xf32>
    %52 = vector.extract_strided_slice %47 {offsets = [0, 512], sizes = [8, 128], strides = [1, 1]} : vector<8x2048xf32> to vector<8x128xf32>
    %53 = vector.extract_strided_slice %47 {offsets = [0, 640], sizes = [8, 128], strides = [1, 1]} : vector<8x2048xf32> to vector<8x128xf32>
    %54 = vector.extract_strided_slice %47 {offsets = [0, 768], sizes = [8, 128], strides = [1, 1]} : vector<8x2048xf32> to vector<8x128xf32>
    %55 = vector.extract_strided_slice %47 {offsets = [0, 896], sizes = [8, 128], strides = [1, 1]} : vector<8x2048xf32> to vector<8x128xf32>
    %56 = vector.extract_strided_slice %47 {offsets = [0, 1024], sizes = [8, 128], strides = [1, 1]} : vector<8x2048xf32> to vector<8x128xf32>
    %57 = vector.extract_strided_slice %47 {offsets = [0, 1152], sizes = [8, 128], strides = [1, 1]} : vector<8x2048xf32> to vector<8x128xf32>
    %58 = vector.extract_strided_slice %47 {offsets = [0, 1280], sizes = [8, 128], strides = [1, 1]} : vector<8x2048xf32> to vector<8x128xf32>
    %59 = vector.extract_strided_slice %47 {offsets = [0, 1408], sizes = [8, 128], strides = [1, 1]} : vector<8x2048xf32> to vector<8x128xf32>
    %60 = vector.extract_strided_slice %47 {offsets = [0, 1536], sizes = [8, 128], strides = [1, 1]} : vector<8x2048xf32> to vector<8x128xf32>
    %61 = vector.extract_strided_slice %47 {offsets = [0, 1664], sizes = [8, 128], strides = [1, 1]} : vector<8x2048xf32> to vector<8x128xf32>
    %62 = vector.extract_strided_slice %47 {offsets = [0, 1792], sizes = [8, 128], strides = [1, 1]} : vector<8x2048xf32> to vector<8x128xf32>
    %63 = vector.extract_strided_slice %47 {offsets = [0, 1920], sizes = [8, 128], strides = [1, 1]} : vector<8x2048xf32> to vector<8x128xf32>
    %64 = vector.extract_strided_slice %48 {offsets = [0, 0], sizes = [1, 128], strides = [1, 1]} : vector<8x128xf32> to vector<1x128xf32>
    %65 = vector.broadcast %64 : vector<1x128xf32> to vector<8x128xf32>
    %66 = arith.subf %48, %65 : vector<8x128xf32>
    %67 = math.absf %66 : vector<8x128xf32>
    %68 = vector.extract_strided_slice %49 {offsets = [0, 0], sizes = [1, 128], strides = [1, 1]} : vector<8x128xf32> to vector<1x128xf32>
    %69 = vector.broadcast %68 : vector<1x128xf32> to vector<8x128xf32>
    %70 = arith.subf %49, %69 : vector<8x128xf32>
    %71 = math.absf %70 : vector<8x128xf32>
    %72 = arith.addf %67, %71 : vector<8x128xf32>
    %73 = vector.extract_strided_slice %50 {offsets = [0, 0], sizes = [1, 128], strides = [1, 1]} : vector<8x128xf32> to vector<1x128xf32>
    %74 = vector.broadcast %73 : vector<1x128xf32> to vector<8x128xf32>
    %75 = arith.subf %50, %74 : vector<8x128xf32>
    %76 = math.absf %75 : vector<8x128xf32>
    %77 = arith.addf %72, %76 : vector<8x128xf32>
    %78 = vector.extract_strided_slice %51 {offsets = [0, 0], sizes = [1, 128], strides = [1, 1]} : vector<8x128xf32> to vector<1x128xf32>
    %79 = vector.broadcast %78 : vector<1x128xf32> to vector<8x128xf32>
    %80 = arith.subf %51, %79 : vector<8x128xf32>
    %81 = math.absf %80 : vector<8x128xf32>
    %82 = arith.addf %77, %81 : vector<8x128xf32>
    %83 = vector.extract_strided_slice %52 {offsets = [0, 0], sizes = [1, 128], strides = [1, 1]} : vector<8x128xf32> to vector<1x128xf32>
    %84 = vector.broadcast %83 : vector<1x128xf32> to vector<8x128xf32>
    %85 = arith.subf %52, %84 : vector<8x128xf32>
    %86 = math.absf %85 : vector<8x128xf32>
    %87 = arith.addf %82, %86 : vector<8x128xf32>
    %88 = vector.extract_strided_slice %53 {offsets = [0, 0], sizes = [1, 128], strides = [1, 1]} : vector<8x128xf32> to vector<1x128xf32>
    %89 = vector.broadcast %88 : vector<1x128xf32> to vector<8x128xf32>
    %90 = arith.subf %53, %89 : vector<8x128xf32>
    %91 = math.absf %90 : vector<8x128xf32>
    %92 = arith.addf %87, %91 : vector<8x128xf32>
    %93 = vector.extract_strided_slice %54 {offsets = [0, 0], sizes = [1, 128], strides = [1, 1]} : vector<8x128xf32> to vector<1x128xf32>
    %94 = vector.broadcast %93 : vector<1x128xf32> to vector<8x128xf32>
    %95 = arith.subf %54, %94 : vector<8x128xf32>
    %96 = math.absf %95 : vector<8x128xf32>
    %97 = arith.addf %92, %96 : vector<8x128xf32>
    %98 = vector.extract_strided_slice %55 {offsets = [0, 0], sizes = [1, 128], strides = [1, 1]} : vector<8x128xf32> to vector<1x128xf32>
    %99 = vector.broadcast %98 : vector<1x128xf32> to vector<8x128xf32>
    %100 = arith.subf %55, %99 : vector<8x128xf32>
    %101 = math.absf %100 : vector<8x128xf32>
    %102 = arith.addf %97, %101 : vector<8x128xf32>
    %103 = vector.extract_strided_slice %56 {offsets = [0, 0], sizes = [1, 128], strides = [1, 1]} : vector<8x128xf32> to vector<1x128xf32>
    %104 = vector.broadcast %103 : vector<1x128xf32> to vector<8x128xf32>
    %105 = arith.subf %56, %104 : vector<8x128xf32>
    %106 = math.absf %105 : vector<8x128xf32>
    %107 = arith.addf %102, %106 : vector<8x128xf32>
    %108 = vector.extract_strided_slice %57 {offsets = [0, 0], sizes = [1, 128], strides = [1, 1]} : vector<8x128xf32> to vector<1x128xf32>
    %109 = vector.broadcast %108 : vector<1x128xf32> to vector<8x128xf32>
    %110 = arith.subf %57, %109 : vector<8x128xf32>
    %111 = math.absf %110 : vector<8x128xf32>
    %112 = arith.addf %107, %111 : vector<8x128xf32>
    %113 = vector.extract_strided_slice %58 {offsets = [0, 0], sizes = [1, 128], strides = [1, 1]} : vector<8x128xf32> to vector<1x128xf32>
    %114 = vector.broadcast %113 : vector<1x128xf32> to vector<8x128xf32>
    %115 = arith.subf %58, %114 : vector<8x128xf32>
    %116 = math.absf %115 : vector<8x128xf32>
    %117 = arith.addf %112, %116 : vector<8x128xf32>
    %118 = vector.extract_strided_slice %59 {offsets = [0, 0], sizes = [1, 128], strides = [1, 1]} : vector<8x128xf32> to vector<1x128xf32>
    %119 = vector.broadcast %118 : vector<1x128xf32> to vector<8x128xf32>
    %120 = arith.subf %59, %119 : vector<8x128xf32>
    %121 = math.absf %120 : vector<8x128xf32>
    %122 = arith.addf %117, %121 : vector<8x128xf32>
    %123 = vector.extract_strided_slice %60 {offsets = [0, 0], sizes = [1, 128], strides = [1, 1]} : vector<8x128xf32> to vector<1x128xf32>
    %124 = vector.broadcast %123 : vector<1x128xf32> to vector<8x128xf32>
    %125 = arith.subf %60, %124 : vector<8x128xf32>
    %126 = math.absf %125 : vector<8x128xf32>
    %127 = arith.addf %122, %126 : vector<8x128xf32>
    %128 = vector.extract_strided_slice %61 {offsets = [0, 0], sizes = [1, 128], strides = [1, 1]} : vector<8x128xf32> to vector<1x128xf32>
    %129 = vector.broadcast %128 : vector<1x128xf32> to vector<8x128xf32>
    %130 = arith.subf %61, %129 : vector<8x128xf32>
    %131 = math.absf %130 : vector<8x128xf32>
    %132 = arith.addf %127, %131 : vector<8x128xf32>
    %133 = vector.extract_strided_slice %62 {offsets = [0, 0], sizes = [1, 128], strides = [1, 1]} : vector<8x128xf32> to vector<1x128xf32>
    %134 = vector.broadcast %133 : vector<1x128xf32> to vector<8x128xf32>
    %135 = arith.subf %62, %134 : vector<8x128xf32>
    %136 = math.absf %135 : vector<8x128xf32>
    %137 = arith.addf %132, %136 : vector<8x128xf32>
    %138 = vector.extract_strided_slice %63 {offsets = [0, 0], sizes = [1, 128], strides = [1, 1]} : vector<8x128xf32> to vector<1x128xf32>
    %139 = vector.broadcast %138 : vector<1x128xf32> to vector<8x128xf32>
    %140 = arith.subf %63, %139 : vector<8x128xf32>
    %141 = math.absf %140 : vector<8x128xf32>
    %142 = arith.addf %137, %141 : vector<8x128xf32>
    %cst_37 = arith.constant 0.000000e+00 : f32
    %143 = vector.broadcast %cst_37 : f32 to vector<8x128xf32>
    %144 = arith.subf %143, %142 : vector<8x128xf32>
    %145 = math.exp %144 : vector<8x128xf32>
    %146 = vector.extract_strided_slice %48 {offsets = [1, 0], sizes = [1, 128], strides = [1, 1]} : vector<8x128xf32> to vector<1x128xf32>
    %147 = vector.broadcast %146 : vector<1x128xf32> to vector<8x128xf32>
    %148 = arith.subf %48, %147 : vector<8x128xf32>
    %149 = math.absf %148 : vector<8x128xf32>
    %150 = vector.extract_strided_slice %49 {offsets = [1, 0], sizes = [1, 128], strides = [1, 1]} : vector<8x128xf32> to vector<1x128xf32>
    %151 = vector.broadcast %150 : vector<1x128xf32> to vector<8x128xf32>
    %152 = arith.subf %49, %151 : vector<8x128xf32>
    %153 = math.absf %152 : vector<8x128xf32>
    %154 = arith.addf %149, %153 : vector<8x128xf32>
    %155 = vector.extract_strided_slice %50 {offsets = [1, 0], sizes = [1, 128], strides = [1, 1]} : vector<8x128xf32> to vector<1x128xf32>
    %156 = vector.broadcast %155 : vector<1x128xf32> to vector<8x128xf32>
    %157 = arith.subf %50, %156 : vector<8x128xf32>
    %158 = math.absf %157 : vector<8x128xf32>
    %159 = arith.addf %154, %158 : vector<8x128xf32>
    %160 = vector.extract_strided_slice %51 {offsets = [1, 0], sizes = [1, 128], strides = [1, 1]} : vector<8x128xf32> to vector<1x128xf32>
    %161 = vector.broadcast %160 : vector<1x128xf32> to vector<8x128xf32>
    %162 = arith.subf %51, %161 : vector<8x128xf32>
    %163 = math.absf %162 : vector<8x128xf32>
    %164 = arith.addf %159, %163 : vector<8x128xf32>
    %165 = vector.extract_strided_slice %52 {offsets = [1, 0], sizes = [1, 128], strides = [1, 1]} : vector<8x128xf32> to vector<1x128xf32>
    %166 = vector.broadcast %165 : vector<1x128xf32> to vector<8x128xf32>
    %167 = arith.subf %52, %166 : vector<8x128xf32>
    %168 = math.absf %167 : vector<8x128xf32>
    %169 = arith.addf %164, %168 : vector<8x128xf32>
    %170 = vector.extract_strided_slice %53 {offsets = [1, 0], sizes = [1, 128], strides = [1, 1]} : vector<8x128xf32> to vector<1x128xf32>
    %171 = vector.broadcast %170 : vector<1x128xf32> to vector<8x128xf32>
    %172 = arith.subf %53, %171 : vector<8x128xf32>
    %173 = math.absf %172 : vector<8x128xf32>
    %174 = arith.addf %169, %173 : vector<8x128xf32>
    %175 = vector.extract_strided_slice %54 {offsets = [1, 0], sizes = [1, 128], strides = [1, 1]} : vector<8x128xf32> to vector<1x128xf32>
    %176 = vector.broadcast %175 : vector<1x128xf32> to vector<8x128xf32>
    %177 = arith.subf %54, %176 : vector<8x128xf32>
    %178 = math.absf %177 : vector<8x128xf32>
    %179 = arith.addf %174, %178 : vector<8x128xf32>
    %180 = vector.extract_strided_slice %55 {offsets = [1, 0], sizes = [1, 128], strides = [1, 1]} : vector<8x128xf32> to vector<1x128xf32>
    %181 = vector.broadcast %180 : vector<1x128xf32> to vector<8x128xf32>
    %182 = arith.subf %55, %181 : vector<8x128xf32>
    %183 = math.absf %182 : vector<8x128xf32>
    %184 = arith.addf %179, %183 : vector<8x128xf32>
    %185 = vector.extract_strided_slice %56 {offsets = [1, 0], sizes = [1, 128], strides = [1, 1]} : vector<8x128xf32> to vector<1x128xf32>
    %186 = vector.broadcast %185 : vector<1x128xf32> to vector<8x128xf32>
    %187 = arith.subf %56, %186 : vector<8x128xf32>
    %188 = math.absf %187 : vector<8x128xf32>
    %189 = arith.addf %184, %188 : vector<8x128xf32>
    %190 = vector.extract_strided_slice %57 {offsets = [1, 0], sizes = [1, 128], strides = [1, 1]} : vector<8x128xf32> to vector<1x128xf32>
    %191 = vector.broadcast %190 : vector<1x128xf32> to vector<8x128xf32>
    %192 = arith.subf %57, %191 : vector<8x128xf32>
    %193 = math.absf %192 : vector<8x128xf32>
    %194 = arith.addf %189, %193 : vector<8x128xf32>
    %195 = vector.extract_strided_slice %58 {offsets = [1, 0], sizes = [1, 128], strides = [1, 1]} : vector<8x128xf32> to vector<1x128xf32>
    %196 = vector.broadcast %195 : vector<1x128xf32> to vector<8x128xf32>
    %197 = arith.subf %58, %196 : vector<8x128xf32>
    %198 = math.absf %197 : vector<8x128xf32>
    %199 = arith.addf %194, %198 : vector<8x128xf32>
    %200 = vector.extract_strided_slice %59 {offsets = [1, 0], sizes = [1, 128], strides = [1, 1]} : vector<8x128xf32> to vector<1x128xf32>
    %201 = vector.broadcast %200 : vector<1x128xf32> to vector<8x128xf32>
    %202 = arith.subf %59, %201 : vector<8x128xf32>
    %203 = math.absf %202 : vector<8x128xf32>
    %204 = arith.addf %199, %203 : vector<8x128xf32>
    %205 = vector.extract_strided_slice %60 {offsets = [1, 0], sizes = [1, 128], strides = [1, 1]} : vector<8x128xf32> to vector<1x128xf32>
    %206 = vector.broadcast %205 : vector<1x128xf32> to vector<8x128xf32>
    %207 = arith.subf %60, %206 : vector<8x128xf32>
    %208 = math.absf %207 : vector<8x128xf32>
    %209 = arith.addf %204, %208 : vector<8x128xf32>
    %210 = vector.extract_strided_slice %61 {offsets = [1, 0], sizes = [1, 128], strides = [1, 1]} : vector<8x128xf32> to vector<1x128xf32>
    %211 = vector.broadcast %210 : vector<1x128xf32> to vector<8x128xf32>
    %212 = arith.subf %61, %211 : vector<8x128xf32>
    %213 = math.absf %212 : vector<8x128xf32>
    %214 = arith.addf %209, %213 : vector<8x128xf32>
    %215 = vector.extract_strided_slice %62 {offsets = [1, 0], sizes = [1, 128], strides = [1, 1]} : vector<8x128xf32> to vector<1x128xf32>
    %216 = vector.broadcast %215 : vector<1x128xf32> to vector<8x128xf32>
    %217 = arith.subf %62, %216 : vector<8x128xf32>
    %218 = math.absf %217 : vector<8x128xf32>
    %219 = arith.addf %214, %218 : vector<8x128xf32>
    %220 = vector.extract_strided_slice %63 {offsets = [1, 0], sizes = [1, 128], strides = [1, 1]} : vector<8x128xf32> to vector<1x128xf32>
    %221 = vector.broadcast %220 : vector<1x128xf32> to vector<8x128xf32>
    %222 = arith.subf %63, %221 : vector<8x128xf32>
    %223 = math.absf %222 : vector<8x128xf32>
    %224 = arith.addf %219, %223 : vector<8x128xf32>
    %cst_38 = arith.constant 0.000000e+00 : f32
    %225 = vector.broadcast %cst_38 : f32 to vector<8x128xf32>
    %226 = arith.subf %225, %224 : vector<8x128xf32>
    %227 = math.exp %226 : vector<8x128xf32>
    %228 = arith.addf %145, %227 : vector<8x128xf32>
    %229 = vector.extract_strided_slice %48 {offsets = [2, 0], sizes = [1, 128], strides = [1, 1]} : vector<8x128xf32> to vector<1x128xf32>
    %230 = vector.broadcast %229 : vector<1x128xf32> to vector<8x128xf32>
    %231 = arith.subf %48, %230 : vector<8x128xf32>
    %232 = math.absf %231 : vector<8x128xf32>
    %233 = vector.extract_strided_slice %49 {offsets = [2, 0], sizes = [1, 128], strides = [1, 1]} : vector<8x128xf32> to vector<1x128xf32>
    %234 = vector.broadcast %233 : vector<1x128xf32> to vector<8x128xf32>
    %235 = arith.subf %49, %234 : vector<8x128xf32>
    %236 = math.absf %235 : vector<8x128xf32>
    %237 = arith.addf %232, %236 : vector<8x128xf32>
    %238 = vector.extract_strided_slice %50 {offsets = [2, 0], sizes = [1, 128], strides = [1, 1]} : vector<8x128xf32> to vector<1x128xf32>
    %239 = vector.broadcast %238 : vector<1x128xf32> to vector<8x128xf32>
    %240 = arith.subf %50, %239 : vector<8x128xf32>
    %241 = math.absf %240 : vector<8x128xf32>
    %242 = arith.addf %237, %241 : vector<8x128xf32>
    %243 = vector.extract_strided_slice %51 {offsets = [2, 0], sizes = [1, 128], strides = [1, 1]} : vector<8x128xf32> to vector<1x128xf32>
    %244 = vector.broadcast %243 : vector<1x128xf32> to vector<8x128xf32>
    %245 = arith.subf %51, %244 : vector<8x128xf32>
    %246 = math.absf %245 : vector<8x128xf32>
    %247 = arith.addf %242, %246 : vector<8x128xf32>
    %248 = vector.extract_strided_slice %52 {offsets = [2, 0], sizes = [1, 128], strides = [1, 1]} : vector<8x128xf32> to vector<1x128xf32>
    %249 = vector.broadcast %248 : vector<1x128xf32> to vector<8x128xf32>
    %250 = arith.subf %52, %249 : vector<8x128xf32>
    %251 = math.absf %250 : vector<8x128xf32>
    %252 = arith.addf %247, %251 : vector<8x128xf32>
    %253 = vector.extract_strided_slice %53 {offsets = [2, 0], sizes = [1, 128], strides = [1, 1]} : vector<8x128xf32> to vector<1x128xf32>
    %254 = vector.broadcast %253 : vector<1x128xf32> to vector<8x128xf32>
    %255 = arith.subf %53, %254 : vector<8x128xf32>
    %256 = math.absf %255 : vector<8x128xf32>
    %257 = arith.addf %252, %256 : vector<8x128xf32>
    %258 = vector.extract_strided_slice %54 {offsets = [2, 0], sizes = [1, 128], strides = [1, 1]} : vector<8x128xf32> to vector<1x128xf32>
    %259 = vector.broadcast %258 : vector<1x128xf32> to vector<8x128xf32>
    %260 = arith.subf %54, %259 : vector<8x128xf32>
    %261 = math.absf %260 : vector<8x128xf32>
    %262 = arith.addf %257, %261 : vector<8x128xf32>
    %263 = vector.extract_strided_slice %55 {offsets = [2, 0], sizes = [1, 128], strides = [1, 1]} : vector<8x128xf32> to vector<1x128xf32>
    %264 = vector.broadcast %263 : vector<1x128xf32> to vector<8x128xf32>
    %265 = arith.subf %55, %264 : vector<8x128xf32>
    %266 = math.absf %265 : vector<8x128xf32>
    %267 = arith.addf %262, %266 : vector<8x128xf32>
    %268 = vector.extract_strided_slice %56 {offsets = [2, 0], sizes = [1, 128], strides = [1, 1]} : vector<8x128xf32> to vector<1x128xf32>
    %269 = vector.broadcast %268 : vector<1x128xf32> to vector<8x128xf32>
    %270 = arith.subf %56, %269 : vector<8x128xf32>
    %271 = math.absf %270 : vector<8x128xf32>
    %272 = arith.addf %267, %271 : vector<8x128xf32>
    %273 = vector.extract_strided_slice %57 {offsets = [2, 0], sizes = [1, 128], strides = [1, 1]} : vector<8x128xf32> to vector<1x128xf32>
    %274 = vector.broadcast %273 : vector<1x128xf32> to vector<8x128xf32>
    %275 = arith.subf %57, %274 : vector<8x128xf32>
    %276 = math.absf %275 : vector<8x128xf32>
    %277 = arith.addf %272, %276 : vector<8x128xf32>
    %278 = vector.extract_strided_slice %58 {offsets = [2, 0], sizes = [1, 128], strides = [1, 1]} : vector<8x128xf32> to vector<1x128xf32>
    %279 = vector.broadcast %278 : vector<1x128xf32> to vector<8x128xf32>
    %280 = arith.subf %58, %279 : vector<8x128xf32>
    %281 = math.absf %280 : vector<8x128xf32>
    %282 = arith.addf %277, %281 : vector<8x128xf32>
    %283 = vector.extract_strided_slice %59 {offsets = [2, 0], sizes = [1, 128], strides = [1, 1]} : vector<8x128xf32> to vector<1x128xf32>
    %284 = vector.broadcast %283 : vector<1x128xf32> to vector<8x128xf32>
    %285 = arith.subf %59, %284 : vector<8x128xf32>
    %286 = math.absf %285 : vector<8x128xf32>
    %287 = arith.addf %282, %286 : vector<8x128xf32>
    %288 = vector.extract_strided_slice %60 {offsets = [2, 0], sizes = [1, 128], strides = [1, 1]} : vector<8x128xf32> to vector<1x128xf32>
    %289 = vector.broadcast %288 : vector<1x128xf32> to vector<8x128xf32>
    %290 = arith.subf %60, %289 : vector<8x128xf32>
    %291 = math.absf %290 : vector<8x128xf32>
    %292 = arith.addf %287, %291 : vector<8x128xf32>
    %293 = vector.extract_strided_slice %61 {offsets = [2, 0], sizes = [1, 128], strides = [1, 1]} : vector<8x128xf32> to vector<1x128xf32>
    %294 = vector.broadcast %293 : vector<1x128xf32> to vector<8x128xf32>
    %295 = arith.subf %61, %294 : vector<8x128xf32>
    %296 = math.absf %295 : vector<8x128xf32>
    %297 = arith.addf %292, %296 : vector<8x128xf32>
    %298 = vector.extract_strided_slice %62 {offsets = [2, 0], sizes = [1, 128], strides = [1, 1]} : vector<8x128xf32> to vector<1x128xf32>
    %299 = vector.broadcast %298 : vector<1x128xf32> to vector<8x128xf32>
    %300 = arith.subf %62, %299 : vector<8x128xf32>
    %301 = math.absf %300 : vector<8x128xf32>
    %302 = arith.addf %297, %301 : vector<8x128xf32>
    %303 = vector.extract_strided_slice %63 {offsets = [2, 0], sizes = [1, 128], strides = [1, 1]} : vector<8x128xf32> to vector<1x128xf32>
    %304 = vector.broadcast %303 : vector<1x128xf32> to vector<8x128xf32>
    %305 = arith.subf %63, %304 : vector<8x128xf32>
    %306 = math.absf %305 : vector<8x128xf32>
    %307 = arith.addf %302, %306 : vector<8x128xf32>
    %cst_39 = arith.constant 0.000000e+00 : f32
    %308 = vector.broadcast %cst_39 : f32 to vector<8x128xf32>
    %309 = arith.subf %308, %307 : vector<8x128xf32>
    %310 = math.exp %309 : vector<8x128xf32>
    %311 = arith.addf %228, %310 : vector<8x128xf32>
    %312 = vector.extract_strided_slice %48 {offsets = [3, 0], sizes = [1, 128], strides = [1, 1]} : vector<8x128xf32> to vector<1x128xf32>
    %313 = vector.broadcast %312 : vector<1x128xf32> to vector<8x128xf32>
    %314 = arith.subf %48, %313 : vector<8x128xf32>
    %315 = math.absf %314 : vector<8x128xf32>
    %316 = vector.extract_strided_slice %49 {offsets = [3, 0], sizes = [1, 128], strides = [1, 1]} : vector<8x128xf32> to vector<1x128xf32>
    %317 = vector.broadcast %316 : vector<1x128xf32> to vector<8x128xf32>
    %318 = arith.subf %49, %317 : vector<8x128xf32>
    %319 = math.absf %318 : vector<8x128xf32>
    %320 = arith.addf %315, %319 : vector<8x128xf32>
    %321 = vector.extract_strided_slice %50 {offsets = [3, 0], sizes = [1, 128], strides = [1, 1]} : vector<8x128xf32> to vector<1x128xf32>
    %322 = vector.broadcast %321 : vector<1x128xf32> to vector<8x128xf32>
    %323 = arith.subf %50, %322 : vector<8x128xf32>
    %324 = math.absf %323 : vector<8x128xf32>
    %325 = arith.addf %320, %324 : vector<8x128xf32>
    %326 = vector.extract_strided_slice %51 {offsets = [3, 0], sizes = [1, 128], strides = [1, 1]} : vector<8x128xf32> to vector<1x128xf32>
    %327 = vector.broadcast %326 : vector<1x128xf32> to vector<8x128xf32>
    %328 = arith.subf %51, %327 : vector<8x128xf32>
    %329 = math.absf %328 : vector<8x128xf32>
    %330 = arith.addf %325, %329 : vector<8x128xf32>
    %331 = vector.extract_strided_slice %52 {offsets = [3, 0], sizes = [1, 128], strides = [1, 1]} : vector<8x128xf32> to vector<1x128xf32>
    %332 = vector.broadcast %331 : vector<1x128xf32> to vector<8x128xf32>
    %333 = arith.subf %52, %332 : vector<8x128xf32>
    %334 = math.absf %333 : vector<8x128xf32>
    %335 = arith.addf %330, %334 : vector<8x128xf32>
    %336 = vector.extract_strided_slice %53 {offsets = [3, 0], sizes = [1, 128], strides = [1, 1]} : vector<8x128xf32> to vector<1x128xf32>
    %337 = vector.broadcast %336 : vector<1x128xf32> to vector<8x128xf32>
    %338 = arith.subf %53, %337 : vector<8x128xf32>
    %339 = math.absf %338 : vector<8x128xf32>
    %340 = arith.addf %335, %339 : vector<8x128xf32>
    %341 = vector.extract_strided_slice %54 {offsets = [3, 0], sizes = [1, 128], strides = [1, 1]} : vector<8x128xf32> to vector<1x128xf32>
    %342 = vector.broadcast %341 : vector<1x128xf32> to vector<8x128xf32>
    %343 = arith.subf %54, %342 : vector<8x128xf32>
    %344 = math.absf %343 : vector<8x128xf32>
    %345 = arith.addf %340, %344 : vector<8x128xf32>
    %346 = vector.extract_strided_slice %55 {offsets = [3, 0], sizes = [1, 128], strides = [1, 1]} : vector<8x128xf32> to vector<1x128xf32>
    %347 = vector.broadcast %346 : vector<1x128xf32> to vector<8x128xf32>
    %348 = arith.subf %55, %347 : vector<8x128xf32>
    %349 = math.absf %348 : vector<8x128xf32>
    %350 = arith.addf %345, %349 : vector<8x128xf32>
    %351 = vector.extract_strided_slice %56 {offsets = [3, 0], sizes = [1, 128], strides = [1, 1]} : vector<8x128xf32> to vector<1x128xf32>
    %352 = vector.broadcast %351 : vector<1x128xf32> to vector<8x128xf32>
    %353 = arith.subf %56, %352 : vector<8x128xf32>
    %354 = math.absf %353 : vector<8x128xf32>
    %355 = arith.addf %350, %354 : vector<8x128xf32>
    %356 = vector.extract_strided_slice %57 {offsets = [3, 0], sizes = [1, 128], strides = [1, 1]} : vector<8x128xf32> to vector<1x128xf32>
    %357 = vector.broadcast %356 : vector<1x128xf32> to vector<8x128xf32>
    %358 = arith.subf %57, %357 : vector<8x128xf32>
    %359 = math.absf %358 : vector<8x128xf32>
    %360 = arith.addf %355, %359 : vector<8x128xf32>
    %361 = vector.extract_strided_slice %58 {offsets = [3, 0], sizes = [1, 128], strides = [1, 1]} : vector<8x128xf32> to vector<1x128xf32>
    %362 = vector.broadcast %361 : vector<1x128xf32> to vector<8x128xf32>
    %363 = arith.subf %58, %362 : vector<8x128xf32>
    %364 = math.absf %363 : vector<8x128xf32>
    %365 = arith.addf %360, %364 : vector<8x128xf32>
    %366 = vector.extract_strided_slice %59 {offsets = [3, 0], sizes = [1, 128], strides = [1, 1]} : vector<8x128xf32> to vector<1x128xf32>
    %367 = vector.broadcast %366 : vector<1x128xf32> to vector<8x128xf32>
    %368 = arith.subf %59, %367 : vector<8x128xf32>
    %369 = math.absf %368 : vector<8x128xf32>
    %370 = arith.addf %365, %369 : vector<8x128xf32>
    %371 = vector.extract_strided_slice %60 {offsets = [3, 0], sizes = [1, 128], strides = [1, 1]} : vector<8x128xf32> to vector<1x128xf32>
    %372 = vector.broadcast %371 : vector<1x128xf32> to vector<8x128xf32>
    %373 = arith.subf %60, %372 : vector<8x128xf32>
    %374 = math.absf %373 : vector<8x128xf32>
    %375 = arith.addf %370, %374 : vector<8x128xf32>
    %376 = vector.extract_strided_slice %61 {offsets = [3, 0], sizes = [1, 128], strides = [1, 1]} : vector<8x128xf32> to vector<1x128xf32>
    %377 = vector.broadcast %376 : vector<1x128xf32> to vector<8x128xf32>
    %378 = arith.subf %61, %377 : vector<8x128xf32>
    %379 = math.absf %378 : vector<8x128xf32>
    %380 = arith.addf %375, %379 : vector<8x128xf32>
    %381 = vector.extract_strided_slice %62 {offsets = [3, 0], sizes = [1, 128], strides = [1, 1]} : vector<8x128xf32> to vector<1x128xf32>
    %382 = vector.broadcast %381 : vector<1x128xf32> to vector<8x128xf32>
    %383 = arith.subf %62, %382 : vector<8x128xf32>
    %384 = math.absf %383 : vector<8x128xf32>
    %385 = arith.addf %380, %384 : vector<8x128xf32>
    %386 = vector.extract_strided_slice %63 {offsets = [3, 0], sizes = [1, 128], strides = [1, 1]} : vector<8x128xf32> to vector<1x128xf32>
    %387 = vector.broadcast %386 : vector<1x128xf32> to vector<8x128xf32>
    %388 = arith.subf %63, %387 : vector<8x128xf32>
    %389 = math.absf %388 : vector<8x128xf32>
    %390 = arith.addf %385, %389 : vector<8x128xf32>
    %cst_40 = arith.constant 0.000000e+00 : f32
    %391 = vector.broadcast %cst_40 : f32 to vector<8x128xf32>
    %392 = arith.subf %391, %390 : vector<8x128xf32>
    %393 = math.exp %392 : vector<8x128xf32>
    %394 = arith.addf %311, %393 : vector<8x128xf32>
    %395 = vector.extract_strided_slice %48 {offsets = [4, 0], sizes = [1, 128], strides = [1, 1]} : vector<8x128xf32> to vector<1x128xf32>
    %396 = vector.broadcast %395 : vector<1x128xf32> to vector<8x128xf32>
    %397 = arith.subf %48, %396 : vector<8x128xf32>
    %398 = math.absf %397 : vector<8x128xf32>
    %399 = vector.extract_strided_slice %49 {offsets = [4, 0], sizes = [1, 128], strides = [1, 1]} : vector<8x128xf32> to vector<1x128xf32>
    %400 = vector.broadcast %399 : vector<1x128xf32> to vector<8x128xf32>
    %401 = arith.subf %49, %400 : vector<8x128xf32>
    %402 = math.absf %401 : vector<8x128xf32>
    %403 = arith.addf %398, %402 : vector<8x128xf32>
    %404 = vector.extract_strided_slice %50 {offsets = [4, 0], sizes = [1, 128], strides = [1, 1]} : vector<8x128xf32> to vector<1x128xf32>
    %405 = vector.broadcast %404 : vector<1x128xf32> to vector<8x128xf32>
    %406 = arith.subf %50, %405 : vector<8x128xf32>
    %407 = math.absf %406 : vector<8x128xf32>
    %408 = arith.addf %403, %407 : vector<8x128xf32>
    %409 = vector.extract_strided_slice %51 {offsets = [4, 0], sizes = [1, 128], strides = [1, 1]} : vector<8x128xf32> to vector<1x128xf32>
    %410 = vector.broadcast %409 : vector<1x128xf32> to vector<8x128xf32>
    %411 = arith.subf %51, %410 : vector<8x128xf32>
    %412 = math.absf %411 : vector<8x128xf32>
    %413 = arith.addf %408, %412 : vector<8x128xf32>
    %414 = vector.extract_strided_slice %52 {offsets = [4, 0], sizes = [1, 128], strides = [1, 1]} : vector<8x128xf32> to vector<1x128xf32>
    %415 = vector.broadcast %414 : vector<1x128xf32> to vector<8x128xf32>
    %416 = arith.subf %52, %415 : vector<8x128xf32>
    %417 = math.absf %416 : vector<8x128xf32>
    %418 = arith.addf %413, %417 : vector<8x128xf32>
    %419 = vector.extract_strided_slice %53 {offsets = [4, 0], sizes = [1, 128], strides = [1, 1]} : vector<8x128xf32> to vector<1x128xf32>
    %420 = vector.broadcast %419 : vector<1x128xf32> to vector<8x128xf32>
    %421 = arith.subf %53, %420 : vector<8x128xf32>
    %422 = math.absf %421 : vector<8x128xf32>
    %423 = arith.addf %418, %422 : vector<8x128xf32>
    %424 = vector.extract_strided_slice %54 {offsets = [4, 0], sizes = [1, 128], strides = [1, 1]} : vector<8x128xf32> to vector<1x128xf32>
    %425 = vector.broadcast %424 : vector<1x128xf32> to vector<8x128xf32>
    %426 = arith.subf %54, %425 : vector<8x128xf32>
    %427 = math.absf %426 : vector<8x128xf32>
    %428 = arith.addf %423, %427 : vector<8x128xf32>
    %429 = vector.extract_strided_slice %55 {offsets = [4, 0], sizes = [1, 128], strides = [1, 1]} : vector<8x128xf32> to vector<1x128xf32>
    %430 = vector.broadcast %429 : vector<1x128xf32> to vector<8x128xf32>
    %431 = arith.subf %55, %430 : vector<8x128xf32>
    %432 = math.absf %431 : vector<8x128xf32>
    %433 = arith.addf %428, %432 : vector<8x128xf32>
    %434 = vector.extract_strided_slice %56 {offsets = [4, 0], sizes = [1, 128], strides = [1, 1]} : vector<8x128xf32> to vector<1x128xf32>
    %435 = vector.broadcast %434 : vector<1x128xf32> to vector<8x128xf32>
    %436 = arith.subf %56, %435 : vector<8x128xf32>
    %437 = math.absf %436 : vector<8x128xf32>
    %438 = arith.addf %433, %437 : vector<8x128xf32>
    %439 = vector.extract_strided_slice %57 {offsets = [4, 0], sizes = [1, 128], strides = [1, 1]} : vector<8x128xf32> to vector<1x128xf32>
    %440 = vector.broadcast %439 : vector<1x128xf32> to vector<8x128xf32>
    %441 = arith.subf %57, %440 : vector<8x128xf32>
    %442 = math.absf %441 : vector<8x128xf32>
    %443 = arith.addf %438, %442 : vector<8x128xf32>
    %444 = vector.extract_strided_slice %58 {offsets = [4, 0], sizes = [1, 128], strides = [1, 1]} : vector<8x128xf32> to vector<1x128xf32>
    %445 = vector.broadcast %444 : vector<1x128xf32> to vector<8x128xf32>
    %446 = arith.subf %58, %445 : vector<8x128xf32>
    %447 = math.absf %446 : vector<8x128xf32>
    %448 = arith.addf %443, %447 : vector<8x128xf32>
    %449 = vector.extract_strided_slice %59 {offsets = [4, 0], sizes = [1, 128], strides = [1, 1]} : vector<8x128xf32> to vector<1x128xf32>
    %450 = vector.broadcast %449 : vector<1x128xf32> to vector<8x128xf32>
    %451 = arith.subf %59, %450 : vector<8x128xf32>
    %452 = math.absf %451 : vector<8x128xf32>
    %453 = arith.addf %448, %452 : vector<8x128xf32>
    %454 = vector.extract_strided_slice %60 {offsets = [4, 0], sizes = [1, 128], strides = [1, 1]} : vector<8x128xf32> to vector<1x128xf32>
    %455 = vector.broadcast %454 : vector<1x128xf32> to vector<8x128xf32>
    %456 = arith.subf %60, %455 : vector<8x128xf32>
    %457 = math.absf %456 : vector<8x128xf32>
    %458 = arith.addf %453, %457 : vector<8x128xf32>
    %459 = vector.extract_strided_slice %61 {offsets = [4, 0], sizes = [1, 128], strides = [1, 1]} : vector<8x128xf32> to vector<1x128xf32>
    %460 = vector.broadcast %459 : vector<1x128xf32> to vector<8x128xf32>
    %461 = arith.subf %61, %460 : vector<8x128xf32>
    %462 = math.absf %461 : vector<8x128xf32>
    %463 = arith.addf %458, %462 : vector<8x128xf32>
    %464 = vector.extract_strided_slice %62 {offsets = [4, 0], sizes = [1, 128], strides = [1, 1]} : vector<8x128xf32> to vector<1x128xf32>
    %465 = vector.broadcast %464 : vector<1x128xf32> to vector<8x128xf32>
    %466 = arith.subf %62, %465 : vector<8x128xf32>
    %467 = math.absf %466 : vector<8x128xf32>
    %468 = arith.addf %463, %467 : vector<8x128xf32>
    %469 = vector.extract_strided_slice %63 {offsets = [4, 0], sizes = [1, 128], strides = [1, 1]} : vector<8x128xf32> to vector<1x128xf32>
    %470 = vector.broadcast %469 : vector<1x128xf32> to vector<8x128xf32>
    %471 = arith.subf %63, %470 : vector<8x128xf32>
    %472 = math.absf %471 : vector<8x128xf32>
    %473 = arith.addf %468, %472 : vector<8x128xf32>
    %cst_41 = arith.constant 0.000000e+00 : f32
    %474 = vector.broadcast %cst_41 : f32 to vector<8x128xf32>
    %475 = arith.subf %474, %473 : vector<8x128xf32>
    %476 = math.exp %475 : vector<8x128xf32>
    %477 = arith.addf %394, %476 : vector<8x128xf32>
    %478 = vector.extract_strided_slice %48 {offsets = [5, 0], sizes = [1, 128], strides = [1, 1]} : vector<8x128xf32> to vector<1x128xf32>
    %479 = vector.broadcast %478 : vector<1x128xf32> to vector<8x128xf32>
    %480 = arith.subf %48, %479 : vector<8x128xf32>
    %481 = math.absf %480 : vector<8x128xf32>
    %482 = vector.extract_strided_slice %49 {offsets = [5, 0], sizes = [1, 128], strides = [1, 1]} : vector<8x128xf32> to vector<1x128xf32>
    %483 = vector.broadcast %482 : vector<1x128xf32> to vector<8x128xf32>
    %484 = arith.subf %49, %483 : vector<8x128xf32>
    %485 = math.absf %484 : vector<8x128xf32>
    %486 = arith.addf %481, %485 : vector<8x128xf32>
    %487 = vector.extract_strided_slice %50 {offsets = [5, 0], sizes = [1, 128], strides = [1, 1]} : vector<8x128xf32> to vector<1x128xf32>
    %488 = vector.broadcast %487 : vector<1x128xf32> to vector<8x128xf32>
    %489 = arith.subf %50, %488 : vector<8x128xf32>
    %490 = math.absf %489 : vector<8x128xf32>
    %491 = arith.addf %486, %490 : vector<8x128xf32>
    %492 = vector.extract_strided_slice %51 {offsets = [5, 0], sizes = [1, 128], strides = [1, 1]} : vector<8x128xf32> to vector<1x128xf32>
    %493 = vector.broadcast %492 : vector<1x128xf32> to vector<8x128xf32>
    %494 = arith.subf %51, %493 : vector<8x128xf32>
    %495 = math.absf %494 : vector<8x128xf32>
    %496 = arith.addf %491, %495 : vector<8x128xf32>
    %497 = vector.extract_strided_slice %52 {offsets = [5, 0], sizes = [1, 128], strides = [1, 1]} : vector<8x128xf32> to vector<1x128xf32>
    %498 = vector.broadcast %497 : vector<1x128xf32> to vector<8x128xf32>
    %499 = arith.subf %52, %498 : vector<8x128xf32>
    %500 = math.absf %499 : vector<8x128xf32>
    %501 = arith.addf %496, %500 : vector<8x128xf32>
    %502 = vector.extract_strided_slice %53 {offsets = [5, 0], sizes = [1, 128], strides = [1, 1]} : vector<8x128xf32> to vector<1x128xf32>
    %503 = vector.broadcast %502 : vector<1x128xf32> to vector<8x128xf32>
    %504 = arith.subf %53, %503 : vector<8x128xf32>
    %505 = math.absf %504 : vector<8x128xf32>
    %506 = arith.addf %501, %505 : vector<8x128xf32>
    %507 = vector.extract_strided_slice %54 {offsets = [5, 0], sizes = [1, 128], strides = [1, 1]} : vector<8x128xf32> to vector<1x128xf32>
    %508 = vector.broadcast %507 : vector<1x128xf32> to vector<8x128xf32>
    %509 = arith.subf %54, %508 : vector<8x128xf32>
    %510 = math.absf %509 : vector<8x128xf32>
    %511 = arith.addf %506, %510 : vector<8x128xf32>
    %512 = vector.extract_strided_slice %55 {offsets = [5, 0], sizes = [1, 128], strides = [1, 1]} : vector<8x128xf32> to vector<1x128xf32>
    %513 = vector.broadcast %512 : vector<1x128xf32> to vector<8x128xf32>
    %514 = arith.subf %55, %513 : vector<8x128xf32>
    %515 = math.absf %514 : vector<8x128xf32>
    %516 = arith.addf %511, %515 : vector<8x128xf32>
    %517 = vector.extract_strided_slice %56 {offsets = [5, 0], sizes = [1, 128], strides = [1, 1]} : vector<8x128xf32> to vector<1x128xf32>
    %518 = vector.broadcast %517 : vector<1x128xf32> to vector<8x128xf32>
    %519 = arith.subf %56, %518 : vector<8x128xf32>
    %520 = math.absf %519 : vector<8x128xf32>
    %521 = arith.addf %516, %520 : vector<8x128xf32>
    %522 = vector.extract_strided_slice %57 {offsets = [5, 0], sizes = [1, 128], strides = [1, 1]} : vector<8x128xf32> to vector<1x128xf32>
    %523 = vector.broadcast %522 : vector<1x128xf32> to vector<8x128xf32>
    %524 = arith.subf %57, %523 : vector<8x128xf32>
    %525 = math.absf %524 : vector<8x128xf32>
    %526 = arith.addf %521, %525 : vector<8x128xf32>
    %527 = vector.extract_strided_slice %58 {offsets = [5, 0], sizes = [1, 128], strides = [1, 1]} : vector<8x128xf32> to vector<1x128xf32>
    %528 = vector.broadcast %527 : vector<1x128xf32> to vector<8x128xf32>
    %529 = arith.subf %58, %528 : vector<8x128xf32>
    %530 = math.absf %529 : vector<8x128xf32>
    %531 = arith.addf %526, %530 : vector<8x128xf32>
    %532 = vector.extract_strided_slice %59 {offsets = [5, 0], sizes = [1, 128], strides = [1, 1]} : vector<8x128xf32> to vector<1x128xf32>
    %533 = vector.broadcast %532 : vector<1x128xf32> to vector<8x128xf32>
    %534 = arith.subf %59, %533 : vector<8x128xf32>
    %535 = math.absf %534 : vector<8x128xf32>
    %536 = arith.addf %531, %535 : vector<8x128xf32>
    %537 = vector.extract_strided_slice %60 {offsets = [5, 0], sizes = [1, 128], strides = [1, 1]} : vector<8x128xf32> to vector<1x128xf32>
    %538 = vector.broadcast %537 : vector<1x128xf32> to vector<8x128xf32>
    %539 = arith.subf %60, %538 : vector<8x128xf32>
    %540 = math.absf %539 : vector<8x128xf32>
    %541 = arith.addf %536, %540 : vector<8x128xf32>
    %542 = vector.extract_strided_slice %61 {offsets = [5, 0], sizes = [1, 128], strides = [1, 1]} : vector<8x128xf32> to vector<1x128xf32>
    %543 = vector.broadcast %542 : vector<1x128xf32> to vector<8x128xf32>
    %544 = arith.subf %61, %543 : vector<8x128xf32>
    %545 = math.absf %544 : vector<8x128xf32>
    %546 = arith.addf %541, %545 : vector<8x128xf32>
    %547 = vector.extract_strided_slice %62 {offsets = [5, 0], sizes = [1, 128], strides = [1, 1]} : vector<8x128xf32> to vector<1x128xf32>
    %548 = vector.broadcast %547 : vector<1x128xf32> to vector<8x128xf32>
    %549 = arith.subf %62, %548 : vector<8x128xf32>
    %550 = math.absf %549 : vector<8x128xf32>
    %551 = arith.addf %546, %550 : vector<8x128xf32>
    %552 = vector.extract_strided_slice %63 {offsets = [5, 0], sizes = [1, 128], strides = [1, 1]} : vector<8x128xf32> to vector<1x128xf32>
    %553 = vector.broadcast %552 : vector<1x128xf32> to vector<8x128xf32>
    %554 = arith.subf %63, %553 : vector<8x128xf32>
    %555 = math.absf %554 : vector<8x128xf32>
    %556 = arith.addf %551, %555 : vector<8x128xf32>
    %cst_42 = arith.constant 0.000000e+00 : f32
    %557 = vector.broadcast %cst_42 : f32 to vector<8x128xf32>
    %558 = arith.subf %557, %556 : vector<8x128xf32>
    %559 = math.exp %558 : vector<8x128xf32>
    %560 = arith.addf %477, %559 : vector<8x128xf32>
    %561 = vector.extract_strided_slice %48 {offsets = [6, 0], sizes = [1, 128], strides = [1, 1]} : vector<8x128xf32> to vector<1x128xf32>
    %562 = vector.broadcast %561 : vector<1x128xf32> to vector<8x128xf32>
    %563 = arith.subf %48, %562 : vector<8x128xf32>
    %564 = math.absf %563 : vector<8x128xf32>
    %565 = vector.extract_strided_slice %49 {offsets = [6, 0], sizes = [1, 128], strides = [1, 1]} : vector<8x128xf32> to vector<1x128xf32>
    %566 = vector.broadcast %565 : vector<1x128xf32> to vector<8x128xf32>
    %567 = arith.subf %49, %566 : vector<8x128xf32>
    %568 = math.absf %567 : vector<8x128xf32>
    %569 = arith.addf %564, %568 : vector<8x128xf32>
    %570 = vector.extract_strided_slice %50 {offsets = [6, 0], sizes = [1, 128], strides = [1, 1]} : vector<8x128xf32> to vector<1x128xf32>
    %571 = vector.broadcast %570 : vector<1x128xf32> to vector<8x128xf32>
    %572 = arith.subf %50, %571 : vector<8x128xf32>
    %573 = math.absf %572 : vector<8x128xf32>
    %574 = arith.addf %569, %573 : vector<8x128xf32>
    %575 = vector.extract_strided_slice %51 {offsets = [6, 0], sizes = [1, 128], strides = [1, 1]} : vector<8x128xf32> to vector<1x128xf32>
    %576 = vector.broadcast %575 : vector<1x128xf32> to vector<8x128xf32>
    %577 = arith.subf %51, %576 : vector<8x128xf32>
    %578 = math.absf %577 : vector<8x128xf32>
    %579 = arith.addf %574, %578 : vector<8x128xf32>
    %580 = vector.extract_strided_slice %52 {offsets = [6, 0], sizes = [1, 128], strides = [1, 1]} : vector<8x128xf32> to vector<1x128xf32>
    %581 = vector.broadcast %580 : vector<1x128xf32> to vector<8x128xf32>
    %582 = arith.subf %52, %581 : vector<8x128xf32>
    %583 = math.absf %582 : vector<8x128xf32>
    %584 = arith.addf %579, %583 : vector<8x128xf32>
    %585 = vector.extract_strided_slice %53 {offsets = [6, 0], sizes = [1, 128], strides = [1, 1]} : vector<8x128xf32> to vector<1x128xf32>
    %586 = vector.broadcast %585 : vector<1x128xf32> to vector<8x128xf32>
    %587 = arith.subf %53, %586 : vector<8x128xf32>
    %588 = math.absf %587 : vector<8x128xf32>
    %589 = arith.addf %584, %588 : vector<8x128xf32>
    %590 = vector.extract_strided_slice %54 {offsets = [6, 0], sizes = [1, 128], strides = [1, 1]} : vector<8x128xf32> to vector<1x128xf32>
    %591 = vector.broadcast %590 : vector<1x128xf32> to vector<8x128xf32>
    %592 = arith.subf %54, %591 : vector<8x128xf32>
    %593 = math.absf %592 : vector<8x128xf32>
    %594 = arith.addf %589, %593 : vector<8x128xf32>
    %595 = vector.extract_strided_slice %55 {offsets = [6, 0], sizes = [1, 128], strides = [1, 1]} : vector<8x128xf32> to vector<1x128xf32>
    %596 = vector.broadcast %595 : vector<1x128xf32> to vector<8x128xf32>
    %597 = arith.subf %55, %596 : vector<8x128xf32>
    %598 = math.absf %597 : vector<8x128xf32>
    %599 = arith.addf %594, %598 : vector<8x128xf32>
    %600 = vector.extract_strided_slice %56 {offsets = [6, 0], sizes = [1, 128], strides = [1, 1]} : vector<8x128xf32> to vector<1x128xf32>
    %601 = vector.broadcast %600 : vector<1x128xf32> to vector<8x128xf32>
    %602 = arith.subf %56, %601 : vector<8x128xf32>
    %603 = math.absf %602 : vector<8x128xf32>
    %604 = arith.addf %599, %603 : vector<8x128xf32>
    %605 = vector.extract_strided_slice %57 {offsets = [6, 0], sizes = [1, 128], strides = [1, 1]} : vector<8x128xf32> to vector<1x128xf32>
    %606 = vector.broadcast %605 : vector<1x128xf32> to vector<8x128xf32>
    %607 = arith.subf %57, %606 : vector<8x128xf32>
    %608 = math.absf %607 : vector<8x128xf32>
    %609 = arith.addf %604, %608 : vector<8x128xf32>
    %610 = vector.extract_strided_slice %58 {offsets = [6, 0], sizes = [1, 128], strides = [1, 1]} : vector<8x128xf32> to vector<1x128xf32>
    %611 = vector.broadcast %610 : vector<1x128xf32> to vector<8x128xf32>
    %612 = arith.subf %58, %611 : vector<8x128xf32>
    %613 = math.absf %612 : vector<8x128xf32>
    %614 = arith.addf %609, %613 : vector<8x128xf32>
    %615 = vector.extract_strided_slice %59 {offsets = [6, 0], sizes = [1, 128], strides = [1, 1]} : vector<8x128xf32> to vector<1x128xf32>
    %616 = vector.broadcast %615 : vector<1x128xf32> to vector<8x128xf32>
    %617 = arith.subf %59, %616 : vector<8x128xf32>
    %618 = math.absf %617 : vector<8x128xf32>
    %619 = arith.addf %614, %618 : vector<8x128xf32>
    %620 = vector.extract_strided_slice %60 {offsets = [6, 0], sizes = [1, 128], strides = [1, 1]} : vector<8x128xf32> to vector<1x128xf32>
    %621 = vector.broadcast %620 : vector<1x128xf32> to vector<8x128xf32>
    %622 = arith.subf %60, %621 : vector<8x128xf32>
    %623 = math.absf %622 : vector<8x128xf32>
    %624 = arith.addf %619, %623 : vector<8x128xf32>
    %625 = vector.extract_strided_slice %61 {offsets = [6, 0], sizes = [1, 128], strides = [1, 1]} : vector<8x128xf32> to vector<1x128xf32>
    %626 = vector.broadcast %625 : vector<1x128xf32> to vector<8x128xf32>
    %627 = arith.subf %61, %626 : vector<8x128xf32>
    %628 = math.absf %627 : vector<8x128xf32>
    %629 = arith.addf %624, %628 : vector<8x128xf32>
    %630 = vector.extract_strided_slice %62 {offsets = [6, 0], sizes = [1, 128], strides = [1, 1]} : vector<8x128xf32> to vector<1x128xf32>
    %631 = vector.broadcast %630 : vector<1x128xf32> to vector<8x128xf32>
    %632 = arith.subf %62, %631 : vector<8x128xf32>
    %633 = math.absf %632 : vector<8x128xf32>
    %634 = arith.addf %629, %633 : vector<8x128xf32>
    %635 = vector.extract_strided_slice %63 {offsets = [6, 0], sizes = [1, 128], strides = [1, 1]} : vector<8x128xf32> to vector<1x128xf32>
    %636 = vector.broadcast %635 : vector<1x128xf32> to vector<8x128xf32>
    %637 = arith.subf %63, %636 : vector<8x128xf32>
    %638 = math.absf %637 : vector<8x128xf32>
    %639 = arith.addf %634, %638 : vector<8x128xf32>
    %cst_43 = arith.constant 0.000000e+00 : f32
    %640 = vector.broadcast %cst_43 : f32 to vector<8x128xf32>
    %641 = arith.subf %640, %639 : vector<8x128xf32>
    %642 = math.exp %641 : vector<8x128xf32>
    %643 = arith.addf %560, %642 : vector<8x128xf32>
    %644 = vector.extract_strided_slice %48 {offsets = [7, 0], sizes = [1, 128], strides = [1, 1]} : vector<8x128xf32> to vector<1x128xf32>
    %645 = vector.broadcast %644 : vector<1x128xf32> to vector<8x128xf32>
    %646 = arith.subf %48, %645 : vector<8x128xf32>
    %647 = math.absf %646 : vector<8x128xf32>
    %648 = vector.extract_strided_slice %49 {offsets = [7, 0], sizes = [1, 128], strides = [1, 1]} : vector<8x128xf32> to vector<1x128xf32>
    %649 = vector.broadcast %648 : vector<1x128xf32> to vector<8x128xf32>
    %650 = arith.subf %49, %649 : vector<8x128xf32>
    %651 = math.absf %650 : vector<8x128xf32>
    %652 = arith.addf %647, %651 : vector<8x128xf32>
    %653 = vector.extract_strided_slice %50 {offsets = [7, 0], sizes = [1, 128], strides = [1, 1]} : vector<8x128xf32> to vector<1x128xf32>
    %654 = vector.broadcast %653 : vector<1x128xf32> to vector<8x128xf32>
    %655 = arith.subf %50, %654 : vector<8x128xf32>
    %656 = math.absf %655 : vector<8x128xf32>
    %657 = arith.addf %652, %656 : vector<8x128xf32>
    %658 = vector.extract_strided_slice %51 {offsets = [7, 0], sizes = [1, 128], strides = [1, 1]} : vector<8x128xf32> to vector<1x128xf32>
    %659 = vector.broadcast %658 : vector<1x128xf32> to vector<8x128xf32>
    %660 = arith.subf %51, %659 : vector<8x128xf32>
    %661 = math.absf %660 : vector<8x128xf32>
    %662 = arith.addf %657, %661 : vector<8x128xf32>
    %663 = vector.extract_strided_slice %52 {offsets = [7, 0], sizes = [1, 128], strides = [1, 1]} : vector<8x128xf32> to vector<1x128xf32>
    %664 = vector.broadcast %663 : vector<1x128xf32> to vector<8x128xf32>
    %665 = arith.subf %52, %664 : vector<8x128xf32>
    %666 = math.absf %665 : vector<8x128xf32>
    %667 = arith.addf %662, %666 : vector<8x128xf32>
    %668 = vector.extract_strided_slice %53 {offsets = [7, 0], sizes = [1, 128], strides = [1, 1]} : vector<8x128xf32> to vector<1x128xf32>
    %669 = vector.broadcast %668 : vector<1x128xf32> to vector<8x128xf32>
    %670 = arith.subf %53, %669 : vector<8x128xf32>
    %671 = math.absf %670 : vector<8x128xf32>
    %672 = arith.addf %667, %671 : vector<8x128xf32>
    %673 = vector.extract_strided_slice %54 {offsets = [7, 0], sizes = [1, 128], strides = [1, 1]} : vector<8x128xf32> to vector<1x128xf32>
    %674 = vector.broadcast %673 : vector<1x128xf32> to vector<8x128xf32>
    %675 = arith.subf %54, %674 : vector<8x128xf32>
    %676 = math.absf %675 : vector<8x128xf32>
    %677 = arith.addf %672, %676 : vector<8x128xf32>
    %678 = vector.extract_strided_slice %55 {offsets = [7, 0], sizes = [1, 128], strides = [1, 1]} : vector<8x128xf32> to vector<1x128xf32>
    %679 = vector.broadcast %678 : vector<1x128xf32> to vector<8x128xf32>
    %680 = arith.subf %55, %679 : vector<8x128xf32>
    %681 = math.absf %680 : vector<8x128xf32>
    %682 = arith.addf %677, %681 : vector<8x128xf32>
    %683 = vector.extract_strided_slice %56 {offsets = [7, 0], sizes = [1, 128], strides = [1, 1]} : vector<8x128xf32> to vector<1x128xf32>
    %684 = vector.broadcast %683 : vector<1x128xf32> to vector<8x128xf32>
    %685 = arith.subf %56, %684 : vector<8x128xf32>
    %686 = math.absf %685 : vector<8x128xf32>
    %687 = arith.addf %682, %686 : vector<8x128xf32>
    %688 = vector.extract_strided_slice %57 {offsets = [7, 0], sizes = [1, 128], strides = [1, 1]} : vector<8x128xf32> to vector<1x128xf32>
    %689 = vector.broadcast %688 : vector<1x128xf32> to vector<8x128xf32>
    %690 = arith.subf %57, %689 : vector<8x128xf32>
    %691 = math.absf %690 : vector<8x128xf32>
    %692 = arith.addf %687, %691 : vector<8x128xf32>
    %693 = vector.extract_strided_slice %58 {offsets = [7, 0], sizes = [1, 128], strides = [1, 1]} : vector<8x128xf32> to vector<1x128xf32>
    %694 = vector.broadcast %693 : vector<1x128xf32> to vector<8x128xf32>
    %695 = arith.subf %58, %694 : vector<8x128xf32>
    %696 = math.absf %695 : vector<8x128xf32>
    %697 = arith.addf %692, %696 : vector<8x128xf32>
    %698 = vector.extract_strided_slice %59 {offsets = [7, 0], sizes = [1, 128], strides = [1, 1]} : vector<8x128xf32> to vector<1x128xf32>
    %699 = vector.broadcast %698 : vector<1x128xf32> to vector<8x128xf32>
    %700 = arith.subf %59, %699 : vector<8x128xf32>
    %701 = math.absf %700 : vector<8x128xf32>
    %702 = arith.addf %697, %701 : vector<8x128xf32>
    %703 = vector.extract_strided_slice %60 {offsets = [7, 0], sizes = [1, 128], strides = [1, 1]} : vector<8x128xf32> to vector<1x128xf32>
    %704 = vector.broadcast %703 : vector<1x128xf32> to vector<8x128xf32>
    %705 = arith.subf %60, %704 : vector<8x128xf32>
    %706 = math.absf %705 : vector<8x128xf32>
    %707 = arith.addf %702, %706 : vector<8x128xf32>
    %708 = vector.extract_strided_slice %61 {offsets = [7, 0], sizes = [1, 128], strides = [1, 1]} : vector<8x128xf32> to vector<1x128xf32>
    %709 = vector.broadcast %708 : vector<1x128xf32> to vector<8x128xf32>
    %710 = arith.subf %61, %709 : vector<8x128xf32>
    %711 = math.absf %710 : vector<8x128xf32>
    %712 = arith.addf %707, %711 : vector<8x128xf32>
    %713 = vector.extract_strided_slice %62 {offsets = [7, 0], sizes = [1, 128], strides = [1, 1]} : vector<8x128xf32> to vector<1x128xf32>
    %714 = vector.broadcast %713 : vector<1x128xf32> to vector<8x128xf32>
    %715 = arith.subf %62, %714 : vector<8x128xf32>
    %716 = math.absf %715 : vector<8x128xf32>
    %717 = arith.addf %712, %716 : vector<8x128xf32>
    %718 = vector.extract_strided_slice %63 {offsets = [7, 0], sizes = [1, 128], strides = [1, 1]} : vector<8x128xf32> to vector<1x128xf32>
    %719 = vector.broadcast %718 : vector<1x128xf32> to vector<8x128xf32>
    %720 = arith.subf %63, %719 : vector<8x128xf32>
    %721 = math.absf %720 : vector<8x128xf32>
    %722 = arith.addf %717, %721 : vector<8x128xf32>
    %cst_44 = arith.constant 0.000000e+00 : f32
    %723 = vector.broadcast %cst_44 : f32 to vector<8x128xf32>
    %724 = arith.subf %723, %722 : vector<8x128xf32>
    %725 = math.exp %724 : vector<8x128xf32>
    %726 = arith.addf %643, %725 : vector<8x128xf32>
    %c0_45 = arith.constant 0 : index
    %c0_46 = arith.constant 0 : index
    %727 = vector.load %arg13[%c0_45, %c0_46] : memref<32x1xf32, #tpu.memory_space<vmem>>, vector<32x1xf32>
    %cst_47 = arith.constant dense<0.000000e+00> : vector<8x1xf32>
    %728 = tpu.matmul %41, %727, %cst_47 {dimension_numbers = #tpu.dot_dimension_numbers<[1], [0], [0], [1], [0, 0, 1, 1], [], []>} : vector<8x32xf32>, vector<32x1xf32>, vector<8x1xf32> -> vector<8x1xf32>
    %c0_48 = arith.constant 0 : index
    %c0_49 = arith.constant 0 : index
    %729 = vector.load %arg14[%c0_48, %c0_49] : memref<128x1xf32, #tpu.memory_space<vmem>>, vector<128x1xf32>
    %cst_50 = arith.constant dense<0.000000e+00> : vector<8x1xf32>
    %730 = tpu.matmul %726, %729, %cst_50 {dimension_numbers = #tpu.dot_dimension_numbers<[1], [0], [0], [1], [0, 0, 1, 1], [], []>} : vector<8x128xf32>, vector<128x1xf32>, vector<8x1xf32> -> vector<8x1xf32>
    %731 = arith.addf %728, %730 : vector<8x1xf32>
    %c0_51 = arith.constant 0 : index
    %c0_52 = arith.constant 0 : index
    %732 = vector.load %arg15[%c0_51, %c0_52] : memref<1x1xf32, #tpu.memory_space<vmem>>, vector<1x1xf32>
    %733 = vector.broadcast %732 : vector<1x1xf32> to vector<8x1xf32>
    %734 = arith.addf %731, %733 : vector<8x1xf32>
    %cst_53 = arith.constant 0.000000e+00 : f32
    %735 = vector.broadcast %cst_53 : f32 to vector<8x1xf32>
    %736 = arith.subf %735, %734 : vector<8x1xf32>
    %737 = math.exp %736 : vector<8x1xf32>
    %cst_54 = arith.constant 1.000000e+00 : f32
    %738 = vector.broadcast %cst_54 : f32 to vector<8x1xf32>
    %739 = arith.addf %738, %737 : vector<8x1xf32>
    %740 = tpu.reciprocal %739 {approx = true} : vector<8x1xf32> -> vector<8x1xf32>
    %c0_55 = arith.constant 0 : index
    %c0_56 = arith.constant 0 : index
    %c0_57 = arith.constant 0 : index
    %741 = vector.load %arg17[%c0_55, %c0_56, %c0_57] : memref<1x8x1xf32, #tpu.memory_space<vmem>>, vector<1x8x1xf32>
    %742 = vector.shape_cast %741 : vector<1x8x1xf32> to vector<8x1xf32>
    %743 = vector.shape_cast %740 : vector<8x1xf32> to vector<1x8x1xf32>
    tpu.vector_store %arg17[%c0_55, %c0_56, %c0_57], %743 {strides = array<i32>} : memref<1x8x1xf32, #tpu.memory_space<vmem>>, vector<1x8x1xf32>,
    return
  }
  func.func @transform_0(%arg0: i32) -> (i32, i32, i32) {
    %c0_i32 = arith.constant 0 : i32
    %c0_i32_0 = arith.constant 0 : i32
    %c0_i32_1 = arith.constant 0 : i32
    return %arg0, %c0_i32, %c0_i32_0 : i32, i32, i32
  }
  func.func @transform_1(%arg0: i32) -> (i32, i32) {
    %c0_i32 = arith.constant 0 : i32
    %c0_i32_0 = arith.constant 0 : i32
    %c0_i32_1 = arith.constant 0 : i32
    return %c0_i32, %c0_i32_0 : i32, i32
  }
  func.func @transform_2(%arg0: i32) -> (i32, i32) {
    %c0_i32 = arith.constant 0 : i32
    %c0_i32_0 = arith.constant 0 : i32
    %c0_i32_1 = arith.constant 0 : i32
    return %c0_i32, %c0_i32_0 : i32, i32
  }
  func.func @transform_3(%arg0: i32) -> (i32, i32) {
    %c0_i32 = arith.constant 0 : i32
    %c0_i32_0 = arith.constant 0 : i32
    %c0_i32_1 = arith.constant 0 : i32
    return %c0_i32, %c0_i32_0 : i32, i32
  }
  func.func @transform_4(%arg0: i32) -> (i32, i32) {
    %c0_i32 = arith.constant 0 : i32
    %c0_i32_0 = arith.constant 0 : i32
    %c0_i32_1 = arith.constant 0 : i32
    return %c0_i32, %c0_i32_0 : i32, i32
  }
  func.func @transform_5(%arg0: i32) -> (i32, i32) {
    %c0_i32 = arith.constant 0 : i32
    %c0_i32_0 = arith.constant 0 : i32
    %c0_i32_1 = arith.constant 0 : i32
    return %c0_i32, %c0_i32_0 : i32, i32
  }
  func.func @transform_6(%arg0: i32) -> (i32, i32) {
    %c0_i32 = arith.constant 0 : i32
    %c0_i32_0 = arith.constant 0 : i32
    %c0_i32_1 = arith.constant 0 : i32
    return %c0_i32, %c0_i32_0 : i32, i32
  }
  func.func @transform_7(%arg0: i32) -> (i32, i32) {
    %c0_i32 = arith.constant 0 : i32
    %c0_i32_0 = arith.constant 0 : i32
    %c0_i32_1 = arith.constant 0 : i32
    return %c0_i32, %c0_i32_0 : i32, i32
  }
  func.func @transform_8(%arg0: i32) -> (i32, i32) {
    %c0_i32 = arith.constant 0 : i32
    %c0_i32_0 = arith.constant 0 : i32
    %c0_i32_1 = arith.constant 0 : i32
    return %c0_i32, %c0_i32_0 : i32, i32
  }
  func.func @transform_9(%arg0: i32) -> (i32, i32) {
    %c0_i32 = arith.constant 0 : i32
    %c0_i32_0 = arith.constant 0 : i32
    %c0_i32_1 = arith.constant 0 : i32
    return %c0_i32, %c0_i32_0 : i32, i32
  }
  func.func @transform_10(%arg0: i32) -> (i32, i32) {
    %c0_i32 = arith.constant 0 : i32
    %c0_i32_0 = arith.constant 0 : i32
    %c0_i32_1 = arith.constant 0 : i32
    return %c0_i32, %c0_i32_0 : i32, i32
  }
  func.func @transform_11(%arg0: i32) -> (i32, i32) {
    %c0_i32 = arith.constant 0 : i32
    %c0_i32_0 = arith.constant 0 : i32
    %c0_i32_1 = arith.constant 0 : i32
    return %c0_i32, %c0_i32_0 : i32, i32
  }
  func.func @transform_12(%arg0: i32) -> (i32, i32) {
    %c0_i32 = arith.constant 0 : i32
    %c0_i32_0 = arith.constant 0 : i32
    %c0_i32_1 = arith.constant 0 : i32
    return %c0_i32, %c0_i32_0 : i32, i32
  }
  func.func @transform_13(%arg0: i32) -> (i32, i32) {
    %c0_i32 = arith.constant 0 : i32
    %c0_i32_0 = arith.constant 0 : i32
    %c0_i32_1 = arith.constant 0 : i32
    return %c0_i32, %c0_i32_0 : i32, i32
  }
  func.func @transform_14(%arg0: i32) -> (i32, i32) {
    %c0_i32 = arith.constant 0 : i32
    %c0_i32_0 = arith.constant 0 : i32
    %c0_i32_1 = arith.constant 0 : i32
    return %c0_i32, %c0_i32_0 : i32, i32
  }
  func.func @transform_15(%arg0: i32) -> (i32, i32, i32) {
    %c0_i32 = arith.constant 0 : i32
    %c0_i32_0 = arith.constant 0 : i32
    %c0_i32_1 = arith.constant 0 : i32
    return %arg0, %c0_i32, %c0_i32_0 : i32, i32, i32
  }
  func.func @transform_16(%arg0: i32) -> (i32, i32, i32) {
    %c0_i32 = arith.constant 0 : i32
    %c0_i32_0 = arith.constant 0 : i32
    %c0_i32_1 = arith.constant 0 : i32
    return %arg0, %c0_i32, %c0_i32_0 : i32, i32, i32
  }
}

</mosaic_0001>

<llo_original>
// kernel: discriminator_mlp_premium.1
$region0: #{discriminator_mlp_premium.1}
  #allocation0 [shape = 'u32[]', space=smem, size = 0x4, offset = 0x4, fixed_abs, tag = 'smem constant byte address 0x4 - core index']
  #allocation1 [shape = 'u32[144,128]{1,0:T(1,128)}', space=vmem, size = 0x12000, scoped, tag = 'internal scratch']
  #allocation2 [shape = 'f32[1,1]{1,0:T(1,128)S(1)}', space=vmem, size = 0x200, scoped, tag = 'scoped memory for discriminator_mlp_premium.1']
  %s0 = inlined_call_operand.vmem [shape: f32[2,8,32], index: 0, kind: input, shape index: {}]
  %s1 = inlined_call_operand.vmem [shape: bf16[32,64], index: 1, kind: input, shape index: {}]
  %s2 = inlined_call_operand.vmem [shape: f32[1,64], index: 2, kind: input, shape index: {}]
  %s3 = inlined_call_operand.vmem [shape: bf16[64,96], index: 3, kind: input, shape index: {}]
  %s4 = inlined_call_operand.vmem [shape: f32[1,96], index: 4, kind: input, shape index: {}]
  %s5 = inlined_call_operand.vmem [shape: bf16[96,96], index: 5, kind: input, shape index: {}]
  %s6 = inlined_call_operand.vmem [shape: f32[1,96], index: 6, kind: input, shape index: {}]
  %s7 = inlined_call_operand.vmem [shape: bf16[96,64], index: 7, kind: input, shape index: {}]
  %s8 = inlined_call_operand.vmem [shape: f32[1,64], index: 8, kind: input, shape index: {}]
  %s9 = inlined_call_operand.vmem [shape: bf16[64,32], index: 9, kind: input, shape index: {}]
  %s10 = inlined_call_operand.vmem [shape: f32[1,32], index: 10, kind: input, shape index: {}]
  %s11 = inlined_call_operand.vmem [shape: bf16[32,2048], index: 11, kind: input, shape index: {}]
  %s12 = inlined_call_operand.vmem [shape: f32[32,1], index: 12, kind: input, shape index: {}]
  %s13 = inlined_call_operand.vmem [shape: f32[128,1], index: 13, kind: input, shape index: {}]
  %s14 = inlined_call_operand.<no memory space> [shape: f32[1,1], index: 14, kind: input, shape index: {}]
  %s15 = inlined_call_operand.hbm [shape: f32[2,8,32], index: 15, kind: output, shape index: {0}]
  %s16 = inlined_call_operand.vmem [shape: f32[2,8,1], index: 16, kind: output, shape index: {1}]
  %17 = xla_tuple %s15, %s16
  %s18 = sld [smem:[#allocation0]]
  $region101: #{discriminator_mlp_premium.1} parent=0
    _
  %s20 = ssub.s32 1, %s18
  %s21 = scalar_select 0, %s20, %s18
  %v22 = vstv %s14
  %23 = vst [vmem:[#allocation2] sm:$0x1] %v22
  $region1: #{discriminator_mlp_premium.1} parent=0
    #allocation3 [shape = 'u8[8192]{0}', space=vmem, size = 0x2000, scoped, tag = 'output window, operand 0']
    #allocation4 [shape = 's32[2]{0}', space=sflag, size = 0x8, scoped, tag = 'scoped memory for discriminator_mlp_premium.1']
    %24 = vsyncpa [#allocation4], 0
    %s25 = scalar_lea.sflag [#allocation4], 1
    %26 = vsyncpa %s25, 0
    loop: start=0, step=1, limit=4
    $region2: #{discriminator_mlp_premium.1} parent=1 // loop_pre_header
      _
    $region3: #{discriminator_mlp_premium.1} parent=1 // loop_header
      %s28 = sphi 0, %s32
      %p29 = scmp.ge.s32.totalorder %s28, 4
      %s38 = sphi 0, %s40
      %s41 = sphi 0, %s38
      %s42 = sphi 0, %s41
      %s58 = sphi 0, %s42
      %s62 = sphi 0, %s62
      %s64 = sphi 0, %s62
      %s65 = sphi 0, %s64
      %s79 = sphi 0, %s65
      %s83 = sphi 0, %s83
      %s85 = sphi 0, %s83
      %s86 = sphi 0, %s85
      %s100 = sphi 0, %s86
      %s104 = sphi 0, %s104
      %s106 = sphi 0, %s104
      %s107 = sphi 0, %s106
      %s121 = sphi 0, %s107
      %s125 = sphi 0, %s125
      %s127 = sphi 0, %s125
      %s128 = sphi 0, %s127
      %s142 = sphi 0, %s128
      %s146 = sphi 0, %s146
      %s148 = sphi 0, %s146
      %s149 = sphi 0, %s148
      %s163 = sphi 0, %s149
      %s167 = sphi 0, %s167
      %s169 = sphi 0, %s167
      %s170 = sphi 0, %s169
      %s184 = sphi 0, %s170
      %s188 = sphi 0, %s188
      %s190 = sphi 0, %s188
      %s191 = sphi 0, %s190
      %s205 = sphi 0, %s191
      %s209 = sphi 0, %s209
      %s211 = sphi 0, %s209
      %s212 = sphi 0, %s211
      %s226 = sphi 0, %s212
      %s230 = sphi 0, %s230
      %s232 = sphi 0, %s230
      %s233 = sphi 0, %s232
      %s247 = sphi 0, %s233
      %s251 = sphi 0, %s251
      %s253 = sphi 0, %s251
      %s254 = sphi 0, %s253
      %s268 = sphi 0, %s254
      %s272 = sphi 0, %s272
      %s274 = sphi 0, %s272
      %s275 = sphi 0, %s274
      %s289 = sphi 0, %s275
      %s293 = sphi 0, %s293
      %s295 = sphi 0, %s293
      %s296 = sphi 0, %s295
      %s310 = sphi 0, %s296
      %s314 = sphi 0, %s314
      %s316 = sphi 0, %s314
      %s317 = sphi 0, %s316
      %s331 = sphi 0, %s317
      %s335 = sphi 0, %s335
      %s337 = sphi 0, %s335
      %s338 = sphi 0, %s337
      %s352 = sphi 0, %s338
      %s358 = sphi 0, %s360
      %s361 = sphi 0, %s358
      %s362 = sphi 0, %s361
      %s378 = sphi 0, %s362
      %s384 = sphi 0, %s386
      %s387 = sphi 0, %s384
      %s388 = sphi 0, %s387
      %s404 = sphi 0, %s388
    $region4: #{discriminator_mlp_premium.1} parent=1 // loop_header_branch
      %31 = sbr.rel (%p29) target = $region8
    $region5: #{discriminator_mlp_premium.1} parent=1 // loop_body
      %s33 = ssub.s32 %s28, 1
      %s34 = ssub.s32 %s28, 2
      %s35 = sadd.s32 %s28, 1
      %s36 = ssub.s32 %s28, %s35
      %p37 = scmp.eq.s32.totalorder %s36, 0
      %s39 = sadd.s32 %s38, 1
      %s40 = scalar_select %p37, %s38, %s39
      %p43 = pneg %p37
      %p44 = scmp.eq.s32.totalorder %s28, 1
      %p45 = por %p43, %p44
      %p46 = scmp.ne.s32.totalorder %s38, %s41
      %p47 = scmp.eq.s32.totalorder %s28, 0
      %p48 = por %p46, %p47
      %p49 = scmp.ne.s32.totalorder %s38, %s41
      %p50 = scmp.eq.s32.totalorder %s33, 1
      %p51 = por %p49, %p50
      %p52 = scmp.ne.s32.totalorder %s41, %s42
      %p53 = scmp.eq.s32.totalorder %s33, 0
      %p54 = por %p52, %p53
      %p55 = scmp.ne.s32.totalorder %s41, %s42
      %p56 = scmp.eq.s32.totalorder %s34, 1
      %p57 = por %p55, %p56
      %p59 = scmp.ne.s32.totalorder %s42, %s58
      %p60 = scmp.eq.s32.totalorder %s34, 0
      %p61 = por %p59, %p60
      %s63 = sadd.s32 %s62, 1
      %p66 = scmp.eq.s32.totalorder %s28, 1
      %p67 = scmp.ne.s32.totalorder %s62, %s64
      %p68 = scmp.eq.s32.totalorder %s28, 0
      %p69 = por %p67, %p68
      %p70 = scmp.ne.s32.totalorder %s62, %s64
      %p71 = scmp.eq.s32.totalorder %s33, 1
      %p72 = por %p70, %p71
      %p73 = scmp.ne.s32.totalorder %s64, %s65
      %p74 = scmp.eq.s32.totalorder %s33, 0
      %p75 = por %p73, %p74
      %p76 = scmp.ne.s32.totalorder %s64, %s65
      %p77 = scmp.eq.s32.totalorder %s34, 1
      %p78 = por %p76, %p77
      %p80 = scmp.ne.s32.totalorder %s65, %s79
      %p81 = scmp.eq.s32.totalorder %s34, 0
      %p82 = por %p80, %p81
      %s84 = sadd.s32 %s83, 1
      %p87 = scmp.eq.s32.totalorder %s28, 1
      %p88 = scmp.ne.s32.totalorder %s83, %s85
      %p89 = scmp.eq.s32.totalorder %s28, 0
      %p90 = por %p88, %p89
      %p91 = scmp.ne.s32.totalorder %s83, %s85
      %p92 = scmp.eq.s32.totalorder %s33, 1
      %p93 = por %p91, %p92
      %p94 = scmp.ne.s32.totalorder %s85, %s86
      %p95 = scmp.eq.s32.totalorder %s33, 0
      %p96 = por %p94, %p95
      %p97 = scmp.ne.s32.totalorder %s85, %s86
      %p98 = scmp.eq.s32.totalorder %s34, 1
      %p99 = por %p97, %p98
      %p101 = scmp.ne.s32.totalorder %s86, %s100
      %p102 = scmp.eq.s32.totalorder %s34, 0
      %p103 = por %p101, %p102
      %s105 = sadd.s32 %s104, 1
      %p108 = scmp.eq.s32.totalorder %s28, 1
      %p109 = scmp.ne.s32.totalorder %s104, %s106
      %p110 = scmp.eq.s32.totalorder %s28, 0
      %p111 = por %p109, %p110
      %p112 = scmp.ne.s32.totalorder %s104, %s106
      %p113 = scmp.eq.s32.totalorder %s33, 1
      %p114 = por %p112, %p113
      %p115 = scmp.ne.s32.totalorder %s106, %s107
      %p116 = scmp.eq.s32.totalorder %s33, 0
      %p117 = por %p115, %p116
      %p118 = scmp.ne.s32.totalorder %s106, %s107
      %p119 = scmp.eq.s32.totalorder %s34, 1
      %p120 = por %p118, %p119
      %p122 = scmp.ne.s32.totalorder %s107, %s121
      %p123 = scmp.eq.s32.totalorder %s34, 0
      %p124 = por %p122, %p123
      %s126 = sadd.s32 %s125, 1
      %p129 = scmp.eq.s32.totalorder %s28, 1
      %p130 = scmp.ne.s32.totalorder %s125, %s127
      %p131 = scmp.eq.s32.totalorder %s28, 0
      %p132 = por %p130, %p131
      %p133 = scmp.ne.s32.totalorder %s125, %s127
      %p134 = scmp.eq.s32.totalorder %s33, 1
      %p135 = por %p133, %p134
      %p136 = scmp.ne.s32.totalorder %s127, %s128
      %p137 = scmp.eq.s32.totalorder %s33, 0
      %p138 = por %p136, %p137
      %p139 = scmp.ne.s32.totalorder %s127, %s128
      %p140 = scmp.eq.s32.totalorder %s34, 1
      %p141 = por %p139, %p140
      %p143 = scmp.ne.s32.totalorder %s128, %s142
      %p144 = scmp.eq.s32.totalorder %s34, 0
      %p145 = por %p143, %p144
      %s147 = sadd.s32 %s146, 1
      %p150 = scmp.eq.s32.totalorder %s28, 1
      %p151 = scmp.ne.s32.totalorder %s146, %s148
      %p152 = scmp.eq.s32.totalorder %s28, 0
      %p153 = por %p151, %p152
      %p154 = scmp.ne.s32.totalorder %s146, %s148
      %p155 = scmp.eq.s32.totalorder %s33, 1
      %p156 = por %p154, %p155
      %p157 = scmp.ne.s32.totalorder %s148, %s149
      %p158 = scmp.eq.s32.totalorder %s33, 0
      %p159 = por %p157, %p158
      %p160 = scmp.ne.s32.totalorder %s148, %s149
      %p161 = scmp.eq.s32.totalorder %s34, 1
      %p162 = por %p160, %p161
      %p164 = scmp.ne.s32.totalorder %s149, %s163
      %p165 = scmp.eq.s32.totalorder %s34, 0
      %p166 = por %p164, %p165
      %s168 = sadd.s32 %s167, 1
      %p171 = scmp.eq.s32.totalorder %s28, 1
      %p172 = scmp.ne.s32.totalorder %s167, %s169
      %p173 = scmp.eq.s32.totalorder %s28, 0
      %p174 = por %p172, %p173
      %p175 = scmp.ne.s32.totalorder %s167, %s169
      %p176 = scmp.eq.s32.totalorder %s33, 1
      %p177 = por %p175, %p176
      %p178 = scmp.ne.s32.totalorder %s169, %s170
      %p179 = scmp.eq.s32.totalorder %s33, 0
      %p180 = por %p178, %p179
      %p181 = scmp.ne.s32.totalorder %s169, %s170
      %p182 = scmp.eq.s32.totalorder %s34, 1
      %p183 = por %p181, %p182
      %p185 = scmp.ne.s32.totalorder %s170, %s184
      %p186 = scmp.eq.s32.totalorder %s34, 0
      %p187 = por %p185, %p186
      %s189 = sadd.s32 %s188, 1
      %p192 = scmp.eq.s32.totalorder %s28, 1
      %p193 = scmp.ne.s32.totalorder %s188, %s190
      %p194 = scmp.eq.s32.totalorder %s28, 0
      %p195 = por %p193, %p194
      %p196 = scmp.ne.s32.totalorder %s188, %s190
      %p197 = scmp.eq.s32.totalorder %s33, 1
      %p198 = por %p196, %p197
      %p199 = scmp.ne.s32.totalorder %s190, %s191
      %p200 = scmp.eq.s32.totalorder %s33, 0
      %p201 = por %p199, %p200
      %p202 = scmp.ne.s32.totalorder %s190, %s191
      %p203 = scmp.eq.s32.totalorder %s34, 1
      %p204 = por %p202, %p203
      %p206 = scmp.ne.s32.totalorder %s191, %s205
      %p207 = scmp.eq.s32.totalorder %s34, 0
      %p208 = por %p206, %p207
      %s210 = sadd.s32 %s209, 1
      %p213 = scmp.eq.s32.totalorder %s28, 1
      %p214 = scmp.ne.s32.totalorder %s209, %s211
      %p215 = scmp.eq.s32.totalorder %s28, 0
      %p216 = por %p214, %p215
      %p217 = scmp.ne.s32.totalorder %s209, %s211
      %p218 = scmp.eq.s32.totalorder %s33, 1
      %p219 = por %p217, %p218
      %p220 = scmp.ne.s32.totalorder %s211, %s212
      %p221 = scmp.eq.s32.totalorder %s33, 0
      %p222 = por %p220, %p221
      %p223 = scmp.ne.s32.totalorder %s211, %s212
      %p224 = scmp.eq.s32.totalorder %s34, 1
      %p225 = por %p223, %p224
      %p227 = scmp.ne.s32.totalorder %s212, %s226
      %p228 = scmp.eq.s32.totalorder %s34, 0
      %p229 = por %p227, %p228
      %s231 = sadd.s32 %s230, 1
      %p234 = scmp.eq.s32.totalorder %s28, 1
      %p235 = scmp.ne.s32.totalorder %s230, %s232
      %p236 = scmp.eq.s32.totalorder %s28, 0
      %p237 = por %p235, %p236
      %p238 = scmp.ne.s32.totalorder %s230, %s232
      %p239 = scmp.eq.s32.totalorder %s33, 1
      %p240 = por %p238, %p239
      %p241 = scmp.ne.s32.totalorder %s232, %s233
      %p242 = scmp.eq.s32.totalorder %s33, 0
      %p243 = por %p241, %p242
      %p244 = scmp.ne.s32.totalorder %s232, %s233
      %p245 = scmp.eq.s32.totalorder %s34, 1
      %p246 = por %p244, %p245
      %p248 = scmp.ne.s32.totalorder %s233, %s247
      %p249 = scmp.eq.s32.totalorder %s34, 0
      %p250 = por %p248, %p249
      %s252 = sadd.s32 %s251, 1
      %p255 = scmp.eq.s32.totalorder %s28, 1
      %p256 = scmp.ne.s32.totalorder %s251, %s253
      %p257 = scmp.eq.s32.totalorder %s28, 0
      %p258 = por %p256, %p257
      %p259 = scmp.ne.s32.totalorder %s251, %s253
      %p260 = scmp.eq.s32.totalorder %s33, 1
      %p261 = por %p259, %p260
      %p262 = scmp.ne.s32.totalorder %s253, %s254
      %p263 = scmp.eq.s32.totalorder %s33, 0
      %p264 = por %p262, %p263
      %p265 = scmp.ne.s32.totalorder %s253, %s254
      %p266 = scmp.eq.s32.totalorder %s34, 1
      %p267 = por %p265, %p266
      %p269 = scmp.ne.s32.totalorder %s254, %s268
      %p270 = scmp.eq.s32.totalorder %s34, 0
      %p271 = por %p269, %p270
      %s273 = sadd.s32 %s272, 1
      %p276 = scmp.eq.s32.totalorder %s28, 1
      %p277 = scmp.ne.s32.totalorder %s272, %s274
      %p278 = scmp.eq.s32.totalorder %s28, 0
      %p279 = por %p277, %p278
      %p280 = scmp.ne.s32.totalorder %s272, %s274
      %p281 = scmp.eq.s32.totalorder %s33, 1
      %p282 = por %p280, %p281
      %p283 = scmp.ne.s32.totalorder %s274, %s275
      %p284 = scmp.eq.s32.totalorder %s33, 0
      %p285 = por %p283, %p284
      %p286 = scmp.ne.s32.totalorder %s274, %s275
      %p287 = scmp.eq.s32.totalorder %s34, 1
      %p288 = por %p286, %p287
      %p290 = scmp.ne.s32.totalorder %s275, %s289
      %p291 = scmp.eq.s32.totalorder %s34, 0
      %p292 = por %p290, %p291
      %s294 = sadd.s32 %s293, 1
      %p297 = scmp.eq.s32.totalorder %s28, 1
      %p298 = scmp.ne.s32.totalorder %s293, %s295
      %p299 = scmp.eq.s32.totalorder %s28, 0
      %p300 = por %p298, %p299
      %p301 = scmp.ne.s32.totalorder %s293, %s295
      %p302 = scmp.eq.s32.totalorder %s33, 1
      %p303 = por %p301, %p302
      %p304 = scmp.ne.s32.totalorder %s295, %s296
      %p305 = scmp.eq.s32.totalorder %s33, 0
      %p306 = por %p304, %p305
      %p307 = scmp.ne.s32.totalorder %s295, %s296
      %p308 = scmp.eq.s32.totalorder %s34, 1
      %p309 = por %p307, %p308
      %p311 = scmp.ne.s32.totalorder %s296, %s310
      %p312 = scmp.eq.s32.totalorder %s34, 0
      %p313 = por %p311, %p312
      %s315 = sadd.s32 %s314, 1
      %p318 = scmp.eq.s32.totalorder %s28, 1
      %p319 = scmp.ne.s32.totalorder %s314, %s316
      %p320 = scmp.eq.s32.totalorder %s28, 0
      %p321 = por %p319, %p320
      %p322 = scmp.ne.s32.totalorder %s314, %s316
      %p323 = scmp.eq.s32.totalorder %s33, 1
      %p324 = por %p322, %p323
      %p325 = scmp.ne.s32.totalorder %s316, %s317
      %p326 = scmp.eq.s32.totalorder %s33, 0
      %p327 = por %p325, %p326
      %p328 = scmp.ne.s32.totalorder %s316, %s317
      %p329 = scmp.eq.s32.totalorder %s34, 1
      %p330 = por %p328, %p329
      %p332 = scmp.ne.s32.totalorder %s317, %s331
      %p333 = scmp.eq.s32.totalorder %s34, 0
      %p334 = por %p332, %p333
      %s336 = sadd.s32 %s335, 1
      %p339 = scmp.eq.s32.totalorder %s28, 1
      %p340 = scmp.ne.s32.totalorder %s335, %s337
      %p341 = scmp.eq.s32.totalorder %s28, 0
      %p342 = por %p340, %p341
      %p343 = scmp.ne.s32.totalorder %s335, %s337
      %p344 = scmp.eq.s32.totalorder %s33, 1
      %p345 = por %p343, %p344
      %p346 = scmp.ne.s32.totalorder %s337, %s338
      %p347 = scmp.eq.s32.totalorder %s33, 0
      %p348 = por %p346, %p347
      %p349 = scmp.ne.s32.totalorder %s337, %s338
      %p350 = scmp.eq.s32.totalorder %s34, 1
      %p351 = por %p349, %p350
      %p353 = scmp.ne.s32.totalorder %s338, %s352
      %p354 = scmp.eq.s32.totalorder %s34, 0
      %p355 = por %p353, %p354
      %s356 = ssub.s32 %s28, %s35
      %p357 = scmp.eq.s32.totalorder %s356, 0
      %s359 = sadd.s32 %s358, 1
      %s360 = scalar_select %p357, %s358, %s359
      %p363 = pneg %p357
      %p364 = scmp.eq.s32.totalorder %s28, 1
      %p365 = por %p363, %p364
      %p366 = scmp.ne.s32.totalorder %s358, %s361
      %p367 = scmp.eq.s32.totalorder %s28, 0
      %p368 = por %p366, %p367
      %p369 = scmp.ne.s32.totalorder %s358, %s361
      %p370 = scmp.eq.s32.totalorder %s33, 1
      %p371 = por %p369, %p370
      %p372 = scmp.ne.s32.totalorder %s361, %s362
      %p373 = scmp.eq.s32.totalorder %s33, 0
      %p374 = por %p372, %p373
      %p375 = scmp.ne.s32.totalorder %s361, %s362
      %p376 = scmp.eq.s32.totalorder %s34, 1
      %p377 = por %p375, %p376
      %p379 = scmp.ne.s32.totalorder %s362, %s378
      %p380 = scmp.eq.s32.totalorder %s34, 0
      %p381 = por %p379, %p380
      %s382 = ssub.s32 %s28, %s35
      %p383 = scmp.eq.s32.totalorder %s382, 0
      %s385 = sadd.s32 %s384, 1
      %s386 = scalar_select %p383, %s384, %s385
      %p389 = pneg %p383
      %p390 = scmp.eq.s32.totalorder %s28, 1
      %p391 = por %p389, %p390
      %p392 = scmp.ne.s32.totalorder %s384, %s387
      %p393 = scmp.eq.s32.totalorder %s28, 0
      %p394 = por %p392, %p393
      %p395 = scmp.ne.s32.totalorder %s384, %s387
      %p396 = scmp.eq.s32.totalorder %s33, 1
      %p397 = por %p395, %p396
      %p398 = scmp.ne.s32.totalorder %s387, %s388
      %p399 = scmp.eq.s32.totalorder %s33, 0
      %p400 = por %p398, %p399
      %p401 = scmp.ne.s32.totalorder %s387, %s388
      %p402 = scmp.eq.s32.totalorder %s34, 1
      %p403 = por %p401, %p402
      %p405 = scmp.ne.s32.totalorder %s388, %s404
      %p406 = scmp.eq.s32.totalorder %s34, 0
      %p407 = por %p405, %p406
      %p408 = scmp.le.s32.totalorder 1, %s28
      %p409 = scmp.lt.s32.totalorder %s28, 3
      %p410 = pnand %p408, %p409
      %p411 = pneg %p410
      // Predicated region
      $region9: #{discriminator_mlp_premium.1} parent=5 // pred_check
        _
      $region10: #{discriminator_mlp_premium.1} parent=5 // pred_check_branch
        %413 = sbr.rel (%p410) target = $region12
      $region11: #{discriminator_mlp_premium.1} parent=5 // pred_region
        %s414 = ssub.s32 %s28, 1
        // Predicated region
        $region13: #{discriminator_mlp_premium.1} parent=11 // pred_check
          %p415 = pneg %p75
        $region14: #{discriminator_mlp_premium.1} parent=11 // pred_check_branch
          %417 = sbr.rel (%p415) target = $region16
        $region15: #{discriminator_mlp_premium.1} parent=11 // pred_region
          _
        $region16: #{discriminator_mlp_premium.1} parent=11 // pred_fallthru
          _
        // Predicated region
        $region17: #{discriminator_mlp_premium.1} parent=11 // pred_check
          %p418 = pneg %p96
        $region18: #{discriminator_mlp_premium.1} parent=11 // pred_check_branch
          %420 = sbr.rel (%p418) target = $region20
        $region19: #{discriminator_mlp_premium.1} parent=11 // pred_region
          _
        $region20: #{discriminator_mlp_premium.1} parent=11 // pred_fallthru
          _
        // Predicated region
        $region21: #{discriminator_mlp_premium.1} parent=11 // pred_check
          %p421 = pneg %p117
        $region22: #{discriminator_mlp_premium.1} parent=11 // pred_check_branch
          %423 = sbr.rel (%p421) target = $region24
        $region23: #{discriminator_mlp_premium.1} parent=11 // pred_region
          _
        $region24: #{discriminator_mlp_premium.1} parent=11 // pred_fallthru
          _
        // Predicated region
        $region25: #{discriminator_mlp_premium.1} parent=11 // pred_check
          %p424 = pneg %p138
        $region26: #{discriminator_mlp_premium.1} parent=11 // pred_check_branch
          %426 = sbr.rel (%p424) target = $region28
        $region27: #{discriminator_mlp_premium.1} parent=11 // pred_region
          _
        $region28: #{discriminator_mlp_premium.1} parent=11 // pred_fallthru
          _
        // Predicated region
        $region29: #{discriminator_mlp_premium.1} parent=11 // pred_check
          %p427 = pneg %p159
        $region30: #{discriminator_mlp_premium.1} parent=11 // pred_check_branch
          %429 = sbr.rel (%p427) target = $region32
        $region31: #{discriminator_mlp_premium.1} parent=11 // pred_region
          _
        $region32: #{discriminator_mlp_premium.1} parent=11 // pred_fallthru
          _
        // Predicated region
        $region33: #{discriminator_mlp_premium.1} parent=11 // pred_check
          %p430 = pneg %p180
        $region34: #{discriminator_mlp_premium.1} parent=11 // pred_check_branch
          %432 = sbr.rel (%p430) target = $region36
        $region35: #{discriminator_mlp_premium.1} parent=11 // pred_region
          _
        $region36: #{discriminator_mlp_premium.1} parent=11 // pred_fallthru
          _
        // Predicated region
        $region37: #{discriminator_mlp_premium.1} parent=11 // pred_check
          %p433 = pneg %p201
        $region38: #{discriminator_mlp_premium.1} parent=11 // pred_check_branch
          %435 = sbr.rel (%p433) target = $region40
        $region39: #{discriminator_mlp_premium.1} parent=11 // pred_region
          _
        $region40: #{discriminator_mlp_premium.1} parent=11 // pred_fallthru
          _
        // Predicated region
        $region41: #{discriminator_mlp_premium.1} parent=11 // pred_check
          %p436 = pneg %p222
        $region42: #{discriminator_mlp_premium.1} parent=11 // pred_check_branch
          %438 = sbr.rel (%p436) target = $region44
        $region43: #{discriminator_mlp_premium.1} parent=11 // pred_region
          _
        $region44: #{discriminator_mlp_premium.1} parent=11 // pred_fallthru
          _
        // Predicated region
        $region45: #{discriminator_mlp_premium.1} parent=11 // pred_check
          %p439 = pneg %p243
        $region46: #{discriminator_mlp_premium.1} parent=11 // pred_check_branch
          %441 = sbr.rel (%p439) target = $region48
        $region47: #{discriminator_mlp_premium.1} parent=11 // pred_region
          _
        $region48: #{discriminator_mlp_premium.1} parent=11 // pred_fallthru
          _
        // Predicated region
        $region49: #{discriminator_mlp_premium.1} parent=11 // pred_check
          %p442 = pneg %p264
        $region50: #{discriminator_mlp_premium.1} parent=11 // pred_check_branch
          %444 = sbr.rel (%p442) target = $region52
        $region51: #{discriminator_mlp_premium.1} parent=11 // pred_region
          _
        $region52: #{discriminator_mlp_premium.1} parent=11 // pred_fallthru
          _
        // Predicated region
        $region53: #{discriminator_mlp_premium.1} parent=11 // pred_check
          %p445 = pneg %p285
        $region54: #{discriminator_mlp_premium.1} parent=11 // pred_check_branch
          %447 = sbr.rel (%p445) target = $region56
        $region55: #{discriminator_mlp_premium.1} parent=11 // pred_region
          _
        $region56: #{discriminator_mlp_premium.1} parent=11 // pred_fallthru
          _
        // Predicated region
        $region57: #{discriminator_mlp_premium.1} parent=11 // pred_check
          %p448 = pneg %p306
        $region58: #{discriminator_mlp_premium.1} parent=11 // pred_check_branch
          %450 = sbr.rel (%p448) target = $region60
        $region59: #{discriminator_mlp_premium.1} parent=11 // pred_region
          _
        $region60: #{discriminator_mlp_premium.1} parent=11 // pred_fallthru
          _
        // Predicated region
        $region61: #{discriminator_mlp_premium.1} parent=11 // pred_check
          %p451 = pneg %p327
        $region62: #{discriminator_mlp_premium.1} parent=11 // pred_check_branch
          %453 = sbr.rel (%p451) target = $region64
        $region63: #{discriminator_mlp_premium.1} parent=11 // pred_region
          _
        $region64: #{discriminator_mlp_premium.1} parent=11 // pred_fallthru
          _
        // Predicated region
        $region65: #{discriminator_mlp_premium.1} parent=11 // pred_check
          %p454 = pneg %p348
        $region66: #{discriminator_mlp_premium.1} parent=11 // pred_check_branch
          %456 = sbr.rel (%p454) target = $region68
        $region67: #{discriminator_mlp_premium.1} parent=11 // pred_region
          _
        $region68: #{discriminator_mlp_premium.1} parent=11 // pred_fallthru
          _
      $region12: #{discriminator_mlp_premium.1} parent=5 // pred_fallthru
        _
      %p457 = scmp.lt.s32.totalorder %s28, 2
      // Predicated region
      $region69: #{discriminator_mlp_premium.1} parent=5 // pred_check
        %p458 = pneg %p457
      $region70: #{discriminator_mlp_premium.1} parent=5 // pred_check_branch
        %460 = sbr.rel (%p458) target = $region72
      $region71: #{discriminator_mlp_premium.1} parent=5 // pred_region
        // Predicated region
        $region73: #{discriminator_mlp_premium.1} parent=71 // pred_check
          %p461 = pneg %p48
        $region74: #{discriminator_mlp_premium.1} parent=71 // pred_check_branch
          %463 = sbr.rel (%p461) target = $region76
        $region75: #{discriminator_mlp_premium.1} parent=71 // pred_region
          %p464 = scmp.lt.s32.totalorder %s28, 1
          %s465 = scalar_select %p464, %s28, 1
          %s466 = smul.addr %s465, 8
          %s467 = scalar_lea.vmem %s0, %s466
        $region76: #{discriminator_mlp_premium.1} parent=71 // pred_fallthru
          _
      $region72: #{discriminator_mlp_premium.1} parent=5 // pred_fallthru
        _
      %p468 = scmp.le.s32.totalorder 1, %s28
      %p469 = scmp.lt.s32.totalorder %s28, 3
      %p470 = pnand %p468, %p469
      %p471 = pneg %p470
      // Predicated region
      $region77: #{discriminator_mlp_premium.1} parent=5 // pred_check
        _
      $region78: #{discriminator_mlp_premium.1} parent=5 // pred_check_branch
        %473 = sbr.rel (%p470) target = $region80
      $region79: #{discriminator_mlp_premium.1} parent=5 // pred_region
        %s474 = ssub.s32 %s28, 1
        %p475 = scmp.lt.s32.totalorder %s33, 1
        %s476 = scalar_select %p475, %s33, 1
        %s477 = smul.addr %s476, 8
        %s478 = scalar_lea.vmem %s0, %s477
        %p479 = pneg %p54
        %p480 = pneg %p51
        %p481 = pneg %p75
        %p482 = pneg %p72
        %p483 = pneg %p96
        %p484 = pneg %p93
        %p485 = pneg %p117
        %p486 = pneg %p114
        %p487 = pneg %p138
        %p488 = pneg %p135
        %p489 = pneg %p159
        %p490 = pneg %p156
        %p491 = pneg %p180
        %p492 = pneg %p177
        %p493 = pneg %p201
        %p494 = pneg %p198
        %p495 = pneg %p222
        %p496 = pneg %p219
        %p497 = pneg %p243
        %p498 = pneg %p240
        %p499 = pneg %p264
        %p500 = pneg %p261
        %p501 = pneg %p285
        %p502 = pneg %p282
        %p503 = pneg %p306
        %p504 = pneg %p303
        %p505 = pneg %p327
        %p506 = pneg %p324
        %p507 = pneg %p348
        %p508 = pneg %p345
        %p509 = pneg %p374
        %p510 = pneg %p371
        %s511 = sand.u32 %s361, 1
        %s512 = scalar_lea.sflag [#allocation4], %s511
        %s513 = sand.u32 %s361, 1
        %s514 = smul.addr %s513, 8
        %s515 = scalar_lea.vmem [#allocation3], %s514
        %p516 = pneg %p400
        %p517 = pneg %p397
        %p518 = scmp.lt.s32.totalorder %s33, 1
        %s519 = scalar_select %p518, %s33, 1
        %s520 = smul.addr %s519, 8
        %s521 = scalar_lea.vmem %s16, %s520
        %p522 = scmp.lt.s32.totalorder %s33, 1
        %s523 = scalar_select %p522, %s33, 1
        %s524 = smul.addr %s523, 8
        %s525 = scalar_lea.vmem %s0, %s524
        %p526 = scmp.lt.s32.totalorder %s33, 1
        %s527 = scalar_select %p526, %s33, 1
        %s528 = smul.addr %s527, 8
        %s529 = scalar_lea.vmem %s16, %s528
        %v531 = vld [vmem:[%s525] sm:$0xff]
        %v532 = vpack.c.bf16 %v531, %v531
        %v533 = vld [vmem:[%s1] sm:$0xf]
        %v534 = vld [vmem:[%s1 + $0x4] sm:$0xf]
        %v535 = vld [vmem:[%s1 + $0x8] sm:$0xf]
        %v536 = vld [vmem:[%s1 + $0xc] sm:$0xf]
        %v537 = vld [vmem:[%s2] sm:$0x1]
        %v539 = vlaneseq
        %v540 = vshrl.u32 %v539, 7
        %v541 = vsub.s32 0, %v540
        %v542 = vrot.slane %v537, %v541
        %v548 = vunpack.c.l.b16 %v533
        %v549 = vunpack.c.l.b16 %v534
        %v550 = vunpack.c.l.b16 %v535
        %v551 = vunpack.c.l.b16 %v536
        %v552 = vpack.c.b16 %v549, %v548
        %v553 = vpack.c.b16 %v551, %v550
        %vm556 = vcmask 261120
        %v558 = vsel %vm556, %v532, 0
        %560 = vmatprep.subr.bf16.mxu0 0
        %561 = vmatpush1.bf16.msra.mxu0 %v552
        %562 = vmatprep.subr.bf16.mxu0 0
        %563 = vmatpush1.bf16.msra.mxu0 %v553
        %564 = vmatprep.subr.bf16.mxu0 0
        %565 = vmatpush1.bf16.msra.mxu0 0
        %566 = vmatprep.subr.bf16.mxu0 0
        %567 = vmatpush1.bf16.msra.mxu0 0
        %568 = vmatprep.subr.bf16.mxu0 0
        %569 = vmatpush1.bf16.msra.mxu0 0
        %570 = vmatprep.subr.bf16.mxu0 0
        %571 = vmatpush1.bf16.msra.mxu0 0
        %572 = vmatprep.subr.bf16.mxu0 0
        %573 = vmatpush1.bf16.msra.mxu0 0
        %574 = vmatprep.subr.bf16.mxu0 0
        %575 = vmatpush1.bf16.msra.mxu0 0
        %576 = vmatprep.subr.bf16.mxu0 0
        %577 = vmatpush1.bf16.msra.mxu0 0
        %578 = vmatprep.subr.bf16.mxu0 0
        %579 = vmatpush1.bf16.msra.mxu0 0
        %580 = vmatprep.subr.bf16.mxu0 0
        %581 = vmatpush1.bf16.msra.mxu0 0
        %582 = vmatprep.subr.bf16.mxu0 0
        %583 = vmatpush1.bf16.msra.mxu0 0
        %584 = vmatprep.subr.bf16.mxu0 0
        %585 = vmatpush1.bf16.msra.mxu0 0
        %586 = vmatprep.subr.bf16.mxu0 0
        %587 = vmatpush1.bf16.msra.mxu0 0
        %588 = vmatprep.subr.bf16.mxu0 0
        %589 = vmatpush1.bf16.msra.mxu0 0
        %590 = vmatprep.subr.bf16.mxu0 0
        %591 = vmatpush1.bf16.msra.mxu0 0
        %592 = vmatprep.mubr.bf16.mxu0 0
        %593 = vmatmul.mubr.bf16.gmra.mrb[0].mxu0 %v558
        %v594 = vpop.f32.mrb[0].mxu0
        %v595 = vadd.f32 %v542, %v594
        %v596 = vpop.f32.mrb[0].mxu0
        %v597 = vpop.f32.mrb[0].mxu0
        %v598 = vpop.f32.mrb[0].mxu0
        %599 = vdwg.mxu0
        %v600 = vmax.f32 %v595, 0.0
        %v601 = vpack.c.bf16 %v600, %v600
        %v602 = vld [vmem:[%s3] sm:$0xf]
        %v603 = vld [vmem:[%s3 + $0x4] sm:$0xf]
        %v604 = vld [vmem:[%s3 + $0x8] sm:$0xf]
        %v605 = vld [vmem:[%s3 + $0xc] sm:$0xf]
        %v606 = vld [vmem:[%s3 + $0x10] sm:$0xf]
        %v607 = vld [vmem:[%s3 + $0x14] sm:$0xf]
        %v608 = vld [vmem:[%s3 + $0x18] sm:$0xf]
        %v609 = vld [vmem:[%s3 + $0x1c] sm:$0xf]
        %v610 = vld [vmem:[%s4] sm:$0x1]
        %v612 = vlaneseq
        %v613 = vshrl.u32 %v612, 7
        %v614 = vsub.s32 0, %v613
        %v615 = vrot.slane %v610, %v614
        %v625 = vunpack.c.l.b16 %v602
        %v626 = vunpack.c.l.b16 %v603
        %v627 = vunpack.c.l.b16 %v604
        %v628 = vunpack.c.l.b16 %v605
        %v629 = vunpack.c.l.b16 %v606
        %v630 = vunpack.c.l.b16 %v607
        %v631 = vunpack.c.l.b16 %v608
        %v632 = vunpack.c.l.b16 %v609
        %v633 = vpack.c.b16 %v626, %v625
        %v634 = vpack.c.b16 %v628, %v627
        %v635 = vpack.c.b16 %v630, %v629
        %v636 = vpack.c.b16 %v632, %v631
        %vm641 = vcmask 523264
        %v643 = vsel %vm641, %v601, 0
        %645 = vmatprep.subr.bf16.mxu0 0
        %646 = vmatpush1.bf16.msra.mxu0 %v633
        %647 = vmatprep.subr.bf16.mxu0 0
        %648 = vmatpush1.bf16.msra.mxu0 %v634
        %649 = vmatprep.subr.bf16.mxu0 0
        %650 = vmatpush1.bf16.msra.mxu0 %v635
        %651 = vmatprep.subr.bf16.mxu0 0
        %652 = vmatpush1.bf16.msra.mxu0 %v636
        %653 = vmatprep.subr.bf16.mxu0 0
        %654 = vmatpush1.bf16.msra.mxu0 0
        %655 = vmatprep.subr.bf16.mxu0 0
        %656 = vmatpush1.bf16.msra.mxu0 0
        %657 = vmatprep.subr.bf16.mxu0 0
        %658 = vmatpush1.bf16.msra.mxu0 0
        %659 = vmatprep.subr.bf16.mxu0 0
        %660 = vmatpush1.bf16.msra.mxu0 0
        %661 = vmatprep.subr.bf16.mxu0 0
        %662 = vmatpush1.bf16.msra.mxu0 0
        %663 = vmatprep.subr.bf16.mxu0 0
        %664 = vmatpush1.bf16.msra.mxu0 0
        %665 = vmatprep.subr.bf16.mxu0 0
        %666 = vmatpush1.bf16.msra.mxu0 0
        %667 = vmatprep.subr.bf16.mxu0 0
        %668 = vmatpush1.bf16.msra.mxu0 0
        %669 = vmatprep.subr.bf16.mxu0 0
        %670 = vmatpush1.bf16.msra.mxu0 0
        %671 = vmatprep.subr.bf16.mxu0 0
        %672 = vmatpush1.bf16.msra.mxu0 0
        %673 = vmatprep.subr.bf16.mxu0 0
        %674 = vmatpush1.bf16.msra.mxu0 0
        %675 = vmatprep.subr.bf16.mxu0 0
        %676 = vmatpush1.bf16.msra.mxu0 0
        %677 = vmatprep.mubr.bf16.mxu0 0
        %678 = vmatmul.mubr.bf16.gmra.mrb[0].mxu0 %v643
        %v679 = vpop.f32.mrb[0].mxu0
        %v680 = vadd.f32 %v615, %v679
        %v681 = vpop.f32.mrb[0].mxu0
        %v682 = vpop.f32.mrb[0].mxu0
        %v683 = vpop.f32.mrb[0].mxu0
        %684 = vdwg.mxu0
        %v685 = vmax.f32 %v680, 0.0
        %v686 = vpack.c.bf16 %v685, %v685
        %v687 = vld [vmem:[%s5] sm:$0xf]
        %v688 = vld [vmem:[%s5 + $0x4] sm:$0xf]
        %v689 = vld [vmem:[%s5 + $0x8] sm:$0xf]
        %v690 = vld [vmem:[%s5 + $0xc] sm:$0xf]
        %v691 = vld [vmem:[%s5 + $0x10] sm:$0xf]
        %v692 = vld [vmem:[%s5 + $0x14] sm:$0xf]
        %v693 = vld [vmem:[%s5 + $0x18] sm:$0xf]
        %v694 = vld [vmem:[%s5 + $0x1c] sm:$0xf]
        %v695 = vld [vmem:[%s5 + $0x20] sm:$0xf]
        %v696 = vld [vmem:[%s5 + $0x24] sm:$0xf]
        %v697 = vld [vmem:[%s5 + $0x28] sm:$0xf]
        %v698 = vld [vmem:[%s5 + $0x2c] sm:$0xf]
        %v699 = vld [vmem:[%s6] sm:$0x1]
        %v701 = vlaneseq
        %v702 = vshrl.u32 %v701, 7
        %v703 = vsub.s32 0, %v702
        %v704 = vrot.slane %v699, %v703
        %v718 = vunpack.c.l.b16 %v687
        %v719 = vunpack.c.l.b16 %v688
        %v720 = vunpack.c.l.b16 %v689
        %v721 = vunpack.c.l.b16 %v690
        %v722 = vunpack.c.l.b16 %v691
        %v723 = vunpack.c.l.b16 %v692
        %v724 = vunpack.c.l.b16 %v693
        %v725 = vunpack.c.l.b16 %v694
        %v726 = vunpack.c.l.b16 %v695
        %v727 = vunpack.c.l.b16 %v696
        %v728 = vunpack.c.l.b16 %v697
        %v729 = vunpack.c.l.b16 %v698
        %v730 = vpack.c.b16 %v719, %v718
        %v731 = vpack.c.b16 %v721, %v720
        %v732 = vpack.c.b16 %v723, %v722
        %v733 = vpack.c.b16 %v725, %v724
        %v734 = vpack.c.b16 %v727, %v726
        %v735 = vpack.c.b16 %v729, %v728
        %vm742 = vcmask 785408
        %v744 = vsel %vm742, %v686, 0
        %746 = vmatprep.subr.bf16.mxu0 0
        %747 = vmatpush1.bf16.msra.mxu0 %v730
        %748 = vmatprep.subr.bf16.mxu0 0
        %749 = vmatpush1.bf16.msra.mxu0 %v731
        %750 = vmatprep.subr.bf16.mxu0 0
        %751 = vmatpush1.bf16.msra.mxu0 %v732
        %752 = vmatprep.subr.bf16.mxu0 0
        %753 = vmatpush1.bf16.msra.mxu0 %v733
        %754 = vmatprep.subr.bf16.mxu0 0
        %755 = vmatpush1.bf16.msra.mxu0 %v734
        %756 = vmatprep.subr.bf16.mxu0 0
        %757 = vmatpush1.bf16.msra.mxu0 %v735
        %758 = vmatprep.subr.bf16.mxu0 0
        %759 = vmatpush1.bf16.msra.mxu0 0
        %760 = vmatprep.subr.bf16.mxu0 0
        %761 = vmatpush1.bf16.msra.mxu0 0
        %762 = vmatprep.subr.bf16.mxu0 0
        %763 = vmatpush1.bf16.msra.mxu0 0
        %764 = vmatprep.subr.bf16.mxu0 0
        %765 = vmatpush1.bf16.msra.mxu0 0
        %766 = vmatprep.subr.bf16.mxu0 0
        %767 = vmatpush1.bf16.msra.mxu0 0
        %768 = vmatprep.subr.bf16.mxu0 0
        %769 = vmatpush1.bf16.msra.mxu0 0
        %770 = vmatprep.subr.bf16.mxu0 0
        %771 = vmatpush1.bf16.msra.mxu0 0
        %772 = vmatprep.subr.bf16.mxu0 0
        %773 = vmatpush1.bf16.msra.mxu0 0
        %774 = vmatprep.subr.bf16.mxu0 0
        %775 = vmatpush1.bf16.msra.mxu0 0
        %776 = vmatprep.subr.bf16.mxu0 0
        %777 = vmatpush1.bf16.msra.mxu0 0
        %778 = vmatprep.mubr.bf16.mxu0 0
        %779 = vmatmul.mubr.bf16.gmra.mrb[0].mxu0 %v744
        %v780 = vpop.f32.mrb[0].mxu0
        %v781 = vadd.f32 %v704, %v780
        %v782 = vpop.f32.mrb[0].mxu0
        %v783 = vpop.f32.mrb[0].mxu0
        %v784 = vpop.f32.mrb[0].mxu0
        %785 = vdwg.mxu0
        %v786 = vmax.f32 %v781, 0.0
        %v787 = vpack.c.bf16 %v786, %v786
        %v788 = vld [vmem:[%s7] sm:$0xf]
        %v789 = vld [vmem:[%s7 + $0x4] sm:$0xf]
        %v790 = vld [vmem:[%s7 + $0x8] sm:$0xf]
        %v791 = vld [vmem:[%s7 + $0xc] sm:$0xf]
        %v792 = vld [vmem:[%s7 + $0x10] sm:$0xf]
        %v793 = vld [vmem:[%s7 + $0x14] sm:$0xf]
        %v794 = vld [vmem:[%s7 + $0x18] sm:$0xf]
        %v795 = vld [vmem:[%s7 + $0x1c] sm:$0xf]
        %v796 = vld [vmem:[%s7 + $0x20] sm:$0xf]
        %v797 = vld [vmem:[%s7 + $0x24] sm:$0xf]
        %v798 = vld [vmem:[%s7 + $0x28] sm:$0xf]
        %v799 = vld [vmem:[%s7 + $0x2c] sm:$0xf]
        %v800 = vld [vmem:[%s8] sm:$0x1]
        %v802 = vlaneseq
        %v803 = vshrl.u32 %v802, 7
        %v804 = vsub.s32 0, %v803
        %v805 = vrot.slane %v800, %v804
        %v819 = vunpack.c.l.b16 %v788
        %v820 = vunpack.c.l.b16 %v789
        %v821 = vunpack.c.l.b16 %v790
        %v822 = vunpack.c.l.b16 %v791
        %v823 = vunpack.c.l.b16 %v792
        %v824 = vunpack.c.l.b16 %v793
        %v825 = vunpack.c.l.b16 %v794
        %v826 = vunpack.c.l.b16 %v795
        %v827 = vunpack.c.l.b16 %v796
        %v828 = vunpack.c.l.b16 %v797
        %v829 = vunpack.c.l.b16 %v798
        %v830 = vunpack.c.l.b16 %v799
        %v831 = vpack.c.b16 %v820, %v819
        %v832 = vpack.c.b16 %v822, %v821
        %v833 = vpack.c.b16 %v824, %v823
        %v834 = vpack.c.b16 %v826, %v825
        %v835 = vpack.c.b16 %v828, %v827
        %v836 = vpack.c.b16 %v830, %v829
        %v844 = vsel %vm742, %v787, 0
        %846 = vmatprep.subr.bf16.mxu0 0
        %847 = vmatpush1.bf16.msra.mxu0 %v831
        %848 = vmatprep.subr.bf16.mxu0 0
        %849 = vmatpush1.bf16.msra.mxu0 %v832
        %850 = vmatprep.subr.bf16.mxu0 0
        %851 = vmatpush1.bf16.msra.mxu0 %v833
        %852 = vmatprep.subr.bf16.mxu0 0
        %853 = vmatpush1.bf16.msra.mxu0 %v834
        %854 = vmatprep.subr.bf16.mxu0 0
        %855 = vmatpush1.bf16.msra.mxu0 %v835
        %856 = vmatprep.subr.bf16.mxu0 0
        %857 = vmatpush1.bf16.msra.mxu0 %v836
        %858 = vmatprep.subr.bf16.mxu0 0
        %859 = vmatpush1.bf16.msra.mxu0 0
        %860 = vmatprep.subr.bf16.mxu0 0
        %861 = vmatpush1.bf16.msra.mxu0 0
        %862 = vmatprep.subr.bf16.mxu0 0
        %863 = vmatpush1.bf16.msra.mxu0 0
        %864 = vmatprep.subr.bf16.mxu0 0
        %865 = vmatpush1.bf16.msra.mxu0 0
        %866 = vmatprep.subr.bf16.mxu0 0
        %867 = vmatpush1.bf16.msra.mxu0 0
        %868 = vmatprep.subr.bf16.mxu0 0
        %869 = vmatpush1.bf16.msra.mxu0 0
        %870 = vmatprep.subr.bf16.mxu0 0
        %871 = vmatpush1.bf16.msra.mxu0 0
        %872 = vmatprep.subr.bf16.mxu0 0
        %873 = vmatpush1.bf16.msra.mxu0 0
        %874 = vmatprep.subr.bf16.mxu0 0
        %875 = vmatpush1.bf16.msra.mxu0 0
        %876 = vmatprep.subr.bf16.mxu0 0
        %877 = vmatpush1.bf16.msra.mxu0 0
        %878 = vmatprep.mubr.bf16.mxu0 0
        %879 = vmatmul.mubr.bf16.gmra.mrb[0].mxu0 %v844
        %v880 = vpop.f32.mrb[0].mxu0
        %v881 = vadd.f32 %v805, %v880
        %v882 = vpop.f32.mrb[0].mxu0
        %v883 = vpop.f32.mrb[0].mxu0
        %v884 = vpop.f32.mrb[0].mxu0
        %885 = vdwg.mxu0
        %v886 = vmax.f32 %v881, 0.0
        %v887 = vpack.c.bf16 %v886, %v886
        %v888 = vld [vmem:[%s9] sm:$0xf]
        %v889 = vld [vmem:[%s9 + $0x4] sm:$0xf]
        %v890 = vld [vmem:[%s9 + $0x8] sm:$0xf]
        %v891 = vld [vmem:[%s9 + $0xc] sm:$0xf]
        %v892 = vld [vmem:[%s9 + $0x10] sm:$0xf]
        %v893 = vld [vmem:[%s9 + $0x14] sm:$0xf]
        %v894 = vld [vmem:[%s9 + $0x18] sm:$0xf]
        %v895 = vld [vmem:[%s9 + $0x1c] sm:$0xf]
        %v896 = vld [vmem:[%s10] sm:$0x1]
        %v898 = vlaneseq
        %v899 = vshrl.u32 %v898, 7
        %v900 = vsub.s32 0, %v899
        %v901 = vrot.slane %v896, %v900
        %v911 = vunpack.c.l.b16 %v888
        %v912 = vunpack.c.l.b16 %v889
        %v913 = vunpack.c.l.b16 %v890
        %v914 = vunpack.c.l.b16 %v891
        %v915 = vunpack.c.l.b16 %v892
        %v916 = vunpack.c.l.b16 %v893
        %v917 = vunpack.c.l.b16 %v894
        %v918 = vunpack.c.l.b16 %v895
        %v919 = vpack.c.b16 %v912, %v911
        %v920 = vpack.c.b16 %v914, %v913
        %v921 = vpack.c.b16 %v916, %v915
        %v922 = vpack.c.b16 %v918, %v917
        %v928 = vsel %vm641, %v887, 0
        %930 = vmatprep.subr.bf16.mxu0 0
        %931 = vmatpush1.bf16.msra.mxu0 %v919
        %932 = vmatprep.subr.bf16.mxu0 0
        %933 = vmatpush1.bf16.msra.mxu0 %v920
        %934 = vmatprep.subr.bf16.mxu0 0
        %935 = vmatpush1.bf16.msra.mxu0 %v921
        %936 = vmatprep.subr.bf16.mxu0 0
        %937 = vmatpush1.bf16.msra.mxu0 %v922
        %938 = vmatprep.subr.bf16.mxu0 0
        %939 = vmatpush1.bf16.msra.mxu0 0
        %940 = vmatprep.subr.bf16.mxu0 0
        %941 = vmatpush1.bf16.msra.mxu0 0
        %942 = vmatprep.subr.bf16.mxu0 0
        %943 = vmatpush1.bf16.msra.mxu0 0
        %944 = vmatprep.subr.bf16.mxu0 0
        %945 = vmatpush1.bf16.msra.mxu0 0
        %946 = vmatprep.subr.bf16.mxu0 0
        %947 = vmatpush1.bf16.msra.mxu0 0
        %948 = vmatprep.subr.bf16.mxu0 0
        %949 = vmatpush1.bf16.msra.mxu0 0
        %950 = vmatprep.subr.bf16.mxu0 0
        %951 = vmatpush1.bf16.msra.mxu0 0
        %952 = vmatprep.subr.bf16.mxu0 0
        %953 = vmatpush1.bf16.msra.mxu0 0
        %954 = vmatprep.subr.bf16.mxu0 0
        %955 = vmatpush1.bf16.msra.mxu0 0
        %956 = vmatprep.subr.bf16.mxu0 0
        %957 = vmatpush1.bf16.msra.mxu0 0
        %958 = vmatprep.subr.bf16.mxu0 0
        %959 = vmatpush1.bf16.msra.mxu0 0
        %960 = vmatprep.subr.bf16.mxu0 0
        %961 = vmatpush1.bf16.msra.mxu0 0
        %962 = vmatprep.mubr.bf16.mxu0 0
        %963 = vmatmul.mubr.bf16.gmra.mrb[0].mxu0 %v928
        %v964 = vpop.f32.mrb[0].mxu0
        %v965 = vadd.f32 %v901, %v964
        %v966 = vpop.f32.mrb[0].mxu0
        %v967 = vpop.f32.mrb[0].mxu0
        %v968 = vpop.f32.mrb[0].mxu0
        %969 = vdwg.mxu0
        %v970 = vmax.f32 %v965, 0.0
        %971 = vst.msk [vmem:[%s515] sm:$0xff] %vm556, %v970
        %v972 = vpack.c.bf16 %v970, %v970
        %v973 = vld [vmem:[%s11] sm:$0xff]
        %v974 = vld [vmem:[%s11 + $0x8] sm:$0xff]
        %v975 = vld [vmem:[%s11 + $0x10] sm:$0xff]
        %v976 = vld [vmem:[%s11 + $0x18] sm:$0xff]
        %v977 = vld [vmem:[%s11 + $0x20] sm:$0xff]
        %v978 = vld [vmem:[%s11 + $0x28] sm:$0xff]
        %v979 = vld [vmem:[%s11 + $0x30] sm:$0xff]
        %v980 = vld [vmem:[%s11 + $0x38] sm:$0xff]
        %v981 = vld [vmem:[%s11 + $0x40] sm:$0xff]
        %v982 = vld [vmem:[%s11 + $0x48] sm:$0xff]
        %v983 = vld [vmem:[%s11 + $0x50] sm:$0xff]
        %v984 = vld [vmem:[%s11 + $0x58] sm:$0xff]
        %v985 = vld [vmem:[%s11 + $0x60] sm:$0xff]
        %v986 = vld [vmem:[%s11 + $0x68] sm:$0xff]
        %v987 = vld [vmem:[%s11 + $0x70] sm:$0xff]
        %v988 = vld [vmem:[%s11 + $0x78] sm:$0xff]
        %v989 = vld [vmem:[%s11 + $0x80] sm:$0xff]
        %v990 = vld [vmem:[%s11 + $0x88] sm:$0xff]
        %v991 = vld [vmem:[%s11 + $0x90] sm:$0xff]
        %v992 = vld [vmem:[%s11 + $0x98] sm:$0xff]
        %v993 = vld [vmem:[%s11 + $0xa0] sm:$0xff]
        %v994 = vld [vmem:[%s11 + $0xa8] sm:$0xff]
        %v995 = vld [vmem:[%s11 + $0xb0] sm:$0xff]
        %v996 = vld [vmem:[%s11 + $0xb8] sm:$0xff]
        %v997 = vld [vmem:[%s11 + $0xc0] sm:$0xff]
        %v998 = vld [vmem:[%s11 + $0xc8] sm:$0xff]
        %v999 = vld [vmem:[%s11 + $0xd0] sm:$0xff]
        %v1000 = vld [vmem:[%s11 + $0xd8] sm:$0xff]
        %v1001 = vld [vmem:[%s11 + $0xe0] sm:$0xff]
        %v1002 = vld [vmem:[%s11 + $0xe8] sm:$0xff]
        %v1003 = vld [vmem:[%s11 + $0xf0] sm:$0xff]
        %v1004 = vld [vmem:[%s11 + $0xf8] sm:$0xff]
        %v1037 = vunpack.c.l.b16 %v973
        %v1038 = vunpack.c.h.b16 %v973
        %v1039 = vunpack.c.l.b16 %v974
        %v1040 = vunpack.c.h.b16 %v974
        %v1041 = vunpack.c.l.b16 %v975
        %v1042 = vunpack.c.h.b16 %v975
        %v1043 = vunpack.c.l.b16 %v976
        %v1044 = vunpack.c.h.b16 %v976
        %v1045 = vunpack.c.l.b16 %v977
        %v1046 = vunpack.c.h.b16 %v977
        %v1047 = vunpack.c.l.b16 %v978
        %v1048 = vunpack.c.h.b16 %v978
        %v1049 = vunpack.c.l.b16 %v979
        %v1050 = vunpack.c.h.b16 %v979
        %v1051 = vunpack.c.l.b16 %v980
        %v1052 = vunpack.c.h.b16 %v980
        %v1053 = vunpack.c.l.b16 %v981
        %v1054 = vunpack.c.h.b16 %v981
        %v1055 = vunpack.c.l.b16 %v982
        %v1056 = vunpack.c.h.b16 %v982
        %v1057 = vunpack.c.l.b16 %v983
        %v1058 = vunpack.c.h.b16 %v983
        %v1059 = vunpack.c.l.b16 %v984
        %v1060 = vunpack.c.h.b16 %v984
        %v1061 = vunpack.c.l.b16 %v985
        %v1062 = vunpack.c.h.b16 %v985
        %v1063 = vunpack.c.l.b16 %v986
        %v1064 = vunpack.c.h.b16 %v986
        %v1065 = vunpack.c.l.b16 %v987
        %v1066 = vunpack.c.h.b16 %v987
        %v1067 = vunpack.c.l.b16 %v988
        %v1068 = vunpack.c.h.b16 %v988
        %v1069 = vunpack.c.l.b16 %v989
        %v1070 = vunpack.c.h.b16 %v989
        %v1071 = vunpack.c.l.b16 %v990
        %v1072 = vunpack.c.h.b16 %v990
        %v1073 = vunpack.c.l.b16 %v991
        %v1074 = vunpack.c.h.b16 %v991
        %v1075 = vunpack.c.l.b16 %v992
        %v1076 = vunpack.c.h.b16 %v992
        %v1077 = vunpack.c.l.b16 %v993
        %v1078 = vunpack.c.h.b16 %v993
        %v1079 = vunpack.c.l.b16 %v994
        %v1080 = vunpack.c.h.b16 %v994
        %v1081 = vunpack.c.l.b16 %v995
        %v1082 = vunpack.c.h.b16 %v995
        %v1083 = vunpack.c.l.b16 %v996
        %v1084 = vunpack.c.h.b16 %v996
        %v1085 = vunpack.c.l.b16 %v997
        %v1086 = vunpack.c.h.b16 %v997
        %v1087 = vunpack.c.l.b16 %v998
        %v1088 = vunpack.c.h.b16 %v998
        %v1089 = vunpack.c.l.b16 %v999
        %v1090 = vunpack.c.h.b16 %v999
        %v1091 = vunpack.c.l.b16 %v1000
        %v1092 = vunpack.c.h.b16 %v1000
        %v1093 = vunpack.c.l.b16 %v1001
        %v1094 = vunpack.c.h.b16 %v1001
        %v1095 = vunpack.c.l.b16 %v1002
        %v1096 = vunpack.c.h.b16 %v1002
        %v1097 = vunpack.c.l.b16 %v1003
        %v1098 = vunpack.c.h.b16 %v1003
        %v1099 = vunpack.c.l.b16 %v1004
        %v1100 = vunpack.c.h.b16 %v1004
        %v1101 = vpack.c.b16 %v1053, %v1037
        %v1102 = vpack.c.b16 %v1054, %v1038
        %v1103 = vpack.c.b16 %v1055, %v1039
        %v1104 = vpack.c.b16 %v1056, %v1040
        %v1105 = vpack.c.b16 %v1057, %v1041
        %v1106 = vpack.c.b16 %v1058, %v1042
        %v1107 = vpack.c.b16 %v1059, %v1043
        %v1108 = vpack.c.b16 %v1060, %v1044
        %v1109 = vpack.c.b16 %v1061, %v1045
        %v1110 = vpack.c.b16 %v1062, %v1046
        %v1111 = vpack.c.b16 %v1063, %v1047
        %v1112 = vpack.c.b16 %v1064, %v1048
        %v1113 = vpack.c.b16 %v1065, %v1049
        %v1114 = vpack.c.b16 %v1066, %v1050
        %v1115 = vpack.c.b16 %v1067, %v1051
        %v1116 = vpack.c.b16 %v1068, %v1052
        %v1117 = vpack.c.b16 %v1085, %v1069
        %v1118 = vpack.c.b16 %v1086, %v1070
        %v1119 = vpack.c.b16 %v1087, %v1071
        %v1120 = vpack.c.b16 %v1088, %v1072
        %v1121 = vpack.c.b16 %v1089, %v1073
        %v1122 = vpack.c.b16 %v1090, %v1074
        %v1123 = vpack.c.b16 %v1091, %v1075
        %v1124 = vpack.c.b16 %v1092, %v1076
        %v1125 = vpack.c.b16 %v1093, %v1077
        %v1126 = vpack.c.b16 %v1094, %v1078
        %v1127 = vpack.c.b16 %v1095, %v1079
        %v1128 = vpack.c.b16 %v1096, %v1080
        %v1129 = vpack.c.b16 %v1097, %v1081
        %v1130 = vpack.c.b16 %v1098, %v1082
        %v1131 = vpack.c.b16 %v1099, %v1083
        %v1132 = vpack.c.b16 %v1100, %v1084
        %v1166 = vsel %vm556, %v972, 0
        %1168 = vmatprep.subr.bf16.mxu0 %v1102
        %1169 = vmatpush1.bf16.msra.mxu0 %v1101
        %1170 = vmatprep.subr.bf16.mxu0 %v1118
        %1171 = vmatpush1.bf16.msra.mxu0 %v1117
        %1172 = vmatprep.subr.bf16.mxu0 0
        %1173 = vmatpush1.bf16.msra.mxu0 0
        %1174 = vmatprep.subr.bf16.mxu0 0
        %1175 = vmatpush1.bf16.msra.mxu0 0
        %1176 = vmatprep.subr.bf16.mxu0 0
        %1177 = vmatpush1.bf16.msra.mxu0 0
        %1178 = vmatprep.subr.bf16.mxu0 0
        %1179 = vmatpush1.bf16.msra.mxu0 0
        %1180 = vmatprep.subr.bf16.mxu0 0
        %1181 = vmatpush1.bf16.msra.mxu0 0
        %1182 = vmatprep.subr.bf16.mxu0 0
        %1183 = vmatpush1.bf16.msra.mxu0 0
        %1184 = vmatprep.subr.bf16.mxu0 0
        %1185 = vmatpush1.bf16.msra.mxu0 0
        %1186 = vmatprep.subr.bf16.mxu0 0
        %1187 = vmatpush1.bf16.msra.mxu0 0
        %1188 = vmatprep.subr.bf16.mxu0 0
        %1189 = vmatpush1.bf16.msra.mxu0 0
        %1190 = vmatprep.subr.bf16.mxu0 0
        %1191 = vmatpush1.bf16.msra.mxu0 0
        %1192 = vmatprep.subr.bf16.mxu0 0
        %1193 = vmatpush1.bf16.msra.mxu0 0
        %1194 = vmatprep.subr.bf16.mxu0 0
        %1195 = vmatpush1.bf16.msra.mxu0 0
        %1196 = vmatprep.subr.bf16.mxu0 0
        %1197 = vmatpush1.bf16.msra.mxu0 0
        %1198 = vmatprep.subr.bf16.mxu0 0
        %1199 = vmatpush1.bf16.msra.mxu0 0
        %1200 = vmatprep.mubr.bf16.mxu0 0
        %1201 = vmatmul.mubr.bf16.gmra.mrb[0].mxu0 %v1166
        %v1202 = vpop.f32.mrb[0].mxu0
        %v1203 = vadd.f32 0.0, %v1202
        %v1204 = vpop.f32.mrb[0].mxu0
        %v1205 = vadd.f32 0.0, %v1204
        %v1206 = vpop.f32.mrb[0].mxu0
        %v1207 = vpop.f32.mrb[0].mxu0
        %1208 = vdwg.mxu0
        %1209 = vmatprep.subr.bf16.mxu0 %v1104
        %1210 = vmatpush1.bf16.msra.mxu0 %v1103
        %1211 = vmatprep.subr.bf16.mxu0 %v1120
        %1212 = vmatpush1.bf16.msra.mxu0 %v1119
        %1213 = vmatprep.subr.bf16.mxu0 0
        %1214 = vmatpush1.bf16.msra.mxu0 0
        %1215 = vmatprep.subr.bf16.mxu0 0
        %1216 = vmatpush1.bf16.msra.mxu0 0
        %1217 = vmatprep.subr.bf16.mxu0 0
        %1218 = vmatpush1.bf16.msra.mxu0 0
        %1219 = vmatprep.subr.bf16.mxu0 0
        %1220 = vmatpush1.bf16.msra.mxu0 0
        %1221 = vmatprep.subr.bf16.mxu0 0
        %1222 = vmatpush1.bf16.msra.mxu0 0
        %1223 = vmatprep.subr.bf16.mxu0 0
        %1224 = vmatpush1.bf16.msra.mxu0 0
        %1225 = vmatprep.subr.bf16.mxu0 0
        %1226 = vmatpush1.bf16.msra.mxu0 0
        %1227 = vmatprep.subr.bf16.mxu0 0
        %1228 = vmatpush1.bf16.msra.mxu0 0
        %1229 = vmatprep.subr.bf16.mxu0 0
        %1230 = vmatpush1.bf16.msra.mxu0 0
        %1231 = vmatprep.subr.bf16.mxu0 0
        %1232 = vmatpush1.bf16.msra.mxu0 0
        %1233 = vmatprep.subr.bf16.mxu0 0
        %1234 = vmatpush1.bf16.msra.mxu0 0
        %1235 = vmatprep.subr.bf16.mxu0 0
        %1236 = vmatpush1.bf16.msra.mxu0 0
        %1237 = vmatprep.subr.bf16.mxu0 0
        %1238 = vmatpush1.bf16.msra.mxu0 0
        %1239 = vmatprep.subr.bf16.mxu0 0
        %1240 = vmatpush1.bf16.msra.mxu0 0
        %1241 = vmatprep.mubr.bf16.mxu0 0
        %1242 = vmatmul.mubr.bf16.gmra.mrb[0].mxu0 %v1166
        %v1243 = vpop.f32.mrb[0].mxu0
        %v1244 = vadd.f32 0.0, %v1243
        %v1245 = vpop.f32.mrb[0].mxu0
        %v1246 = vadd.f32 0.0, %v1245
        %v1247 = vpop.f32.mrb[0].mxu0
        %v1248 = vpop.f32.mrb[0].mxu0
        %1249 = vdwg.mxu0
        %1250 = vmatprep.subr.bf16.mxu0 %v1106
        %1251 = vmatpush1.bf16.msra.mxu0 %v1105
        %1252 = vmatprep.subr.bf16.mxu0 %v1122
        %1253 = vmatpush1.bf16.msra.mxu0 %v1121
        %1254 = vmatprep.subr.bf16.mxu0 0
        %1255 = vmatpush1.bf16.msra.mxu0 0
        %1256 = vmatprep.subr.bf16.mxu0 0
        %1257 = vmatpush1.bf16.msra.mxu0 0
        %1258 = vmatprep.subr.bf16.mxu0 0
        %1259 = vmatpush1.bf16.msra.mxu0 0
        %1260 = vmatprep.subr.bf16.mxu0 0
        %1261 = vmatpush1.bf16.msra.mxu0 0
        %1262 = vmatprep.subr.bf16.mxu0 0
        %1263 = vmatpush1.bf16.msra.mxu0 0
        %1264 = vmatprep.subr.bf16.mxu0 0
        %1265 = vmatpush1.bf16.msra.mxu0 0
        %1266 = vmatprep.subr.bf16.mxu0 0
        %1267 = vmatpush1.bf16.msra.mxu0 0
        %1268 = vmatprep.subr.bf16.mxu0 0
        %1269 = vmatpush1.bf16.msra.mxu0 0
        %1270 = vmatprep.subr.bf16.mxu0 0
        %1271 = vmatpush1.bf16.msra.mxu0 0
        %1272 = vmatprep.subr.bf16.mxu0 0
        %1273 = vmatpush1.bf16.msra.mxu0 0
        %1274 = vmatprep.subr.bf16.mxu0 0
        %1275 = vmatpush1.bf16.msra.mxu0 0
        %1276 = vmatprep.subr.bf16.mxu0 0
        %1277 = vmatpush1.bf16.msra.mxu0 0
        %1278 = vmatprep.subr.bf16.mxu0 0
        %1279 = vmatpush1.bf16.msra.mxu0 0
        %1280 = vmatprep.subr.bf16.mxu0 0
        %1281 = vmatpush1.bf16.msra.mxu0 0
        %1282 = vmatprep.mubr.bf16.mxu0 0
        %1283 = vmatmul.mubr.bf16.gmra.mrb[0].mxu0 %v1166
        %v1284 = vpop.f32.mrb[0].mxu0
        %v1285 = vadd.f32 0.0, %v1284
        %v1286 = vpop.f32.mrb[0].mxu0
        %v1287 = vadd.f32 0.0, %v1286
        %v1288 = vpop.f32.mrb[0].mxu0
        %v1289 = vpop.f32.mrb[0].mxu0
        %1290 = vdwg.mxu0
        %1291 = vmatprep.subr.bf16.mxu0 %v1108
        %1292 = vmatpush1.bf16.msra.mxu0 %v1107
        %1293 = vmatprep.subr.bf16.mxu0 %v1124
        %1294 = vmatpush1.bf16.msra.mxu0 %v1123
        %1295 = vmatprep.subr.bf16.mxu0 0
        %1296 = vmatpush1.bf16.msra.mxu0 0
        %1297 = vmatprep.subr.bf16.mxu0 0
        %1298 = vmatpush1.bf16.msra.mxu0 0
        %1299 = vmatprep.subr.bf16.mxu0 0
        %1300 = vmatpush1.bf16.msra.mxu0 0
        %1301 = vmatprep.subr.bf16.mxu0 0
        %1302 = vmatpush1.bf16.msra.mxu0 0
        %1303 = vmatprep.subr.bf16.mxu0 0
        %1304 = vmatpush1.bf16.msra.mxu0 0
        %1305 = vmatprep.subr.bf16.mxu0 0
        %1306 = vmatpush1.bf16.msra.mxu0 0
        %1307 = vmatprep.subr.bf16.mxu0 0
        %1308 = vmatpush1.bf16.msra.mxu0 0
        %1309 = vmatprep.subr.bf16.mxu0 0
        %1310 = vmatpush1.bf16.msra.mxu0 0
        %1311 = vmatprep.subr.bf16.mxu0 0
        %1312 = vmatpush1.bf16.msra.mxu0 0
        %1313 = vmatprep.subr.bf16.mxu0 0
        %1314 = vmatpush1.bf16.msra.mxu0 0
        %1315 = vmatprep.subr.bf16.mxu0 0
        %1316 = vmatpush1.bf16.msra.mxu0 0
        %1317 = vmatprep.subr.bf16.mxu0 0
        %1318 = vmatpush1.bf16.msra.mxu0 0
        %1319 = vmatprep.subr.bf16.mxu0 0
        %1320 = vmatpush1.bf16.msra.mxu0 0
        %1321 = vmatprep.subr.bf16.mxu0 0
        %1322 = vmatpush1.bf16.msra.mxu0 0
        %1323 = vmatprep.mubr.bf16.mxu0 0
        %1324 = vmatmul.mubr.bf16.gmra.mrb[0].mxu0 %v1166
        %v1325 = vpop.f32.mrb[0].mxu0
        %v1326 = vadd.f32 0.0, %v1325
        %v1327 = vpop.f32.mrb[0].mxu0
        %v1328 = vadd.f32 0.0, %v1327
        %v1329 = vpop.f32.mrb[0].mxu0
        %v1330 = vpop.f32.mrb[0].mxu0
        %1331 = vdwg.mxu0
        %1332 = vmatprep.subr.bf16.mxu0 %v1110
        %1333 = vmatpush1.bf16.msra.mxu0 %v1109
        %1334 = vmatprep.subr.bf16.mxu0 %v1126
        %1335 = vmatpush1.bf16.msra.mxu0 %v1125
        %1336 = vmatprep.subr.bf16.mxu0 0
        %1337 = vmatpush1.bf16.msra.mxu0 0
        %1338 = vmatprep.subr.bf16.mxu0 0
        %1339 = vmatpush1.bf16.msra.mxu0 0
        %1340 = vmatprep.subr.bf16.mxu0 0
        %1341 = vmatpush1.bf16.msra.mxu0 0
        %1342 = vmatprep.subr.bf16.mxu0 0
        %1343 = vmatpush1.bf16.msra.mxu0 0
        %1344 = vmatprep.subr.bf16.mxu0 0
        %1345 = vmatpush1.bf16.msra.mxu0 0
        %1346 = vmatprep.subr.bf16.mxu0 0
        %1347 = vmatpush1.bf16.msra.mxu0 0
        %1348 = vmatprep.subr.bf16.mxu0 0
        %1349 = vmatpush1.bf16.msra.mxu0 0
        %1350 = vmatprep.subr.bf16.mxu0 0
        %1351 = vmatpush1.bf16.msra.mxu0 0
        %1352 = vmatprep.subr.bf16.mxu0 0
        %1353 = vmatpush1.bf16.msra.mxu0 0
        %1354 = vmatprep.subr.bf16.mxu0 0
        %1355 = vmatpush1.bf16.msra.mxu0 0
        %1356 = vmatprep.subr.bf16.mxu0 0
        %1357 = vmatpush1.bf16.msra.mxu0 0
        %1358 = vmatprep.subr.bf16.mxu0 0
        %1359 = vmatpush1.bf16.msra.mxu0 0
        %1360 = vmatprep.subr.bf16.mxu0 0
        %1361 = vmatpush1.bf16.msra.mxu0 0
        %1362 = vmatprep.subr.bf16.mxu0 0
        %1363 = vmatpush1.bf16.msra.mxu0 0
        %1364 = vmatprep.mubr.bf16.mxu0 0
        %1365 = vmatmul.mubr.bf16.gmra.mrb[0].mxu0 %v1166
        %v1366 = vpop.f32.mrb[0].mxu0
        %v1367 = vadd.f32 0.0, %v1366
        %v1368 = vpop.f32.mrb[0].mxu0
        %v1369 = vadd.f32 0.0, %v1368
        %v1370 = vpop.f32.mrb[0].mxu0
        %v1371 = vpop.f32.mrb[0].mxu0
        %1372 = vdwg.mxu0
        %1373 = vmatprep.subr.bf16.mxu0 %v1112
        %1374 = vmatpush1.bf16.msra.mxu0 %v1111
        %1375 = vmatprep.subr.bf16.mxu0 %v1128
        %1376 = vmatpush1.bf16.msra.mxu0 %v1127
        %1377 = vmatprep.subr.bf16.mxu0 0
        %1378 = vmatpush1.bf16.msra.mxu0 0
        %1379 = vmatprep.subr.bf16.mxu0 0
        %1380 = vmatpush1.bf16.msra.mxu0 0
        %1381 = vmatprep.subr.bf16.mxu0 0
        %1382 = vmatpush1.bf16.msra.mxu0 0
        %1383 = vmatprep.subr.bf16.mxu0 0
        %1384 = vmatpush1.bf16.msra.mxu0 0
        %1385 = vmatprep.subr.bf16.mxu0 0
        %1386 = vmatpush1.bf16.msra.mxu0 0
        %1387 = vmatprep.subr.bf16.mxu0 0
        %1388 = vmatpush1.bf16.msra.mxu0 0
        %1389 = vmatprep.subr.bf16.mxu0 0
        %1390 = vmatpush1.bf16.msra.mxu0 0
        %1391 = vmatprep.subr.bf16.mxu0 0
        %1392 = vmatpush1.bf16.msra.mxu0 0
        %1393 = vmatprep.subr.bf16.mxu0 0
        %1394 = vmatpush1.bf16.msra.mxu0 0
        %1395 = vmatprep.subr.bf16.mxu0 0
        %1396 = vmatpush1.bf16.msra.mxu0 0
        %1397 = vmatprep.subr.bf16.mxu0 0
        %1398 = vmatpush1.bf16.msra.mxu0 0
        %1399 = vmatprep.subr.bf16.mxu0 0
        %1400 = vmatpush1.bf16.msra.mxu0 0
        %1401 = vmatprep.subr.bf16.mxu0 0
        %1402 = vmatpush1.bf16.msra.mxu0 0
        %1403 = vmatprep.subr.bf16.mxu0 0
        %1404 = vmatpush1.bf16.msra.mxu0 0
        %1405 = vmatprep.mubr.bf16.mxu0 0
        %1406 = vmatmul.mubr.bf16.gmra.mrb[0].mxu0 %v1166
        %v1407 = vpop.f32.mrb[0].mxu0
        %v1408 = vadd.f32 0.0, %v1407
        %v1409 = vpop.f32.mrb[0].mxu0
        %v1410 = vadd.f32 0.0, %v1409
        %v1411 = vpop.f32.mrb[0].mxu0
        %v1412 = vpop.f32.mrb[0].mxu0
        %1413 = vdwg.mxu0
        %1414 = vmatprep.subr.bf16.mxu0 %v1114
        %1415 = vmatpush1.bf16.msra.mxu0 %v1113
        %1416 = vmatprep.subr.bf16.mxu0 %v1130
        %1417 = vmatpush1.bf16.msra.mxu0 %v1129
        %1418 = vmatprep.subr.bf16.mxu0 0
        %1419 = vmatpush1.bf16.msra.mxu0 0
        %1420 = vmatprep.subr.bf16.mxu0 0
        %1421 = vmatpush1.bf16.msra.mxu0 0
        %1422 = vmatprep.subr.bf16.mxu0 0
        %1423 = vmatpush1.bf16.msra.mxu0 0
        %1424 = vmatprep.subr.bf16.mxu0 0
        %1425 = vmatpush1.bf16.msra.mxu0 0
        %1426 = vmatprep.subr.bf16.mxu0 0
        %1427 = vmatpush1.bf16.msra.mxu0 0
        %1428 = vmatprep.subr.bf16.mxu0 0
        %1429 = vmatpush1.bf16.msra.mxu0 0
        %1430 = vmatprep.subr.bf16.mxu0 0
        %1431 = vmatpush1.bf16.msra.mxu0 0
        %1432 = vmatprep.subr.bf16.mxu0 0
        %1433 = vmatpush1.bf16.msra.mxu0 0
        %1434 = vmatprep.subr.bf16.mxu0 0
        %1435 = vmatpush1.bf16.msra.mxu0 0
        %1436 = vmatprep.subr.bf16.mxu0 0
        %1437 = vmatpush1.bf16.msra.mxu0 0
        %1438 = vmatprep.subr.bf16.mxu0 0
        %1439 = vmatpush1.bf16.msra.mxu0 0
        %1440 = vmatprep.subr.bf16.mxu0 0
        %1441 = vmatpush1.bf16.msra.mxu0 0
        %1442 = vmatprep.subr.bf16.mxu0 0
        %1443 = vmatpush1.bf16.msra.mxu0 0
        %1444 = vmatprep.subr.bf16.mxu0 0
        %1445 = vmatpush1.bf16.msra.mxu0 0
        %1446 = vmatprep.mubr.bf16.mxu0 0
        %1447 = vmatmul.mubr.bf16.gmra.mrb[0].mxu0 %v1166
        %v1448 = vpop.f32.mrb[0].mxu0
        %v1449 = vadd.f32 0.0, %v1448
        %v1450 = vpop.f32.mrb[0].mxu0
        %v1451 = vadd.f32 0.0, %v1450
        %v1452 = vpop.f32.mrb[0].mxu0
        %v1453 = vpop.f32.mrb[0].mxu0
        %1454 = vdwg.mxu0
        %1455 = vmatprep.subr.bf16.mxu0 %v1116
        %1456 = vmatpush1.bf16.msra.mxu0 %v1115
        %1457 = vmatprep.subr.bf16.mxu0 %v1132
        %1458 = vmatpush1.bf16.msra.mxu0 %v1131
        %1459 = vmatprep.subr.bf16.mxu0 0
        %1460 = vmatpush1.bf16.msra.mxu0 0
        %1461 = vmatprep.subr.bf16.mxu0 0
        %1462 = vmatpush1.bf16.msra.mxu0 0
        %1463 = vmatprep.subr.bf16.mxu0 0
        %1464 = vmatpush1.bf16.msra.mxu0 0
        %1465 = vmatprep.subr.bf16.mxu0 0
        %1466 = vmatpush1.bf16.msra.mxu0 0
        %1467 = vmatprep.subr.bf16.mxu0 0
        %1468 = vmatpush1.bf16.msra.mxu0 0
        %1469 = vmatprep.subr.bf16.mxu0 0
        %1470 = vmatpush1.bf16.msra.mxu0 0
        %1471 = vmatprep.subr.bf16.mxu0 0
        %1472 = vmatpush1.bf16.msra.mxu0 0
        %1473 = vmatprep.subr.bf16.mxu0 0
        %1474 = vmatpush1.bf16.msra.mxu0 0
        %1475 = vmatprep.subr.bf16.mxu0 0
        %1476 = vmatpush1.bf16.msra.mxu0 0
        %1477 = vmatprep.subr.bf16.mxu0 0
        %1478 = vmatpush1.bf16.msra.mxu0 0
        %1479 = vmatprep.subr.bf16.mxu0 0
        %1480 = vmatpush1.bf16.msra.mxu0 0
        %1481 = vmatprep.subr.bf16.mxu0 0
        %1482 = vmatpush1.bf16.msra.mxu0 0
        %1483 = vmatprep.subr.bf16.mxu0 0
        %1484 = vmatpush1.bf16.msra.mxu0 0
        %1485 = vmatprep.subr.bf16.mxu0 0
        %1486 = vmatpush1.bf16.msra.mxu0 0
        %1487 = vmatprep.mubr.bf16.mxu0 0
        %1488 = vmatmul.mubr.bf16.gmra.mrb[0].mxu0 %v1166
        %v1489 = vpop.f32.mrb[0].mxu0
        %v1490 = vadd.f32 0.0, %v1489
        %v1491 = vpop.f32.mrb[0].mxu0
        %v1492 = vadd.f32 0.0, %v1491
        %v1493 = vpop.f32.mrb[0].mxu0
        %v1494 = vpop.f32.mrb[0].mxu0
        %1495 = vdwg.mxu0
        %v1496 = vlaneseq
        %v1497 = vshrl.u32 %v1496, 7
        %v1498 = vsub.s32 0, %v1497
        %v1499 = vrot.slane %v1203, %v1498
        %v1500 = vsub.f32 %v1203, %v1499
        %v1501 = vand.u32 2147483647, %v1500
        %v1502 = vlaneseq
        %v1503 = vshrl.u32 %v1502, 7
        %v1504 = vsub.s32 0, %v1503
        %v1505 = vrot.slane %v1205, %v1504
        %v1506 = vsub.f32 %v1205, %v1505
        %v1507 = vand.u32 2147483647, %v1506
        %v1508 = vadd.f32 %v1501, %v1507
        %v1509 = vlaneseq
        %v1510 = vshrl.u32 %v1509, 7
        %v1511 = vsub.s32 0, %v1510
        %v1512 = vrot.slane %v1244, %v1511
        %v1513 = vsub.f32 %v1244, %v1512
        %v1514 = vand.u32 2147483647, %v1513
        %v1515 = vadd.f32 %v1508, %v1514
        %v1516 = vlaneseq
        %v1517 = vshrl.u32 %v1516, 7
        %v1518 = vsub.s32 0, %v1517
        %v1519 = vrot.slane %v1246, %v1518
        %v1520 = vsub.f32 %v1246, %v1519
        %v1521 = vand.u32 2147483647, %v1520
        %v1522 = vadd.f32 %v1515, %v1521
        %v1523 = vlaneseq
        %v1524 = vshrl.u32 %v1523, 7
        %v1525 = vsub.s32 0, %v1524
        %v1526 = vrot.slane %v1285, %v1525
        %v1527 = vsub.f32 %v1285, %v1526
        %v1528 = vand.u32 2147483647, %v1527
        %v1529 = vadd.f32 %v1522, %v1528
        %v1530 = vlaneseq
        %v1531 = vshrl.u32 %v1530, 7
        %v1532 = vsub.s32 0, %v1531
        %v1533 = vrot.slane %v1287, %v1532
        %v1534 = vsub.f32 %v1287, %v1533
        %v1535 = vand.u32 2147483647, %v1534
        %v1536 = vadd.f32 %v1529, %v1535
        %v1537 = vlaneseq
        %v1538 = vshrl.u32 %v1537, 7
        %v1539 = vsub.s32 0, %v1538
        %v1540 = vrot.slane %v1326, %v1539
        %v1541 = vsub.f32 %v1326, %v1540
        %v1542 = vand.u32 2147483647, %v1541
        %v1543 = vadd.f32 %v1536, %v1542
        %v1544 = vlaneseq
        %v1545 = vshrl.u32 %v1544, 7
        %v1546 = vsub.s32 0, %v1545
        %v1547 = vrot.slane %v1328, %v1546
        %v1548 = vsub.f32 %v1328, %v1547
        %v1549 = vand.u32 2147483647, %v1548
        %v1550 = vadd.f32 %v1543, %v1549
        %v1551 = vlaneseq
        %v1552 = vshrl.u32 %v1551, 7
        %v1553 = vsub.s32 0, %v1552
        %v1554 = vrot.slane %v1367, %v1553
        %v1555 = vsub.f32 %v1367, %v1554
        %v1556 = vand.u32 2147483647, %v1555
        %v1557 = vadd.f32 %v1550, %v1556
        %v1558 = vlaneseq
        %v1559 = vshrl.u32 %v1558, 7
        %v1560 = vsub.s32 0, %v1559
        %v1561 = vrot.slane %v1369, %v1560
        %v1562 = vsub.f32 %v1369, %v1561
        %v1563 = vand.u32 2147483647, %v1562
        %v1564 = vadd.f32 %v1557, %v1563
        %v1565 = vlaneseq
        %v1566 = vshrl.u32 %v1565, 7
        %v1567 = vsub.s32 0, %v1566
        %v1568 = vrot.slane %v1408, %v1567
        %v1569 = vsub.f32 %v1408, %v1568
        %v1570 = vand.u32 2147483647, %v1569
        %v1571 = vadd.f32 %v1564, %v1570
        %v1572 = vlaneseq
        %v1573 = vshrl.u32 %v1572, 7
        %v1574 = vsub.s32 0, %v1573
        %v1575 = vrot.slane %v1410, %v1574
        %v1576 = vsub.f32 %v1410, %v1575
        %v1577 = vand.u32 2147483647, %v1576
        %v1578 = vadd.f32 %v1571, %v1577
        %v1579 = vlaneseq
        %v1580 = vshrl.u32 %v1579, 7
        %v1581 = vsub.s32 0, %v1580
        %v1582 = vrot.slane %v1449, %v1581
        %v1583 = vsub.f32 %v1449, %v1582
        %v1584 = vand.u32 2147483647, %v1583
        %v1585 = vadd.f32 %v1578, %v1584
        %v1586 = vlaneseq
        %v1587 = vshrl.u32 %v1586, 7
        %v1588 = vsub.s32 0, %v1587
        %v1589 = vrot.slane %v1451, %v1588
        %v1590 = vsub.f32 %v1451, %v1589
        %v1591 = vand.u32 2147483647, %v1590
        %v1592 = vadd.f32 %v1585, %v1591
        %v1593 = vlaneseq
        %v1594 = vshrl.u32 %v1593, 7
        %v1595 = vsub.s32 0, %v1594
        %v1596 = vrot.slane %v1490, %v1595
        %v1597 = vsub.f32 %v1490, %v1596
        %v1598 = vand.u32 2147483647, %v1597
        %v1599 = vadd.f32 %v1592, %v1598
        %v1600 = vlaneseq
        %v1601 = vshrl.u32 %v1600, 7
        %v1602 = vsub.s32 0, %v1601
        %v1603 = vrot.slane %v1492, %v1602
        %v1604 = vsub.f32 %v1492, %v1603
        %v1605 = vand.u32 2147483647, %v1604
        %v1606 = vadd.f32 %v1599, %v1605
        %v1607 = vsub.f32 0.0, %v1606
        %v1608 = vmul.f32 %v1607, 1.442695
        %v1609 = vpow.pop %v1608
        %v1610 = vlaneseq
        %v1611 = vshrl.u32 %v1610, 7
        %v1612 = vsub.s32 1, %v1611
        %v1613 = vrot.slane %v1203, %v1612
        %v1614 = vsub.f32 %v1203, %v1613
        %v1615 = vand.u32 2147483647, %v1614
        %v1616 = vlaneseq
        %v1617 = vshrl.u32 %v1616, 7
        %v1618 = vsub.s32 1, %v1617
        %v1619 = vrot.slane %v1205, %v1618
        %v1620 = vsub.f32 %v1205, %v1619
        %v1621 = vand.u32 2147483647, %v1620
        %v1622 = vadd.f32 %v1615, %v1621
        %v1623 = vlaneseq
        %v1624 = vshrl.u32 %v1623, 7
        %v1625 = vsub.s32 1, %v1624
        %v1626 = vrot.slane %v1244, %v1625
        %v1627 = vsub.f32 %v1244, %v1626
        %v1628 = vand.u32 2147483647, %v1627
        %v1629 = vadd.f32 %v1622, %v1628
        %v1630 = vlaneseq
        %v1631 = vshrl.u32 %v1630, 7
        %v1632 = vsub.s32 1, %v1631
        %v1633 = vrot.slane %v1246, %v1632
        %v1634 = vsub.f32 %v1246, %v1633
        %v1635 = vand.u32 2147483647, %v1634
        %v1636 = vadd.f32 %v1629, %v1635
        %v1637 = vlaneseq
        %v1638 = vshrl.u32 %v1637, 7
        %v1639 = vsub.s32 1, %v1638
        %v1640 = vrot.slane %v1285, %v1639
        %v1641 = vsub.f32 %v1285, %v1640
        %v1642 = vand.u32 2147483647, %v1641
        %v1643 = vadd.f32 %v1636, %v1642
        %v1644 = vlaneseq
        %v1645 = vshrl.u32 %v1644, 7
        %v1646 = vsub.s32 1, %v1645
        %v1647 = vrot.slane %v1287, %v1646
        %v1648 = vsub.f32 %v1287, %v1647
        %v1649 = vand.u32 2147483647, %v1648
        %v1650 = vadd.f32 %v1643, %v1649
        %v1651 = vlaneseq
        %v1652 = vshrl.u32 %v1651, 7
        %v1653 = vsub.s32 1, %v1652
        %v1654 = vrot.slane %v1326, %v1653
        %v1655 = vsub.f32 %v1326, %v1654
        %v1656 = vand.u32 2147483647, %v1655
        %v1657 = vadd.f32 %v1650, %v1656
        %v1658 = vlaneseq
        %v1659 = vshrl.u32 %v1658, 7
        %v1660 = vsub.s32 1, %v1659
        %v1661 = vrot.slane %v1328, %v1660
        %v1662 = vsub.f32 %v1328, %v1661
        %v1663 = vand.u32 2147483647, %v1662
        %v1664 = vadd.f32 %v1657, %v1663
        %v1665 = vlaneseq
        %v1666 = vshrl.u32 %v1665, 7
        %v1667 = vsub.s32 1, %v1666
        %v1668 = vrot.slane %v1367, %v1667
        %v1669 = vsub.f32 %v1367, %v1668
        %v1670 = vand.u32 2147483647, %v1669
        %v1671 = vadd.f32 %v1664, %v1670
        %v1672 = vlaneseq
        %v1673 = vshrl.u32 %v1672, 7
        %v1674 = vsub.s32 1, %v1673
        %v1675 = vrot.slane %v1369, %v1674
        %v1676 = vsub.f32 %v1369, %v1675
        %v1677 = vand.u32 2147483647, %v1676
        %v1678 = vadd.f32 %v1671, %v1677
        %v1679 = vlaneseq
        %v1680 = vshrl.u32 %v1679, 7
        %v1681 = vsub.s32 1, %v1680
        %v1682 = vrot.slane %v1408, %v1681
        %v1683 = vsub.f32 %v1408, %v1682
        %v1684 = vand.u32 2147483647, %v1683
        %v1685 = vadd.f32 %v1678, %v1684
        %v1686 = vlaneseq
        %v1687 = vshrl.u32 %v1686, 7
        %v1688 = vsub.s32 1, %v1687
        %v1689 = vrot.slane %v1410, %v1688
        %v1690 = vsub.f32 %v1410, %v1689
        %v1691 = vand.u32 2147483647, %v1690
        %v1692 = vadd.f32 %v1685, %v1691
        %v1693 = vlaneseq
        %v1694 = vshrl.u32 %v1693, 7
        %v1695 = vsub.s32 1, %v1694
        %v1696 = vrot.slane %v1449, %v1695
        %v1697 = vsub.f32 %v1449, %v1696
        %v1698 = vand.u32 2147483647, %v1697
        %v1699 = vadd.f32 %v1692, %v1698
        %v1700 = vlaneseq
        %v1701 = vshrl.u32 %v1700, 7
        %v1702 = vsub.s32 1, %v1701
        %v1703 = vrot.slane %v1451, %v1702
        %v1704 = vsub.f32 %v1451, %v1703
        %v1705 = vand.u32 2147483647, %v1704
        %v1706 = vadd.f32 %v1699, %v1705
        %v1707 = vlaneseq
        %v1708 = vshrl.u32 %v1707, 7
        %v1709 = vsub.s32 1, %v1708
        %v1710 = vrot.slane %v1490, %v1709
        %v1711 = vsub.f32 %v1490, %v1710
        %v1712 = vand.u32 2147483647, %v1711
        %v1713 = vadd.f32 %v1706, %v1712
        %v1714 = vlaneseq
        %v1715 = vshrl.u32 %v1714, 7
        %v1716 = vsub.s32 1, %v1715
        %v1717 = vrot.slane %v1492, %v1716
        %v1718 = vsub.f32 %v1492, %v1717
        %v1719 = vand.u32 2147483647, %v1718
        %v1720 = vadd.f32 %v1713, %v1719
        %v1721 = vsub.f32 0.0, %v1720
        %v1722 = vmul.f32 %v1721, 1.442695
        %v1723 = vpow.pop %v1722
        %v1724 = vadd.f32 %v1609, %v1723
        %v1725 = vlaneseq
        %v1726 = vshrl.u32 %v1725, 7
        %v1727 = vsub.s32 2, %v1726
        %v1728 = vrot.slane %v1203, %v1727
        %v1729 = vsub.f32 %v1203, %v1728
        %v1730 = vand.u32 2147483647, %v1729
        %v1731 = vlaneseq
        %v1732 = vshrl.u32 %v1731, 7
        %v1733 = vsub.s32 2, %v1732
        %v1734 = vrot.slane %v1205, %v1733
        %v1735 = vsub.f32 %v1205, %v1734
        %v1736 = vand.u32 2147483647, %v1735
        %v1737 = vadd.f32 %v1730, %v1736
        %v1738 = vlaneseq
        %v1739 = vshrl.u32 %v1738, 7
        %v1740 = vsub.s32 2, %v1739
        %v1741 = vrot.slane %v1244, %v1740
        %v1742 = vsub.f32 %v1244, %v1741
        %v1743 = vand.u32 2147483647, %v1742
        %v1744 = vadd.f32 %v1737, %v1743
        %v1745 = vlaneseq
        %v1746 = vshrl.u32 %v1745, 7
        %v1747 = vsub.s32 2, %v1746
        %v1748 = vrot.slane %v1246, %v1747
        %v1749 = vsub.f32 %v1246, %v1748
        %v1750 = vand.u32 2147483647, %v1749
        %v1751 = vadd.f32 %v1744, %v1750
        %v1752 = vlaneseq
        %v1753 = vshrl.u32 %v1752, 7
        %v1754 = vsub.s32 2, %v1753
        %v1755 = vrot.slane %v1285, %v1754
        %v1756 = vsub.f32 %v1285, %v1755
        %v1757 = vand.u32 2147483647, %v1756
        %v1758 = vadd.f32 %v1751, %v1757
        %v1759 = vlaneseq
        %v1760 = vshrl.u32 %v1759, 7
        %v1761 = vsub.s32 2, %v1760
        %v1762 = vrot.slane %v1287, %v1761
        %v1763 = vsub.f32 %v1287, %v1762
        %v1764 = vand.u32 2147483647, %v1763
        %v1765 = vadd.f32 %v1758, %v1764
        %v1766 = vlaneseq
        %v1767 = vshrl.u32 %v1766, 7
        %v1768 = vsub.s32 2, %v1767
        %v1769 = vrot.slane %v1326, %v1768
        %v1770 = vsub.f32 %v1326, %v1769
        %v1771 = vand.u32 2147483647, %v1770
        %v1772 = vadd.f32 %v1765, %v1771
        %v1773 = vlaneseq
        %v1774 = vshrl.u32 %v1773, 7
        %v1775 = vsub.s32 2, %v1774
        %v1776 = vrot.slane %v1328, %v1775
        %v1777 = vsub.f32 %v1328, %v1776
        %v1778 = vand.u32 2147483647, %v1777
        %v1779 = vadd.f32 %v1772, %v1778
        %v1780 = vlaneseq
        %v1781 = vshrl.u32 %v1780, 7
        %v1782 = vsub.s32 2, %v1781
        %v1783 = vrot.slane %v1367, %v1782
        %v1784 = vsub.f32 %v1367, %v1783
        %v1785 = vand.u32 2147483647, %v1784
        %v1786 = vadd.f32 %v1779, %v1785
        %v1787 = vlaneseq
        %v1788 = vshrl.u32 %v1787, 7
        %v1789 = vsub.s32 2, %v1788
        %v1790 = vrot.slane %v1369, %v1789
        %v1791 = vsub.f32 %v1369, %v1790
        %v1792 = vand.u32 2147483647, %v1791
        %v1793 = vadd.f32 %v1786, %v1792
        %v1794 = vlaneseq
        %v1795 = vshrl.u32 %v1794, 7
        %v1796 = vsub.s32 2, %v1795
        %v1797 = vrot.slane %v1408, %v1796
        %v1798 = vsub.f32 %v1408, %v1797
        %v1799 = vand.u32 2147483647, %v1798
        %v1800 = vadd.f32 %v1793, %v1799
        %v1801 = vlaneseq
        %v1802 = vshrl.u32 %v1801, 7
        %v1803 = vsub.s32 2, %v1802
        %v1804 = vrot.slane %v1410, %v1803
        %v1805 = vsub.f32 %v1410, %v1804
        %v1806 = vand.u32 2147483647, %v1805
        %v1807 = vadd.f32 %v1800, %v1806
        %v1808 = vlaneseq
        %v1809 = vshrl.u32 %v1808, 7
        %v1810 = vsub.s32 2, %v1809
        %v1811 = vrot.slane %v1449, %v1810
        %v1812 = vsub.f32 %v1449, %v1811
        %v1813 = vand.u32 2147483647, %v1812
        %v1814 = vadd.f32 %v1807, %v1813
        %v1815 = vlaneseq
        %v1816 = vshrl.u32 %v1815, 7
        %v1817 = vsub.s32 2, %v1816
        %v1818 = vrot.slane %v1451, %v1817
        %v1819 = vsub.f32 %v1451, %v1818
        %v1820 = vand.u32 2147483647, %v1819
        %v1821 = vadd.f32 %v1814, %v1820
        %v1822 = vlaneseq
        %v1823 = vshrl.u32 %v1822, 7
        %v1824 = vsub.s32 2, %v1823
        %v1825 = vrot.slane %v1490, %v1824
        %v1826 = vsub.f32 %v1490, %v1825
        %v1827 = vand.u32 2147483647, %v1826
        %v1828 = vadd.f32 %v1821, %v1827
        %v1829 = vlaneseq
        %v1830 = vshrl.u32 %v1829, 7
        %v1831 = vsub.s32 2, %v1830
        %v1832 = vrot.slane %v1492, %v1831
        %v1833 = vsub.f32 %v1492, %v1832
        %v1834 = vand.u32 2147483647, %v1833
        %v1835 = vadd.f32 %v1828, %v1834
        %v1836 = vsub.f32 0.0, %v1835
        %v1837 = vmul.f32 %v1836, 1.442695
        %v1838 = vpow.pop %v1837
        %v1839 = vadd.f32 %v1724, %v1838
        %v1840 = vlaneseq
        %v1841 = vshrl.u32 %v1840, 7
        %v1842 = vsub.s32 3, %v1841
        %v1843 = vrot.slane %v1203, %v1842
        %v1844 = vsub.f32 %v1203, %v1843
        %v1845 = vand.u32 2147483647, %v1844
        %v1846 = vlaneseq
        %v1847 = vshrl.u32 %v1846, 7
        %v1848 = vsub.s32 3, %v1847
        %v1849 = vrot.slane %v1205, %v1848
        %v1850 = vsub.f32 %v1205, %v1849
        %v1851 = vand.u32 2147483647, %v1850
        %v1852 = vadd.f32 %v1845, %v1851
        %v1853 = vlaneseq
        %v1854 = vshrl.u32 %v1853, 7
        %v1855 = vsub.s32 3, %v1854
        %v1856 = vrot.slane %v1244, %v1855
        %v1857 = vsub.f32 %v1244, %v1856
        %v1858 = vand.u32 2147483647, %v1857
        %v1859 = vadd.f32 %v1852, %v1858
        %v1860 = vlaneseq
        %v1861 = vshrl.u32 %v1860, 7
        %v1862 = vsub.s32 3, %v1861
        %v1863 = vrot.slane %v1246, %v1862
        %v1864 = vsub.f32 %v1246, %v1863
        %v1865 = vand.u32 2147483647, %v1864
        %v1866 = vadd.f32 %v1859, %v1865
        %v1867 = vlaneseq
        %v1868 = vshrl.u32 %v1867, 7
        %v1869 = vsub.s32 3, %v1868
        %v1870 = vrot.slane %v1285, %v1869
        %v1871 = vsub.f32 %v1285, %v1870
        %v1872 = vand.u32 2147483647, %v1871
        %v1873 = vadd.f32 %v1866, %v1872
        %v1874 = vlaneseq
        %v1875 = vshrl.u32 %v1874, 7
        %v1876 = vsub.s32 3, %v1875
        %v1877 = vrot.slane %v1287, %v1876
        %v1878 = vsub.f32 %v1287, %v1877
        %v1879 = vand.u32 2147483647, %v1878
        %v1880 = vadd.f32 %v1873, %v1879
        %v1881 = vlaneseq
        %v1882 = vshrl.u32 %v1881, 7
        %v1883 = vsub.s32 3, %v1882
        %v1884 = vrot.slane %v1326, %v1883
        %v1885 = vsub.f32 %v1326, %v1884
        %v1886 = vand.u32 2147483647, %v1885
        %v1887 = vadd.f32 %v1880, %v1886
        %v1888 = vlaneseq
        %v1889 = vshrl.u32 %v1888, 7
        %v1890 = vsub.s32 3, %v1889
        %v1891 = vrot.slane %v1328, %v1890
        %v1892 = vsub.f32 %v1328, %v1891
        %v1893 = vand.u32 2147483647, %v1892
        %v1894 = vadd.f32 %v1887, %v1893
        %v1895 = vlaneseq
        %v1896 = vshrl.u32 %v1895, 7
        %v1897 = vsub.s32 3, %v1896
        %v1898 = vrot.slane %v1367, %v1897
        %v1899 = vsub.f32 %v1367, %v1898
        %v1900 = vand.u32 2147483647, %v1899
        %v1901 = vadd.f32 %v1894, %v1900
        %v1902 = vlaneseq
        %v1903 = vshrl.u32 %v1902, 7
        %v1904 = vsub.s32 3, %v1903
        %v1905 = vrot.slane %v1369, %v1904
        %v1906 = vsub.f32 %v1369, %v1905
        %v1907 = vand.u32 2147483647, %v1906
        %v1908 = vadd.f32 %v1901, %v1907
        %v1909 = vlaneseq
        %v1910 = vshrl.u32 %v1909, 7
        %v1911 = vsub.s32 3, %v1910
        %v1912 = vrot.slane %v1408, %v1911
        %v1913 = vsub.f32 %v1408, %v1912
        %v1914 = vand.u32 2147483647, %v1913
        %v1915 = vadd.f32 %v1908, %v1914
        %v1916 = vlaneseq
        %v1917 = vshrl.u32 %v1916, 7
        %v1918 = vsub.s32 3, %v1917
        %v1919 = vrot.slane %v1410, %v1918
        %v1920 = vsub.f32 %v1410, %v1919
        %v1921 = vand.u32 2147483647, %v1920
        %v1922 = vadd.f32 %v1915, %v1921
        %v1923 = vlaneseq
        %v1924 = vshrl.u32 %v1923, 7
        %v1925 = vsub.s32 3, %v1924
        %v1926 = vrot.slane %v1449, %v1925
        %v1927 = vsub.f32 %v1449, %v1926
        %v1928 = vand.u32 2147483647, %v1927
        %v1929 = vadd.f32 %v1922, %v1928
        %v1930 = vlaneseq
        %v1931 = vshrl.u32 %v1930, 7
        %v1932 = vsub.s32 3, %v1931
        %v1933 = vrot.slane %v1451, %v1932
        %v1934 = vsub.f32 %v1451, %v1933
        %v1935 = vand.u32 2147483647, %v1934
        %v1936 = vadd.f32 %v1929, %v1935
        %v1937 = vlaneseq
        %v1938 = vshrl.u32 %v1937, 7
        %v1939 = vsub.s32 3, %v1938
        %v1940 = vrot.slane %v1490, %v1939
        %v1941 = vsub.f32 %v1490, %v1940
        %v1942 = vand.u32 2147483647, %v1941
        %v1943 = vadd.f32 %v1936, %v1942
        %v1944 = vlaneseq
        %v1945 = vshrl.u32 %v1944, 7
        %v1946 = vsub.s32 3, %v1945
        %v1947 = vrot.slane %v1492, %v1946
        %v1948 = vsub.f32 %v1492, %v1947
        %v1949 = vand.u32 2147483647, %v1948
        %v1950 = vadd.f32 %v1943, %v1949
        %v1951 = vsub.f32 0.0, %v1950
        %v1952 = vmul.f32 %v1951, 1.442695
        %v1953 = vpow.pop %v1952
        %v1954 = vadd.f32 %v1839, %v1953
        %v1955 = vlaneseq
        %v1956 = vshrl.u32 %v1955, 7
        %v1957 = vsub.s32 4, %v1956
        %v1958 = vrot.slane %v1203, %v1957
        %v1959 = vsub.f32 %v1203, %v1958
        %v1960 = vand.u32 2147483647, %v1959
        %v1961 = vlaneseq
        %v1962 = vshrl.u32 %v1961, 7
        %v1963 = vsub.s32 4, %v1962
        %v1964 = vrot.slane %v1205, %v1963
        %v1965 = vsub.f32 %v1205, %v1964
        %v1966 = vand.u32 2147483647, %v1965
        %v1967 = vadd.f32 %v1960, %v1966
        %v1968 = vlaneseq
        %v1969 = vshrl.u32 %v1968, 7
        %v1970 = vsub.s32 4, %v1969
        %v1971 = vrot.slane %v1244, %v1970
        %v1972 = vsub.f32 %v1244, %v1971
        %v1973 = vand.u32 2147483647, %v1972
        %v1974 = vadd.f32 %v1967, %v1973
        %v1975 = vlaneseq
        %v1976 = vshrl.u32 %v1975, 7
        %v1977 = vsub.s32 4, %v1976
        %v1978 = vrot.slane %v1246, %v1977
        %v1979 = vsub.f32 %v1246, %v1978
        %v1980 = vand.u32 2147483647, %v1979
        %v1981 = vadd.f32 %v1974, %v1980
        %v1982 = vlaneseq
        %v1983 = vshrl.u32 %v1982, 7
        %v1984 = vsub.s32 4, %v1983
        %v1985 = vrot.slane %v1285, %v1984
        %v1986 = vsub.f32 %v1285, %v1985
        %v1987 = vand.u32 2147483647, %v1986
        %v1988 = vadd.f32 %v1981, %v1987
        %v1989 = vlaneseq
        %v1990 = vshrl.u32 %v1989, 7
        %v1991 = vsub.s32 4, %v1990
        %v1992 = vrot.slane %v1287, %v1991
        %v1993 = vsub.f32 %v1287, %v1992
        %v1994 = vand.u32 2147483647, %v1993
        %v1995 = vadd.f32 %v1988, %v1994
        %v1996 = vlaneseq
        %v1997 = vshrl.u32 %v1996, 7
        %v1998 = vsub.s32 4, %v1997
        %v1999 = vrot.slane %v1326, %v1998
        %v2000 = vsub.f32 %v1326, %v1999
        %v2001 = vand.u32 2147483647, %v2000
        %v2002 = vadd.f32 %v1995, %v2001
        %v2003 = vlaneseq
        %v2004 = vshrl.u32 %v2003, 7
        %v2005 = vsub.s32 4, %v2004
        %v2006 = vrot.slane %v1328, %v2005
        %v2007 = vsub.f32 %v1328, %v2006
        %v2008 = vand.u32 2147483647, %v2007
        %v2009 = vadd.f32 %v2002, %v2008
        %v2010 = vlaneseq
        %v2011 = vshrl.u32 %v2010, 7
        %v2012 = vsub.s32 4, %v2011
        %v2013 = vrot.slane %v1367, %v2012
        %v2014 = vsub.f32 %v1367, %v2013
        %v2015 = vand.u32 2147483647, %v2014
        %v2016 = vadd.f32 %v2009, %v2015
        %v2017 = vlaneseq
        %v2018 = vshrl.u32 %v2017, 7
        %v2019 = vsub.s32 4, %v2018
        %v2020 = vrot.slane %v1369, %v2019
        %v2021 = vsub.f32 %v1369, %v2020
        %v2022 = vand.u32 2147483647, %v2021
        %v2023 = vadd.f32 %v2016, %v2022
        %v2024 = vlaneseq
        %v2025 = vshrl.u32 %v2024, 7
        %v2026 = vsub.s32 4, %v2025
        %v2027 = vrot.slane %v1408, %v2026
        %v2028 = vsub.f32 %v1408, %v2027
        %v2029 = vand.u32 2147483647, %v2028
        %v2030 = vadd.f32 %v2023, %v2029
        %v2031 = vlaneseq
        %v2032 = vshrl.u32 %v2031, 7
        %v2033 = vsub.s32 4, %v2032
        %v2034 = vrot.slane %v1410, %v2033
        %v2035 = vsub.f32 %v1410, %v2034
        %v2036 = vand.u32 2147483647, %v2035
        %v2037 = vadd.f32 %v2030, %v2036
        %v2038 = vlaneseq
        %v2039 = vshrl.u32 %v2038, 7
        %v2040 = vsub.s32 4, %v2039
        %v2041 = vrot.slane %v1449, %v2040
        %v2042 = vsub.f32 %v1449, %v2041
        %v2043 = vand.u32 2147483647, %v2042
        %v2044 = vadd.f32 %v2037, %v2043
        %v2045 = vlaneseq
        %v2046 = vshrl.u32 %v2045, 7
        %v2047 = vsub.s32 4, %v2046
        %v2048 = vrot.slane %v1451, %v2047
        %v2049 = vsub.f32 %v1451, %v2048
        %v2050 = vand.u32 2147483647, %v2049
        %v2051 = vadd.f32 %v2044, %v2050
        %v2052 = vlaneseq
        %v2053 = vshrl.u32 %v2052, 7
        %v2054 = vsub.s32 4, %v2053
        %v2055 = vrot.slane %v1490, %v2054
        %v2056 = vsub.f32 %v1490, %v2055
        %v2057 = vand.u32 2147483647, %v2056
        %v2058 = vadd.f32 %v2051, %v2057
        %v2059 = vlaneseq
        %v2060 = vshrl.u32 %v2059, 7
        %v2061 = vsub.s32 4, %v2060
        %v2062 = vrot.slane %v1492, %v2061
        %v2063 = vsub.f32 %v1492, %v2062
        %v2064 = vand.u32 2147483647, %v2063
        %v2065 = vadd.f32 %v2058, %v2064
        %v2066 = vsub.f32 0.0, %v2065
        %v2067 = vmul.f32 %v2066, 1.442695
        %v2068 = vpow.pop %v2067
        %v2069 = vadd.f32 %v1954, %v2068
        %v2070 = vlaneseq
        %v2071 = vshrl.u32 %v2070, 7
        %v2072 = vsub.s32 5, %v2071
        %v2073 = vrot.slane %v1203, %v2072
        %v2074 = vsub.f32 %v1203, %v2073
        %v2075 = vand.u32 2147483647, %v2074
        %v2076 = vlaneseq
        %v2077 = vshrl.u32 %v2076, 7
        %v2078 = vsub.s32 5, %v2077
        %v2079 = vrot.slane %v1205, %v2078
        %v2080 = vsub.f32 %v1205, %v2079
        %v2081 = vand.u32 2147483647, %v2080
        %v2082 = vadd.f32 %v2075, %v2081
        %v2083 = vlaneseq
        %v2084 = vshrl.u32 %v2083, 7
        %v2085 = vsub.s32 5, %v2084
        %v2086 = vrot.slane %v1244, %v2085
        %v2087 = vsub.f32 %v1244, %v2086
        %v2088 = vand.u32 2147483647, %v2087
        %v2089 = vadd.f32 %v2082, %v2088
        %v2090 = vlaneseq
        %v2091 = vshrl.u32 %v2090, 7
        %v2092 = vsub.s32 5, %v2091
        %v2093 = vrot.slane %v1246, %v2092
        %v2094 = vsub.f32 %v1246, %v2093
        %v2095 = vand.u32 2147483647, %v2094
        %v2096 = vadd.f32 %v2089, %v2095
        %v2097 = vlaneseq
        %v2098 = vshrl.u32 %v2097, 7
        %v2099 = vsub.s32 5, %v2098
        %v2100 = vrot.slane %v1285, %v2099
        %v2101 = vsub.f32 %v1285, %v2100
        %v2102 = vand.u32 2147483647, %v2101
        %v2103 = vadd.f32 %v2096, %v2102
        %v2104 = vlaneseq
        %v2105 = vshrl.u32 %v2104, 7
        %v2106 = vsub.s32 5, %v2105
        %v2107 = vrot.slane %v1287, %v2106
        %v2108 = vsub.f32 %v1287, %v2107
        %v2109 = vand.u32 2147483647, %v2108
        %v2110 = vadd.f32 %v2103, %v2109
        %v2111 = vlaneseq
        %v2112 = vshrl.u32 %v2111, 7
        %v2113 = vsub.s32 5, %v2112
        %v2114 = vrot.slane %v1326, %v2113
        %v2115 = vsub.f32 %v1326, %v2114
        %v2116 = vand.u32 2147483647, %v2115
        %v2117 = vadd.f32 %v2110, %v2116
        %v2118 = vlaneseq
        %v2119 = vshrl.u32 %v2118, 7
        %v2120 = vsub.s32 5, %v2119
        %v2121 = vrot.slane %v1328, %v2120
        %v2122 = vsub.f32 %v1328, %v2121
        %v2123 = vand.u32 2147483647, %v2122
        %v2124 = vadd.f32 %v2117, %v2123
        %v2125 = vlaneseq
        %v2126 = vshrl.u32 %v2125, 7
        %v2127 = vsub.s32 5, %v2126
        %v2128 = vrot.slane %v1367, %v2127
        %v2129 = vsub.f32 %v1367, %v2128
        %v2130 = vand.u32 2147483647, %v2129
        %v2131 = vadd.f32 %v2124, %v2130
        %v2132 = vlaneseq
        %v2133 = vshrl.u32 %v2132, 7
        %v2134 = vsub.s32 5, %v2133
        %v2135 = vrot.slane %v1369, %v2134
        %v2136 = vsub.f32 %v1369, %v2135
        %v2137 = vand.u32 2147483647, %v2136
        %v2138 = vadd.f32 %v2131, %v2137
        %v2139 = vlaneseq
        %v2140 = vshrl.u32 %v2139, 7
        %v2141 = vsub.s32 5, %v2140
        %v2142 = vrot.slane %v1408, %v2141
        %v2143 = vsub.f32 %v1408, %v2142
        %v2144 = vand.u32 2147483647, %v2143
        %v2145 = vadd.f32 %v2138, %v2144
        %v2146 = vlaneseq
        %v2147 = vshrl.u32 %v2146, 7
        %v2148 = vsub.s32 5, %v2147
        %v2149 = vrot.slane %v1410, %v2148
        %v2150 = vsub.f32 %v1410, %v2149
        %v2151 = vand.u32 2147483647, %v2150
        %v2152 = vadd.f32 %v2145, %v2151
        %v2153 = vlaneseq
        %v2154 = vshrl.u32 %v2153, 7
        %v2155 = vsub.s32 5, %v2154
        %v2156 = vrot.slane %v1449, %v2155
        %v2157 = vsub.f32 %v1449, %v2156
        %v2158 = vand.u32 2147483647, %v2157
        %v2159 = vadd.f32 %v2152, %v2158
        %v2160 = vlaneseq
        %v2161 = vshrl.u32 %v2160, 7
        %v2162 = vsub.s32 5, %v2161
        %v2163 = vrot.slane %v1451, %v2162
        %v2164 = vsub.f32 %v1451, %v2163
        %v2165 = vand.u32 2147483647, %v2164
        %v2166 = vadd.f32 %v2159, %v2165
        %v2167 = vlaneseq
        %v2168 = vshrl.u32 %v2167, 7
        %v2169 = vsub.s32 5, %v2168
        %v2170 = vrot.slane %v1490, %v2169
        %v2171 = vsub.f32 %v1490, %v2170
        %v2172 = vand.u32 2147483647, %v2171
        %v2173 = vadd.f32 %v2166, %v2172
        %v2174 = vlaneseq
        %v2175 = vshrl.u32 %v2174, 7
        %v2176 = vsub.s32 5, %v2175
        %v2177 = vrot.slane %v1492, %v2176
        %v2178 = vsub.f32 %v1492, %v2177
        %v2179 = vand.u32 2147483647, %v2178
        %v2180 = vadd.f32 %v2173, %v2179
        %v2181 = vsub.f32 0.0, %v2180
        %v2182 = vmul.f32 %v2181, 1.442695
        %v2183 = vpow.pop %v2182
        %v2184 = vadd.f32 %v2069, %v2183
        %v2185 = vlaneseq
        %v2186 = vshrl.u32 %v2185, 7
        %v2187 = vsub.s32 6, %v2186
        %v2188 = vrot.slane %v1203, %v2187
        %v2189 = vsub.f32 %v1203, %v2188
        %v2190 = vand.u32 2147483647, %v2189
        %v2191 = vlaneseq
        %v2192 = vshrl.u32 %v2191, 7
        %v2193 = vsub.s32 6, %v2192
        %v2194 = vrot.slane %v1205, %v2193
        %v2195 = vsub.f32 %v1205, %v2194
        %v2196 = vand.u32 2147483647, %v2195
        %v2197 = vadd.f32 %v2190, %v2196
        %v2198 = vlaneseq
        %v2199 = vshrl.u32 %v2198, 7
        %v2200 = vsub.s32 6, %v2199
        %v2201 = vrot.slane %v1244, %v2200
        %v2202 = vsub.f32 %v1244, %v2201
        %v2203 = vand.u32 2147483647, %v2202
        %v2204 = vadd.f32 %v2197, %v2203
        %v2205 = vlaneseq
        %v2206 = vshrl.u32 %v2205, 7
        %v2207 = vsub.s32 6, %v2206
        %v2208 = vrot.slane %v1246, %v2207
        %v2209 = vsub.f32 %v1246, %v2208
        %v2210 = vand.u32 2147483647, %v2209
        %v2211 = vadd.f32 %v2204, %v2210
        %v2212 = vlaneseq
        %v2213 = vshrl.u32 %v2212, 7
        %v2214 = vsub.s32 6, %v2213
        %v2215 = vrot.slane %v1285, %v2214
        %v2216 = vsub.f32 %v1285, %v2215
        %v2217 = vand.u32 2147483647, %v2216
        %v2218 = vadd.f32 %v2211, %v2217
        %v2219 = vlaneseq
        %v2220 = vshrl.u32 %v2219, 7
        %v2221 = vsub.s32 6, %v2220
        %v2222 = vrot.slane %v1287, %v2221
        %v2223 = vsub.f32 %v1287, %v2222
        %v2224 = vand.u32 2147483647, %v2223
        %v2225 = vadd.f32 %v2218, %v2224
        %v2226 = vlaneseq
        %v2227 = vshrl.u32 %v2226, 7
        %v2228 = vsub.s32 6, %v2227
        %v2229 = vrot.slane %v1326, %v2228
        %v2230 = vsub.f32 %v1326, %v2229
        %v2231 = vand.u32 2147483647, %v2230
        %v2232 = vadd.f32 %v2225, %v2231
        %v2233 = vlaneseq
        %v2234 = vshrl.u32 %v2233, 7
        %v2235 = vsub.s32 6, %v2234
        %v2236 = vrot.slane %v1328, %v2235
        %v2237 = vsub.f32 %v1328, %v2236
        %v2238 = vand.u32 2147483647, %v2237
        %v2239 = vadd.f32 %v2232, %v2238
        %v2240 = vlaneseq
        %v2241 = vshrl.u32 %v2240, 7
        %v2242 = vsub.s32 6, %v2241
        %v2243 = vrot.slane %v1367, %v2242
        %v2244 = vsub.f32 %v1367, %v2243
        %v2245 = vand.u32 2147483647, %v2244
        %v2246 = vadd.f32 %v2239, %v2245
        %v2247 = vlaneseq
        %v2248 = vshrl.u32 %v2247, 7
        %v2249 = vsub.s32 6, %v2248
        %v2250 = vrot.slane %v1369, %v2249
        %v2251 = vsub.f32 %v1369, %v2250
        %v2252 = vand.u32 2147483647, %v2251
        %v2253 = vadd.f32 %v2246, %v2252
        %v2254 = vlaneseq
        %v2255 = vshrl.u32 %v2254, 7
        %v2256 = vsub.s32 6, %v2255
        %v2257 = vrot.slane %v1408, %v2256
        %v2258 = vsub.f32 %v1408, %v2257
        %v2259 = vand.u32 2147483647, %v2258
        %v2260 = vadd.f32 %v2253, %v2259
        %v2261 = vlaneseq
        %v2262 = vshrl.u32 %v2261, 7
        %v2263 = vsub.s32 6, %v2262
        %v2264 = vrot.slane %v1410, %v2263
        %v2265 = vsub.f32 %v1410, %v2264
        %v2266 = vand.u32 2147483647, %v2265
        %v2267 = vadd.f32 %v2260, %v2266
        %v2268 = vlaneseq
        %v2269 = vshrl.u32 %v2268, 7
        %v2270 = vsub.s32 6, %v2269
        %v2271 = vrot.slane %v1449, %v2270
        %v2272 = vsub.f32 %v1449, %v2271
        %v2273 = vand.u32 2147483647, %v2272
        %v2274 = vadd.f32 %v2267, %v2273
        %v2275 = vlaneseq
        %v2276 = vshrl.u32 %v2275, 7
        %v2277 = vsub.s32 6, %v2276
        %v2278 = vrot.slane %v1451, %v2277
        %v2279 = vsub.f32 %v1451, %v2278
        %v2280 = vand.u32 2147483647, %v2279
        %v2281 = vadd.f32 %v2274, %v2280
        %v2282 = vlaneseq
        %v2283 = vshrl.u32 %v2282, 7
        %v2284 = vsub.s32 6, %v2283
        %v2285 = vrot.slane %v1490, %v2284
        %v2286 = vsub.f32 %v1490, %v2285
        %v2287 = vand.u32 2147483647, %v2286
        %v2288 = vadd.f32 %v2281, %v2287
        %v2289 = vlaneseq
        %v2290 = vshrl.u32 %v2289, 7
        %v2291 = vsub.s32 6, %v2290
        %v2292 = vrot.slane %v1492, %v2291
        %v2293 = vsub.f32 %v1492, %v2292
        %v2294 = vand.u32 2147483647, %v2293
        %v2295 = vadd.f32 %v2288, %v2294
        %v2296 = vsub.f32 0.0, %v2295
        %v2297 = vmul.f32 %v2296, 1.442695
        %v2298 = vpow.pop %v2297
        %v2299 = vadd.f32 %v2184, %v2298
        %v2300 = vlaneseq
        %v2301 = vshrl.u32 %v2300, 7
        %v2302 = vsub.s32 7, %v2301
        %v2303 = vrot.slane %v1203, %v2302
        %v2304 = vsub.f32 %v1203, %v2303
        %v2305 = vand.u32 2147483647, %v2304
        %v2306 = vlaneseq
        %v2307 = vshrl.u32 %v2306, 7
        %v2308 = vsub.s32 7, %v2307
        %v2309 = vrot.slane %v1205, %v2308
        %v2310 = vsub.f32 %v1205, %v2309
        %v2311 = vand.u32 2147483647, %v2310
        %v2312 = vadd.f32 %v2305, %v2311
        %v2313 = vlaneseq
        %v2314 = vshrl.u32 %v2313, 7
        %v2315 = vsub.s32 7, %v2314
        %v2316 = vrot.slane %v1244, %v2315
        %v2317 = vsub.f32 %v1244, %v2316
        %v2318 = vand.u32 2147483647, %v2317
        %v2319 = vadd.f32 %v2312, %v2318
        %v2320 = vlaneseq
        %v2321 = vshrl.u32 %v2320, 7
        %v2322 = vsub.s32 7, %v2321
        %v2323 = vrot.slane %v1246, %v2322
        %v2324 = vsub.f32 %v1246, %v2323
        %v2325 = vand.u32 2147483647, %v2324
        %v2326 = vadd.f32 %v2319, %v2325
        %v2327 = vlaneseq
        %v2328 = vshrl.u32 %v2327, 7
        %v2329 = vsub.s32 7, %v2328
        %v2330 = vrot.slane %v1285, %v2329
        %v2331 = vsub.f32 %v1285, %v2330
        %v2332 = vand.u32 2147483647, %v2331
        %v2333 = vadd.f32 %v2326, %v2332
        %v2334 = vlaneseq
        %v2335 = vshrl.u32 %v2334, 7
        %v2336 = vsub.s32 7, %v2335
        %v2337 = vrot.slane %v1287, %v2336
        %v2338 = vsub.f32 %v1287, %v2337
        %v2339 = vand.u32 2147483647, %v2338
        %v2340 = vadd.f32 %v2333, %v2339
        %v2341 = vlaneseq
        %v2342 = vshrl.u32 %v2341, 7
        %v2343 = vsub.s32 7, %v2342
        %v2344 = vrot.slane %v1326, %v2343
        %v2345 = vsub.f32 %v1326, %v2344
        %v2346 = vand.u32 2147483647, %v2345
        %v2347 = vadd.f32 %v2340, %v2346
        %v2348 = vlaneseq
        %v2349 = vshrl.u32 %v2348, 7
        %v2350 = vsub.s32 7, %v2349
        %v2351 = vrot.slane %v1328, %v2350
        %v2352 = vsub.f32 %v1328, %v2351
        %v2353 = vand.u32 2147483647, %v2352
        %v2354 = vadd.f32 %v2347, %v2353
        %v2355 = vlaneseq
        %v2356 = vshrl.u32 %v2355, 7
        %v2357 = vsub.s32 7, %v2356
        %v2358 = vrot.slane %v1367, %v2357
        %v2359 = vsub.f32 %v1367, %v2358
        %v2360 = vand.u32 2147483647, %v2359
        %v2361 = vadd.f32 %v2354, %v2360
        %v2362 = vlaneseq
        %v2363 = vshrl.u32 %v2362, 7
        %v2364 = vsub.s32 7, %v2363
        %v2365 = vrot.slane %v1369, %v2364
        %v2366 = vsub.f32 %v1369, %v2365
        %v2367 = vand.u32 2147483647, %v2366
        %v2368 = vadd.f32 %v2361, %v2367
        %v2369 = vlaneseq
        %v2370 = vshrl.u32 %v2369, 7
        %v2371 = vsub.s32 7, %v2370
        %v2372 = vrot.slane %v1408, %v2371
        %v2373 = vsub.f32 %v1408, %v2372
        %v2374 = vand.u32 2147483647, %v2373
        %v2375 = vadd.f32 %v2368, %v2374
        %v2376 = vlaneseq
        %v2377 = vshrl.u32 %v2376, 7
        %v2378 = vsub.s32 7, %v2377
        %v2379 = vrot.slane %v1410, %v2378
        %v2380 = vsub.f32 %v1410, %v2379
        %v2381 = vand.u32 2147483647, %v2380
        %v2382 = vadd.f32 %v2375, %v2381
        %v2383 = vlaneseq
        %v2384 = vshrl.u32 %v2383, 7
        %v2385 = vsub.s32 7, %v2384
        %v2386 = vrot.slane %v1449, %v2385
        %v2387 = vsub.f32 %v1449, %v2386
        %v2388 = vand.u32 2147483647, %v2387
        %v2389 = vadd.f32 %v2382, %v2388
        %v2390 = vlaneseq
        %v2391 = vshrl.u32 %v2390, 7
        %v2392 = vsub.s32 7, %v2391
        %v2393 = vrot.slane %v1451, %v2392
        %v2394 = vsub.f32 %v1451, %v2393
        %v2395 = vand.u32 2147483647, %v2394
        %v2396 = vadd.f32 %v2389, %v2395
        %v2397 = vlaneseq
        %v2398 = vshrl.u32 %v2397, 7
        %v2399 = vsub.s32 7, %v2398
        %v2400 = vrot.slane %v1490, %v2399
        %v2401 = vsub.f32 %v1490, %v2400
        %v2402 = vand.u32 2147483647, %v2401
        %v2403 = vadd.f32 %v2396, %v2402
        %v2404 = vlaneseq
        %v2405 = vshrl.u32 %v2404, 7
        %v2406 = vsub.s32 7, %v2405
        %v2407 = vrot.slane %v1492, %v2406
        %v2408 = vsub.f32 %v1492, %v2407
        %v2409 = vand.u32 2147483647, %v2408
        %v2410 = vadd.f32 %v2403, %v2409
        %v2411 = vsub.f32 0.0, %v2410
        %v2412 = vmul.f32 %v2411, 1.442695
        %v2413 = vpow.pop %v2412
        %v2414 = vadd.f32 %v2299, %v2413
        %v2415 = vld [vmem:[%s12] sm:$0xff]
        %v2416 = vld [vmem:[%s12 + $0x8] sm:$0xff]
        %v2417 = vld [vmem:[%s12 + $0x10] sm:$0xff]
        %v2418 = vld [vmem:[%s12 + $0x18] sm:$0xff]
        %v2419 = vld [vmem:[%s13] sm:$0xff]
        %v2420 = vld [vmem:[%s13 + $0x8] sm:$0xff]
        %v2421 = vld [vmem:[%s13 + $0x10] sm:$0xff]
        %v2422 = vld [vmem:[%s13 + $0x18] sm:$0xff]
        %v2423 = vld [vmem:[%s13 + $0x20] sm:$0xff]
        %v2424 = vld [vmem:[%s13 + $0x28] sm:$0xff]
        %v2425 = vld [vmem:[%s13 + $0x30] sm:$0xff]
        %v2426 = vld [vmem:[%s13 + $0x38] sm:$0xff]
        %v2427 = vld [vmem:[%s13 + $0x40] sm:$0xff]
        %v2428 = vld [vmem:[%s13 + $0x48] sm:$0xff]
        %v2429 = vld [vmem:[%s13 + $0x50] sm:$0xff]
        %v2430 = vld [vmem:[%s13 + $0x58] sm:$0xff]
        %v2431 = vld [vmem:[%s13 + $0x60] sm:$0xff]
        %v2432 = vld [vmem:[%s13 + $0x68] sm:$0xff]
        %v2433 = vld [vmem:[%s13 + $0x70] sm:$0xff]
        %v2434 = vld [vmem:[%s13 + $0x78] sm:$0xff]
        %2435 = vmatprep.subr.mxu0 0.0
        %2436 = vmatpush1.msra.mxu0 %v2419
        %2437 = vmatprep.subr.mxu0 0.0
        %2438 = vmatpush1.msra.mxu0 %v2420
        %2439 = vmatprep.subr.mxu0 0.0
        %2440 = vmatpush1.msra.mxu0 %v2421
        %2441 = vmatprep.subr.mxu0 0.0
        %2442 = vmatpush1.msra.mxu0 %v2422
        %2443 = vmatprep.subr.mxu0 0.0
        %2444 = vmatpush1.msra.mxu0 %v2423
        %2445 = vmatprep.subr.mxu0 0.0
        %2446 = vmatpush1.msra.mxu0 %v2424
        %2447 = vmatprep.subr.mxu0 0.0
        %2448 = vmatpush1.msra.mxu0 %v2425
        %2449 = vmatprep.subr.mxu0 0.0
        %2450 = vmatpush1.msra.mxu0 %v2426
        %2451 = vmatprep.subr.mxu0 0.0
        %2452 = vmatpush1.msra.mxu0 %v2427
        %2453 = vmatprep.subr.mxu0 0.0
        %2454 = vmatpush1.msra.mxu0 %v2428
        %2455 = vmatprep.subr.mxu0 0.0
        %2456 = vmatpush1.msra.mxu0 %v2429
        %2457 = vmatprep.subr.mxu0 0.0
        %2458 = vmatpush1.msra.mxu0 %v2430
        %2459 = vmatprep.subr.mxu0 0.0
        %2460 = vmatpush1.msra.mxu0 %v2431
        %2461 = vmatprep.subr.mxu0 0.0
        %2462 = vmatpush1.msra.mxu0 %v2432
        %2463 = vmatprep.subr.mxu0 0.0
        %2464 = vmatpush1.msra.mxu0 %v2433
        %2465 = vmatprep.subr.mxu0 0.0
        %2466 = vmatpush1.msra.mxu0 %v2434
        %2467 = vmatprep.subr.mxu0 0.0
        %2468 = vmatpush1.msra.mxu0 0.0
        %2469 = vmatprep.subr.mxu0 0.0
        %2470 = vmatpush1.msra.mxu0 0.0
        %2471 = vmatprep.subr.mxu0 0.0
        %2472 = vmatpush1.msra.mxu0 0.0
        %2473 = vmatprep.subr.mxu0 0.0
        %2474 = vmatpush1.msra.mxu0 0.0
        %2475 = vmatprep.subr.mxu0 0.0
        %2476 = vmatpush1.msra.mxu0 0.0
        %2477 = vmatprep.subr.mxu0 0.0
        %2478 = vmatpush1.msra.mxu0 0.0
        %2479 = vmatprep.subr.mxu0 0.0
        %2480 = vmatpush1.msra.mxu0 0.0
        %2481 = vmatprep.subr.mxu0 0.0
        %2482 = vmatpush1.msra.mxu0 0.0
        %2483 = vmatprep.subr.mxu0 0.0
        %2484 = vmatpush1.msra.mxu0 0.0
        %2485 = vmatprep.subr.mxu0 0.0
        %2486 = vmatpush1.msra.mxu0 0.0
        %2487 = vmatprep.subr.mxu0 0.0
        %2488 = vmatpush1.msra.mxu0 0.0
        %2489 = vmatprep.subr.mxu0 0.0
        %2490 = vmatpush1.msra.mxu0 0.0
        %2491 = vmatprep.subr.mxu0 0.0
        %2492 = vmatpush1.msra.mxu0 0.0
        %2493 = vmatprep.subr.mxu0 0.0
        %2494 = vmatpush1.msra.mxu0 0.0
        %2495 = vmatprep.subr.mxu0 0.0
        %2496 = vmatpush1.msra.mxu0 0.0
        %2497 = vmatprep.subr.mxu0 0.0
        %2498 = vmatpush1.msra.mxu0 0.0
        %2499 = vmatprep.mubr.f32.mxu0 0.0
        %2500 = vmatmul.mubr.f32.gmra.mrb[0].mxu0 %v2414
        %v2501 = vpop.f32.mrb[0].mxu0
        %v2502 = vadd.f32 0.0, %v2501
        %v2503 = vpop.f32.mrb[0].mxu0
        %2504 = vdwg.mxu0
        %v2506 = vsel %vm556, %v970, 0
        %2508 = vmatprep.subr.mxu0 0.0
        %2509 = vmatpush1.msra.mxu0 %v2415
        %2510 = vmatprep.subr.mxu0 0.0
        %2511 = vmatpush1.msra.mxu0 %v2416
        %2512 = vmatprep.subr.mxu0 0.0
        %2513 = vmatpush1.msra.mxu0 %v2417
        %2514 = vmatprep.subr.mxu0 0.0
        %2515 = vmatpush1.msra.mxu0 %v2418
        %2516 = vmatprep.subr.mxu0 0.0
        %2517 = vmatpush1.msra.mxu0 0.0
        %2518 = vmatprep.subr.mxu0 0.0
        %2519 = vmatpush1.msra.mxu0 0.0
        %2520 = vmatprep.subr.mxu0 0.0
        %2521 = vmatpush1.msra.mxu0 0.0
        %2522 = vmatprep.subr.mxu0 0.0
        %2523 = vmatpush1.msra.mxu0 0.0
        %2524 = vmatprep.subr.mxu0 0.0
        %2525 = vmatpush1.msra.mxu0 0.0
        %2526 = vmatprep.subr.mxu0 0.0
        %2527 = vmatpush1.msra.mxu0 0.0
        %2528 = vmatprep.subr.mxu0 0.0
        %2529 = vmatpush1.msra.mxu0 0.0
        %2530 = vmatprep.subr.mxu0 0.0
        %2531 = vmatpush1.msra.mxu0 0.0
        %2532 = vmatprep.subr.mxu0 0.0
        %2533 = vmatpush1.msra.mxu0 0.0
        %2534 = vmatprep.subr.mxu0 0.0
        %2535 = vmatpush1.msra.mxu0 0.0
        %2536 = vmatprep.subr.mxu0 0.0
        %2537 = vmatpush1.msra.mxu0 0.0
        %2538 = vmatprep.subr.mxu0 0.0
        %2539 = vmatpush1.msra.mxu0 0.0
        %2540 = vmatprep.subr.mxu0 0.0
        %2541 = vmatpush1.msra.mxu0 0.0
        %2542 = vmatprep.subr.mxu0 0.0
        %2543 = vmatpush1.msra.mxu0 0.0
        %2544 = vmatprep.subr.mxu0 0.0
        %2545 = vmatpush1.msra.mxu0 0.0
        %2546 = vmatprep.subr.mxu0 0.0
        %2547 = vmatpush1.msra.mxu0 0.0
        %2548 = vmatprep.subr.mxu0 0.0
        %2549 = vmatpush1.msra.mxu0 0.0
        %2550 = vmatprep.subr.mxu0 0.0
        %2551 = vmatpush1.msra.mxu0 0.0
        %2552 = vmatprep.subr.mxu0 0.0
        %2553 = vmatpush1.msra.mxu0 0.0
        %2554 = vmatprep.subr.mxu0 0.0
        %2555 = vmatpush1.msra.mxu0 0.0
        %2556 = vmatprep.subr.mxu0 0.0
        %2557 = vmatpush1.msra.mxu0 0.0
        %2558 = vmatprep.subr.mxu0 0.0
        %2559 = vmatpush1.msra.mxu0 0.0
        %2560 = vmatprep.subr.mxu0 0.0
        %2561 = vmatpush1.msra.mxu0 0.0
        %2562 = vmatprep.subr.mxu0 0.0
        %2563 = vmatpush1.msra.mxu0 0.0
        %2564 = vmatprep.subr.mxu0 0.0
        %2565 = vmatpush1.msra.mxu0 0.0
        %2566 = vmatprep.subr.mxu0 0.0
        %2567 = vmatpush1.msra.mxu0 0.0
        %2568 = vmatprep.subr.mxu0 0.0
        %2569 = vmatpush1.msra.mxu0 0.0
        %2570 = vmatprep.subr.mxu0 0.0
        %2571 = vmatpush1.msra.mxu0 0.0
        %2572 = vmatprep.mubr.f32.mxu0 0.0
        %2573 = vmatmul.mubr.f32.gmra.mrb[0].mxu0 %v2506
        %v2574 = vpop.f32.mrb[0].mxu0
        %v2575 = vadd.f32 %v2502, %v2574
        %v2576 = vpop.f32.mrb[0].mxu0
        %2577 = vdwg.mxu0
        %v2578 = vld [vmem:[#allocation2] sm:$0x1]
        %v2580 = vlaneseq
        %v2581 = vshrl.u32 %v2580, 7
        %v2582 = vsub.s32 0, %v2581
        %v2583 = vrot.slane %v2578, %v2582
        %v2585 = vadd.f32 %v2575, %v2583
        %v2586 = vsub.f32 0.0, %v2585
        %v2587 = vmul.f32 %v2586, 1.442695
        %v2588 = vpow.pop %v2587
        %v2589 = vadd.f32 %v2588, 1.0
        %v2590 = vrcp.pop %v2589
        %vm2591 = vcmask 7168
        %2592 = vst.msk [vmem:[%s529] sm:$0xff] %vm2591, %v2590
        %s2593 = sand.u32 %s361, 1
        %s2594 = scalar_lea.sflag [#allocation4], %s2593
        %s2595 = sand.u32 %s361, 1
        %s2596 = smul.addr %s2595, 8
        %s2597 = scalar_lea.vmem [#allocation3], %s2596
        %p2598 = scmp.lt.s32.totalorder %s33, 1
        %s2599 = scalar_select %p2598, %s33, 1
        %s2600 = smul.addr %s2599, 8
        %s2601 = scalar_lea.vmem %s16, %s2600
        // Predicated region
        $region81: #{discriminator_mlp_premium.1} parent=79 // pred_check
          %p2602 = pneg %p371
        $region82: #{discriminator_mlp_premium.1} parent=79 // pred_check_branch
          %2604 = sbr.rel (%p2602) target = $region84
        $region83: #{discriminator_mlp_premium.1} parent=79 // pred_region
          %s2606 = ssub.s32 128, 128
          %2607 = vsyncadd %s2594, %s2606
          %s2608 = smul.addr %s33, 128
          %s2609 = scalar_lea.hbm %s15, %s2608
          %s2611 = sshll.u32 %s2597, 4
          %s2612 = int_to_ptr.vmem [resolvable:$true] %s2611
          %2614 = dma.vmem_to_hbm [thread:$0]  %s2612, 128, %s2609, %s2594
        $region84: #{discriminator_mlp_premium.1} parent=79 // pred_fallthru
          _
        // Predicated region
        $region85: #{discriminator_mlp_premium.1} parent=79 // pred_check
          %p2615 = pneg %p397
        $region86: #{discriminator_mlp_premium.1} parent=79 // pred_check_branch
          %2617 = sbr.rel (%p2615) target = $region88
        $region87: #{discriminator_mlp_premium.1} parent=79 // pred_region
          _
        $region88: #{discriminator_mlp_premium.1} parent=79 // pred_fallthru
          _
      $region80: #{discriminator_mlp_premium.1} parent=5 // pred_fallthru
        _
      %p2618 = scmp.le.s32.totalorder 2, %s28
      // Predicated region
      $region89: #{discriminator_mlp_premium.1} parent=5 // pred_check
        %p2619 = pneg %p2618
      $region90: #{discriminator_mlp_premium.1} parent=5 // pred_check_branch
        %2621 = sbr.rel (%p2619) target = $region92
      $region91: #{discriminator_mlp_premium.1} parent=5 // pred_region
        %s2622 = ssub.s32 %s28, 2
        // Predicated region
        $region93: #{discriminator_mlp_premium.1} parent=91 // pred_check
          %p2623 = pneg %p377
        $region94: #{discriminator_mlp_premium.1} parent=91 // pred_check_branch
          %2625 = sbr.rel (%p2623) target = $region96
        $region95: #{discriminator_mlp_premium.1} parent=91 // pred_region
          %s2626 = sand.u32 %s362, 1
          %s2627 = scalar_lea.sflag [#allocation4], %s2626
          %s2628 = sand.u32 %s362, 1
          %s2629 = smul.addr %s2628, 8
          %s2630 = scalar_lea.vmem [#allocation3], %s2629
          %2631 = dma.done %s2627, 128
        $region96: #{discriminator_mlp_premium.1} parent=91 // pred_fallthru
          _
        // Predicated region
        $region97: #{discriminator_mlp_premium.1} parent=91 // pred_check
          %p2632 = pneg %p403
        $region98: #{discriminator_mlp_premium.1} parent=91 // pred_check_branch
          %2634 = sbr.rel (%p2632) target = $region100
        $region99: #{discriminator_mlp_premium.1} parent=91 // pred_region
          %p2635 = scmp.lt.s32.totalorder %s34, 1
          %s2636 = scalar_select %p2635, %s34, 1
          %s2637 = smul.addr %s2636, 8
          %s2638 = scalar_lea.vmem %s16, %s2637
        $region100: #{discriminator_mlp_premium.1} parent=91 // pred_fallthru
          _
      $region92: #{discriminator_mlp_premium.1} parent=5 // pred_fallthru
        _
    $region6: #{discriminator_mlp_premium.1} parent=1 // loop_footer
      %s32 = sadd.s32 1, %s28
    $region7: #{discriminator_mlp_premium.1} parent=1 // loop_footer_branch
      %27 = sbr.rel target = $region3
    $region8: #{discriminator_mlp_premium.1} parent=1 // loop_exit
      _
    %2639 = vsyncpa [#allocation4], 1
    %s2640 = scalar_lea.sflag [#allocation4], 1
    %2641 = vsyncpa %s2640, 1

</llo_original>
